<compile_context>
chip_gen: v7x
topology: tpu7x:2x2x1
jax: 0.10.0
libtpu: 0.0.40
codegen_flags: <defaults>
</compile_context>

<pallas_src>
import functools
import math

import jax
import jax.numpy as jnp
from jax import lax
from jax.experimental import pallas as pl
from jax.experimental.pallas import tpu as pltpu

F32 = jnp.float32
BF16 = jnp.bfloat16
LN_EPS = 1e-5
GPT_NEO_WINDOW = 256  # local-attention window of gpt-neo-125M


# ----------------------------------------------------------------------------
# helpers
# ----------------------------------------------------------------------------
def _row_tile(dim, target):
    """Largest multiple-of-8 tile <= target dividing `dim`; if that would give
    a single grid step, halve it (when still aligned) so v7x's 2 TensorCores
    both get work on 'parallel' axes."""
    best = dim
    t = min(target, dim)
    t -= t % 8
    while t >= 8:
        if dim % t == 0:
            best = t
            break
        t -= 8
    if best == dim and dim % 2 == 0 and (dim // 2) % 8 == 0:
        best = dim // 2
    return best


def _lane_tile(dim, target):
    """Largest multiple-of-128 tile <= target dividing `dim`, else full dim."""
    t = min(target, dim)
    t -= t % 128
    while t >= 128:
        if dim % t == 0:
            return t
        t -= 128
    return dim


def _default_vmem_limit():
    # v7x: 64 MiB physical -> ~48 MB budget; v5e/v6e: 128 MiB -> ~96 MB.
    try:
        cap = pltpu.get_tpu_info().vmem_capacity_bytes
        return min(int(cap * 3 // 4), 100 << 20)
    except Exception:
        return 48 << 20


def _gelu_new(x):
    # HF "gelu_new": 0.5*x*(1+tanh(sqrt(2/pi)*(x+0.044715*x^3)))
    return 0.5 * x * (1.0 + jnp.tanh(
        math.sqrt(2.0 / math.pi) * (x + 0.044715 * x * x * x)))


def _layernorm_f32(x, g, b):
    mu = jnp.mean(x, axis=-1, keepdims=True)
    xc = x - mu
    var = jnp.mean(xc * xc, axis=-1, keepdims=True)
    return xc * lax.rsqrt(var + LN_EPS) * g + b


# ----------------------------------------------------------------------------
# kernel 1: fused LayerNorm + QKV projection (no bias, GPT-Neo q/k/v), bf16 out
# ----------------------------------------------------------------------------
def _ln_qkv_kernel(x_ref, g_ref, b_ref, w_ref, o_ref):
    x = x_ref[...].astype(jnp.float32)
    y = _layernorm_f32(x, g_ref[...], b_ref[...]).astype(BF16)
    o_ref[...] = jnp.dot(
        y, w_ref[...], preferred_element_type=jnp.float32).astype(o_ref.dtype)


def pallas_ln_qkv(x, g, b, w_qkv, *, row_tile=256):
    T, H = x.shape
    N = w_qkv.shape[1]
    tm = _row_tile(T, row_tile)
    return pl.pallas_call(
        _ln_qkv_kernel,
        out_shape=jax.ShapeDtypeStruct((T, N), BF16),
        grid=(T // tm,),
        in_specs=[
            pl.BlockSpec((tm, H), lambda i: (i, 0)),
            pl.BlockSpec((1, H), lambda i: (0, 0)),
            pl.BlockSpec((1, H), lambda i: (0, 0)),
            pl.BlockSpec((H, N), lambda i: (0, 0)),   # bf16 weight, resident
        ],
        out_specs=pl.BlockSpec((tm, N), lambda i: (i, 0)),
        compiler_params=pltpu.CompilerParams(
            dimension_semantics=("parallel",)),
    )(x, g.reshape(1, H), b.reshape(1, H), w_qkv.astype(BF16))


# ----------------------------------------------------------------------------
# kernel 2: attention directly on the fused [B, S, 3H] QKV tensor.
#   q/k/v come in as column-windows of the same array (BlockSpecs), heads are
#   split with static slices in VMEM, output store is lane-dense [S, H].
# ----------------------------------------------------------------------------
def _attention_kernel(q_ref, k_ref, v_ref, o_ref, *, n_head):
    # GPT-Neo self-attention: NO 1/sqrt(d) scaling, fp32 softmax, causal mask.
    q = q_ref[0]                     # [S, H] bf16
    k = k_ref[0]
    v = v_ref[0]
    S, H = q.shape
    D = H // n_head
    row = lax.broadcasted_iota(jnp.int32, (S, S), 0)
    col = lax.broadcasted_iota(jnp.int32, (S, S), 1)
    causal = col <= row
    outs = []
    for h in range(n_head):          # static unroll; no reshape/transpose
        sl = slice(h * D, (h + 1) * D)
        s = lax.dot_general(q[:, sl], k[:, sl],
                            dimension_numbers=(((1,), (1,)), ((), ())),
                            preferred_element_type=jnp.float32)
        s = jnp.where(causal, s, -1e30)
        s = s - jnp.max(s, axis=-1, keepdims=True)
        p = jnp.exp(s)
        p = p * pl.reciprocal(jnp.sum(p, axis=-1, keepdims=True), approx=True)
        outs.append(jnp.dot(p.astype(v.dtype), v[:, sl],
                            preferred_element_type=jnp.float32))
    o_ref[0] = jnp.concatenate(outs, axis=-1).astype(o_ref.dtype)


def pallas_attention(qkv, *, n_head):
    """qkv: [B, S, 3H] (bf16) -> [B, S, H] (bf16)."""
    B, S, H3 = qkv.shape
    H = H3 // 3
    # TODO(synk): for long S, switch to flash-style KV tiling with online
    # softmax instead of full-S score matrices.
    return pl.pallas_call(
        functools.partial(_attention_kernel, n_head=n_head),
        out_shape=jax.ShapeDtypeStruct((B, S, H), BF16),
        grid=(B,),
        in_specs=[
            pl.BlockSpec((1, S, H), lambda b: (b, 0, 0)),   # q columns
            pl.BlockSpec((1, S, H), lambda b: (b, 0, 1)),   # k columns
            pl.BlockSpec((1, S, H), lambda b: (b, 0, 2)),   # v columns
        ],
        out_specs=pl.BlockSpec((1, S, H), lambda b: (b, 0, 0)),
        compiler_params=pltpu.CompilerParams(
            dimension_semantics=("parallel",)),
    )(qkv, qkv, qkv)


# ----------------------------------------------------------------------------
# kernel 3: fused  out_proj+bias -> +residual -> LN2 -> fc+gelu_new
#                  -> proj+bias -> +residual            (one kernel per layer)
# ----------------------------------------------------------------------------
def _attn_proj_mlp_kernel(attn_ref, wo_ref, bo_ref, h_ref, g_ref, b_ref,
                          wfc_ref, bfc_ref, wpr_ref, bpr_ref, o_ref):
    a = attn_ref[...]                                           # bf16
    proj = jnp.dot(a, wo_ref[...], preferred_element_type=jnp.float32)
    h1 = h_ref[...].astype(jnp.float32) + proj + bo_ref[...]    # residual 1
    y = _layernorm_f32(h1, g_ref[...], b_ref[...]).astype(BF16)
    ff = _gelu_new(jnp.dot(y, wfc_ref[...],
                           preferred_element_type=jnp.float32) + bfc_ref[...])
    out = jnp.dot(ff.astype(BF16), wpr_ref[...],
                  preferred_element_type=jnp.float32) + bpr_ref[...]
    o_ref[...] = (h1 + out).astype(o_ref.dtype)                 # residual 2


def pallas_attn_proj_mlp(attn, h, wo, bo, g, b, w_fc, b_fc, w_proj, b_proj,
                         *, row_tile=256):
    T, H = h.shape
    Ff = w_fc.shape[1]
    tm = _row_tile(T, row_tile)
    flops = 2 * T * H * H + 4 * T * H * Ff
    bytes_acc = (T * H * (2 + 4 + 4)            # attn(bf16) + h + out
                 + H * H * 2 + 2 * H * Ff * 2   # bf16 weights
                 + (4 * H + Ff) * 4)
    return pl.pallas_call(
        _attn_proj_mlp_kernel,
        out_shape=jax.ShapeDtypeStruct((T, H), h.dtype),
        grid=(T // tm,),
        in_specs=[
            pl.BlockSpec((tm, H), lambda i: (i, 0)),      # attn out (bf16)
            pl.BlockSpec((H, H), lambda i: (0, 0)),       # wo (bf16, resident)
            pl.BlockSpec((1, H), lambda i: (0, 0)),       # bo
            pl.BlockSpec((tm, H), lambda i: (i, 0)),      # residual h
            pl.BlockSpec((1, H), lambda i: (0, 0)),       # ln2 gamma
            pl.BlockSpec((1, H), lambda i: (0, 0)),       # ln2 beta
            pl.BlockSpec((H, Ff), lambda i: (0, 0)),      # w_fc (bf16)
            pl.BlockSpec((1, Ff), lambda i: (0, 0)),      # b_fc
            pl.BlockSpec((Ff, H), lambda i: (0, 0)),      # w_proj (bf16)
            pl.BlockSpec((1, H), lambda i: (0, 0)),       # b_proj
        ],
        out_specs=pl.BlockSpec((tm, H), lambda i: (i, 0)),
        compiler_params=pltpu.CompilerParams(
            dimension_semantics=("parallel",),
            vmem_limit_bytes=_default_vmem_limit()),
        cost_estimate=pl.CostEstimate(flops=flops, transcendentals=T * Ff,
                                      bytes_accessed=bytes_acc),
    )(attn, wo.astype(BF16), bo.reshape(1, H), h,
      g.reshape(1, H), b.reshape(1, H),
      w_fc.astype(BF16), b_fc.reshape(1, Ff),
      w_proj.astype(BF16), b_proj.reshape(1, H))


# ----------------------------------------------------------------------------
# kernel 4: final LayerNorm (row-tiled)
# ----------------------------------------------------------------------------
def _layernorm_kernel(x_ref, g_ref, b_ref, o_ref):
    x = x_ref[...].astype(jnp.float32)
    o_ref[...] = _layernorm_f32(x, g_ref[...], b_ref[...]).astype(o_ref.dtype)


def pallas_layernorm(x, g, b, *, row_tile=256):
    T, H = x.shape
    tm = _row_tile(T, row_tile)
    return pl.pallas_call(
        _layernorm_kernel,
        out_shape=jax.ShapeDtypeStruct((T, H), x.dtype),
        grid=(T // tm,),
        in_specs=[
            pl.BlockSpec((tm, H), lambda i: (i, 0)),
            pl.BlockSpec((1, H), lambda i: (0, 0)),
            pl.BlockSpec((1, H), lambda i: (0, 0)),
        ],
        out_specs=pl.BlockSpec((tm, H), lambda i: (i, 0)),
        compiler_params=pltpu.CompilerParams(
            dimension_semantics=("parallel",)),
    )(x, g.reshape(1, H), b.reshape(1, H))


# ----------------------------------------------------------------------------
# kernel 5: tied lm_head + fused cross-entropy.
#   Tiled (M, V, K) matmul contracting on wte's hidden axis (no runtime
#   transpose), VMEM accumulator over K, and an online logsumexp +
#   picked-logit sweep over the vocab axis in the K-epilogue, so the logits
#   are never re-read from HBM for the loss.  Per-token losses are emitted
#   per row block (no cross-i accumulation -> i stays "parallel").
# ----------------------------------------------------------------------------
def _lm_head_xent_kernel(x_ref, w_ref, lbl_ref, logits_ref, loss_ref,
                         acc_ref, m_ref, l_ref, pick_ref):
    j = pl.program_id(1)
    k = pl.program_id(2)

    @pl.when(k == 0)
    def _():
        acc_ref[...] = jnp.zeros_like(acc_ref)

    acc_ref[...] += lax.dot_general(
        x_ref[...].astype(BF16), w_ref[...],
        dimension_numbers=(((1,), (1,)), ((), ())),   # contract hidden of both
        preferred_element_type=jnp.float32)

    @pl.when(k == pl.num_programs(2) - 1)
    def _():
        z = acc_ref[...]                               # [tm, tn] f32 logits
        logits_ref[...] = z.astype(logits_ref.dtype)

        @pl.when(j == 0)
        def _():
            m_ref[...] = jnp.full_like(m_ref, -1e30)
            l_ref[...] = jnp.zeros_like(l_ref)
            pick_ref[...] = jnp.zeros_like(pick_ref)

        m_prev = m_ref[...]
        m_new = jnp.maximum(m_prev, jnp.max(z, axis=-1, keepdims=True))
        l_ref[...] = (l_ref[...] * jnp.exp(m_prev - m_new)
                      + jnp.sum(jnp.exp(z - m_new), axis=-1, keepdims=True))
        m_ref[...] = m_new
        col = lax.broadcasted_iota(jnp.int32, z.shape, 1) + j * z.shape[1]
        pick_ref[...] += jnp.sum(jnp.where(col == lbl_ref[...], z, 0.0),
                                 axis=-1, keepdims=True)

        @pl.when(j == pl.num_programs(1) - 1)
        def _():
            valid = (lbl_ref[...] >= 0).astype(jnp.float32)
            loss_ref[...] = valid * (m_ref[...] + jnp.log(l_ref[...])
                                     - pick_ref[...])


def pallas_lm_head_xent(x, wte, labels, *, tm_target=512, tn_target=512,
                        tk_target=512):
    """logits = x @ wte.T (tied, no transpose) and per-token xent losses.

    x: [T, H] f32, wte: [V, H], labels: [T] int32 with -100 = ignore.
    Returns (logits [T, V] f32, per_token_loss [T, 1] f32)."""
    T, H = x.shape
    V = wte.shape[0]
    tm = _row_tile(T, tm_target)
    tn = _lane_tile(V, tn_target)
    tk = _lane_tile(H, tk_target)
    # TODO(synk): at real vocab (50257) pad V to a multiple of tn and mask the
    # pad columns to -inf in the logsumexp / logits epilogue.
    flops = 2 * T * V * H
    bytes_acc = ((T // tm) * V * H * 2 + T * H * 4 + T * V * 4 + T * 8)
    logits, per_tok = pl.pallas_call(
        _lm_head_xent_kernel,
        out_shape=(jax.ShapeDtypeStruct((T, V), jnp.float32),
                   jax.ShapeDtypeStruct((T, 1), jnp.float32)),
        grid=(T // tm, V // tn, H // tk),
        in_specs=[
            pl.BlockSpec((tm, tk), lambda i, j, k: (i, k)),
            pl.BlockSpec((tn, tk), lambda i, j, k: (j, k)),   # wte (bf16)
            pl.BlockSpec((tm, 1), lambda i, j, k: (i, 0)),    # labels
        ],
        out_specs=(pl.BlockSpec((tm, tn), lambda i, j, k: (i, j)),
                   pl.BlockSpec((tm, 1), lambda i, j, k: (i, 0))),
        scratch_shapes=[pltpu.VMEM((tm, tn), jnp.float32),    # logits acc
                        pltpu.VMEM((tm, 1), jnp.float32),     # running max
                        pltpu.VMEM((tm, 1), jnp.float32),     # running sum
                        pltpu.VMEM((tm, 1), jnp.float32)],    # picked logit
        compiler_params=pltpu.CompilerParams(
            dimension_semantics=("parallel", "arbitrary", "arbitrary"),
            vmem_limit_bytes=_default_vmem_limit()),
        cost_estimate=pl.CostEstimate(flops=flops, transcendentals=T * V,
                                      bytes_accessed=bytes_acc),
    )(x, wte.astype(BF16), labels.reshape(T, 1).astype(jnp.int32))
    return logits, per_tok


# ----------------------------------------------------------------------------
# Model config / params / forward
# ----------------------------------------------------------------------------
class Config:
    # Small synthetic GPT-Neo-style config (real gpt-neo-125M: vocab=50257,
    # hidden=768, 12 heads, 12 layers, window=256).
    vocab_size = 256
    hidden = 128
    n_head = 4
    n_layer = 2          # alternates ("global", "local"); same mask at S<=256
    max_pos = 32
    ffn = 512            # 4 * hidden


def init_params(key, cfg):
    def nrm(k, shape, std=0.02):
        return std * jax.random.normal(k, shape, F32)

    keys = iter(jax.random.split(key, 4 + 4 * cfg.n_layer))
    p = {
        "wte": nrm(next(keys), (cfg.vocab_size, cfg.hidden)),
        "wpe": nrm(next(keys), (cfg.max_pos, cfg.hidden)),
        "ln_f_g": jnp.ones((cfg.hidden,), F32),
        "ln_f_b": jnp.zeros((cfg.hidden,), F32),
        "layers": [],
    }
    for _ in range(cfg.n_layer):
        p["layers"].append({
            "ln1_g": jnp.ones((cfg.hidden,), F32),
            "ln1_b": jnp.zeros((cfg.hidden,), F32),
            # fused QKV weight = concat([wq, wk, wv], axis=1); no bias (GPT-Neo)
            "w_qkv": nrm(next(keys), (cfg.hidden, 3 * cfg.hidden)),
            "wo": nrm(next(keys), (cfg.hidden, cfg.hidden)),
            "bo": jnp.zeros((cfg.hidden,), F32),
            "ln2_g": jnp.ones((cfg.hidden,), F32),
            "ln2_b": jnp.zeros((cfg.hidden,), F32),
            "w_fc": nrm(next(keys), (cfg.hidden, cfg.ffn)),
            "b_fc": jnp.zeros((cfg.ffn,), F32),
            "w_proj": nrm(next(keys), (cfg.ffn, cfg.hidden)),
            "b_proj": jnp.zeros((cfg.hidden,), F32),
        })
    return p


def gpt_neo_forward(params, input_ids, cfg):
    B, S = input_ids.shape
    # plain causal mask == GPT-Neo global/local masks only while S <= window
    assert S <= GPT_NEO_WINDOW, "local-attention layers need S <= 256"
    T = B * S
    H = cfg.hidden

    # embeddings (gather = XLA glue)
    pos = jnp.arange(S)
    h = (jnp.take(params["wte"], input_ids, axis=0)
         + jnp.take(params["wpe"], pos, axis=0)[None])
    h = h.reshape(T, H).astype(F32)

    for layer in params["layers"]:
        # fused LN1 + QKV projection -> [T, 3H] bf16 (no split / transposes)
        qkv = pallas_ln_qkv(h, layer["ln1_g"], layer["ln1_b"], layer["w_qkv"])
        attn = pallas_attention(qkv.reshape(B, S, 3 * H), n_head=cfg.n_head)
        attn = attn.reshape(T, H)
        # fused: out_proj + bias + residual -> LN2 -> MLP -> + residual
        h = pallas_attn_proj_mlp(attn, h, layer["wo"], layer["bo"],
                                 layer["ln2_g"], layer["ln2_b"],
                                 layer["w_fc"], layer["b_fc"],
                                 layer["w_proj"], layer["b_proj"])

    h = pallas_layernorm(h, params["ln_f_g"], params["ln_f_b"])

    # causal-LM labels: token at (b, s) predicts input_ids[b, s+1]
    labels = jnp.concatenate(
        [input_ids[:, 1:], jnp.full((B, 1), -100, input_ids.dtype)], axis=1)
    logits_flat, per_tok = pallas_lm_head_xent(h, params["wte"],
                                               labels.reshape(T))
    logits = logits_flat.reshape(B, S, cfg.vocab_size)
    loss = jnp.sum(per_tok) / (B * (S - 1))      # mean over valid positions
    return loss, logits


if __name__ == "__main__":
    cfg = Config()
    key = jax.random.PRNGKey(0)
    pkey, dkey = jax.random.split(key)
    params = init_params(pkey, cfg)

    B, S = 2, 8
    input_ids = jax.random.randint(dkey, (B, S), 0, cfg.vocab_size,
                                   dtype=jnp.int32)

    fwd = jax.jit(functools.partial(gpt_neo_forward, cfg=cfg))
    loss, logits = fwd(params, input_ids)
    jax.block_until_ready((loss, logits))
    assert logits.shape == (B, S, cfg.vocab_size)
    assert loss.shape == ()
    print("KERNEL_OK")
</pallas_src>

<mosaic_0001>
module attributes {stable_mosaic.version = 11 : i64} {
  func.func @_ln_qkv_kernel(%arg0: i32, %arg1: memref<8x128xf32, #tpu.memory_space<vmem>>, %arg2: memref<1x128xf32, #tpu.memory_space<vmem>>, %arg3: memref<1x128xf32, #tpu.memory_space<vmem>>, %arg4: memref<128x384xbf16, #tpu.memory_space<vmem>>, %arg5: memref<8x384xbf16, #tpu.memory_space<vmem>>) attributes {dimension_semantics = [#tpu.dimension_semantics<parallel>], iteration_bounds = array<i64: 2>, scalar_prefetch = 0 : i64, scratch_operands = 0 : i64, tpu.core_type = #tpu.core_type<tc>, window_params = [{transform_indices = @transform_0, window_bounds = array<i64: 8, 128>}, {pipeline_mode = #tpu.pipeline_mode<synchronous>, transform_indices = @transform_1, window_bounds = array<i64: 1, 128>}, {pipeline_mode = #tpu.pipeline_mode<synchronous>, transform_indices = @transform_2, window_bounds = array<i64: 1, 128>}, {pipeline_mode = #tpu.pipeline_mode<synchronous>, transform_indices = @transform_3, window_bounds = array<i64: 128, 384>}, {transform_indices = @transform_4, window_bounds = array<i64: 8, 384>}]} {
    %c0 = arith.constant 0 : index
    %c0_0 = arith.constant 0 : index
    %0 = vector.load %arg1[%c0, %c0_0] : memref<8x128xf32, #tpu.memory_space<vmem>>, vector<8x128xf32>
    %c0_1 = arith.constant 0 : index
    %c0_2 = arith.constant 0 : index
    %1 = vector.load %arg2[%c0_1, %c0_2] : memref<1x128xf32, #tpu.memory_space<vmem>>, vector<1x128xf32>
    %c0_3 = arith.constant 0 : index
    %c0_4 = arith.constant 0 : index
    %2 = vector.load %arg3[%c0_3, %c0_4] : memref<1x128xf32, #tpu.memory_space<vmem>>, vector<1x128xf32>
    %cst = arith.constant dense<0.000000e+00> : vector<8xf32>
    %3 = vector.multi_reduction <add>, %0, %cst [1] : vector<8x128xf32> to vector<8xf32>
    %4 = vector.shape_cast %3 : vector<8xf32> to vector<8x1xf32>
    %cst_5 = arith.constant 1.280000e+02 : f32
    %5 = vector.broadcast %cst_5 : f32 to vector<8x1xf32>
    %6 = arith.divf %4, %5 : vector<8x1xf32>
    %7 = vector.broadcast %6 : vector<8x1xf32> to vector<8x128xf32>
    %8 = arith.subf %0, %7 : vector<8x128xf32>
    %9 = arith.mulf %8, %8 : vector<8x128xf32>
    %cst_6 = arith.constant dense<0.000000e+00> : vector<8xf32>
    %10 = vector.multi_reduction <add>, %9, %cst_6 [1] : vector<8x128xf32> to vector<8xf32>
    %11 = vector.shape_cast %10 : vector<8xf32> to vector<8x1xf32>
    %cst_7 = arith.constant 1.280000e+02 : f32
    %12 = vector.broadcast %cst_7 : f32 to vector<8x1xf32>
    %13 = arith.divf %11, %12 : vector<8x1xf32>
    %cst_8 = arith.constant 9.99999974E-6 : f32
    %14 = vector.broadcast %cst_8 : f32 to vector<8x1xf32>
    %15 = arith.addf %13, %14 : vector<8x1xf32>
    %16 = math.rsqrt %15 : vector<8x1xf32>
    %17 = vector.broadcast %16 : vector<8x1xf32> to vector<8x128xf32>
    %18 = arith.mulf %8, %17 : vector<8x128xf32>
    %19 = vector.broadcast %1 : vector<1x128xf32> to vector<8x128xf32>
    %20 = arith.mulf %18, %19 : vector<8x128xf32>
    %21 = vector.broadcast %2 : vector<1x128xf32> to vector<8x128xf32>
    %22 = arith.addf %20, %21 : vector<8x128xf32>
    %23 = arith.truncf %22 : vector<8x128xf32> to vector<8x128xbf16>
    %c0_9 = arith.constant 0 : index
    %c0_10 = arith.constant 0 : index
    %24 = vector.load %arg4[%c0_9, %c0_10] : memref<128x384xbf16, #tpu.memory_space<vmem>>, vector<128x384xbf16>
    %cst_11 = arith.constant dense<0.000000e+00> : vector<8x384xf32>
    %25 = tpu.matmul %23, %24, %cst_11 {dimension_numbers = #tpu.dot_dimension_numbers<[1], [0], [0], [1], [0, 0, 1, 1], [], []>} : vector<8x128xbf16>, vector<128x384xbf16>, vector<8x384xf32> -> vector<8x384xf32>
    %26 = arith.truncf %25 : vector<8x384xf32> to vector<8x384xbf16>
    %c0_12 = arith.constant 0 : index
    %c0_13 = arith.constant 0 : index
    %27 = vector.load %arg5[%c0_12, %c0_13] : memref<8x384xbf16, #tpu.memory_space<vmem>>, vector<8x384xbf16>
    tpu.vector_store %arg5[%c0_12, %c0_13], %26 {strides = array<i32>} : memref<8x384xbf16, #tpu.memory_space<vmem>>, vector<8x384xbf16>,
    return
  }
  func.func @transform_0(%arg0: i32) -> (i32, i32) {
    %c0_i32 = arith.constant 0 : i32
    %c0_i32_0 = arith.constant 0 : i32
    return %arg0, %c0_i32 : i32, i32
  }
  func.func @transform_1(%arg0: i32) -> (i32, i32) {
    %c0_i32 = arith.constant 0 : i32
    %c0_i32_0 = arith.constant 0 : i32
    %c0_i32_1 = arith.constant 0 : i32
    return %c0_i32, %c0_i32_0 : i32, i32
  }
  func.func @transform_2(%arg0: i32) -> (i32, i32) {
    %c0_i32 = arith.constant 0 : i32
    %c0_i32_0 = arith.constant 0 : i32
    %c0_i32_1 = arith.constant 0 : i32
    return %c0_i32, %c0_i32_0 : i32, i32
  }
  func.func @transform_3(%arg0: i32) -> (i32, i32) {
    %c0_i32 = arith.constant 0 : i32
    %c0_i32_0 = arith.constant 0 : i32
    %c0_i32_1 = arith.constant 0 : i32
    return %c0_i32, %c0_i32_0 : i32, i32
  }
  func.func @transform_4(%arg0: i32) -> (i32, i32) {
    %c0_i32 = arith.constant 0 : i32
    %c0_i32_0 = arith.constant 0 : i32
    return %arg0, %c0_i32 : i32, i32
  }
}

module attributes {stable_mosaic.version = 11 : i64} {
  func.func @_attention_kernel(%arg0: i32, %arg1: memref<1x8x128xbf16, #tpu.memory_space<vmem>>, %arg2: memref<1x8x128xbf16, #tpu.memory_space<vmem>>, %arg3: memref<1x8x128xbf16, #tpu.memory_space<vmem>>, %arg4: memref<1x8x128xbf16, #tpu.memory_space<vmem>>) attributes {dimension_semantics = [#tpu.dimension_semantics<parallel>], iteration_bounds = array<i64: 2>, scalar_prefetch = 0 : i64, scratch_operands = 0 : i64, tpu.core_type = #tpu.core_type<tc>, window_params = [{transform_indices = @transform_0, window_bounds = array<i64: 1, 8, 128>}, {transform_indices = @transform_1, window_bounds = array<i64: 1, 8, 128>}, {transform_indices = @transform_2, window_bounds = array<i64: 1, 8, 128>}, {transform_indices = @transform_3, window_bounds = array<i64: 1, 8, 128>}]} {
    %c0 = arith.constant 0 : index
    %c0_0 = arith.constant 0 : index
    %c0_1 = arith.constant 0 : index
    %0 = vector.load %arg1[%c0, %c0_0, %c0_1] : memref<1x8x128xbf16, #tpu.memory_space<vmem>>, vector<1x8x128xbf16>
    %1 = vector.shape_cast %0 : vector<1x8x128xbf16> to vector<8x128xbf16>
    %c0_2 = arith.constant 0 : index
    %c0_3 = arith.constant 0 : index
    %c0_4 = arith.constant 0 : index
    %2 = vector.load %arg2[%c0_2, %c0_3, %c0_4] : memref<1x8x128xbf16, #tpu.memory_space<vmem>>, vector<1x8x128xbf16>
    %3 = vector.shape_cast %2 : vector<1x8x128xbf16> to vector<8x128xbf16>
    %c0_5 = arith.constant 0 : index
    %c0_6 = arith.constant 0 : index
    %c0_7 = arith.constant 0 : index
    %4 = vector.load %arg3[%c0_5, %c0_6, %c0_7] : memref<1x8x128xbf16, #tpu.memory_space<vmem>>, vector<1x8x128xbf16>
    %5 = vector.shape_cast %4 : vector<1x8x128xbf16> to vector<8x128xbf16>
    %6 = tpu.iota {dimensions = array<i32: 0>} : vector<8x8xi32>
    %7 = tpu.iota {dimensions = array<i32: 1>} : vector<8x8xi32>
    %8 = arith.cmpi sle, %7, %6 : vector<8x8xi32>
    %9 = vector.extract_strided_slice %1 {offsets = [0, 0], sizes = [8, 32], strides = [1, 1]} : vector<8x128xbf16> to vector<8x32xbf16>
    %10 = vector.extract_strided_slice %3 {offsets = [0, 0], sizes = [8, 32], strides = [1, 1]} : vector<8x128xbf16> to vector<8x32xbf16>
    %cst = arith.constant dense<0.000000e+00> : vector<8x8xf32>
    %11 = tpu.matmul %9, %10, %cst {dimension_numbers = #tpu.dot_dimension_numbers<[1], [1], [0], [0], [0, 0, 1, 0], [], []>} : vector<8x32xbf16>, vector<8x32xbf16>, vector<8x8xf32> -> vector<8x8xf32>
    %cst_8 = arith.constant -1.000000e+30 : f32
    %12 = vector.broadcast %cst_8 : f32 to vector<8x8xf32>
    %13 = arith.select %8, %11, %12 : vector<8x8xi1>, vector<8x8xf32>
    %cst_9 = arith.constant dense<0xFF800000> : vector<8xf32>
    %14 = vector.multi_reduction <maximumf>, %13, %cst_9 [1] : vector<8x8xf32> to vector<8xf32>
    %15 = vector.shape_cast %14 : vector<8xf32> to vector<8x1xf32>
    %16 = vector.broadcast %15 : vector<8x1xf32> to vector<8x8xf32>
    %17 = arith.subf %13, %16 : vector<8x8xf32>
    %18 = math.exp %17 : vector<8x8xf32>
    %cst_10 = arith.constant dense<0.000000e+00> : vector<8xf32>
    %19 = vector.multi_reduction <add>, %18, %cst_10 [1] : vector<8x8xf32> to vector<8xf32>
    %20 = vector.shape_cast %19 : vector<8xf32> to vector<8x1xf32>
    %21 = tpu.reciprocal %20 {approx = true} : vector<8x1xf32> -> vector<8x1xf32>
    %22 = vector.broadcast %21 : vector<8x1xf32> to vector<8x8xf32>
    %23 = arith.mulf %18, %22 : vector<8x8xf32>
    %24 = arith.truncf %23 : vector<8x8xf32> to vector<8x8xbf16>
    %25 = vector.extract_strided_slice %5 {offsets = [0, 0], sizes = [8, 32], strides = [1, 1]} : vector<8x128xbf16> to vector<8x32xbf16>
    %cst_11 = arith.constant dense<0.000000e+00> : vector<8x32xf32>
    %26 = tpu.matmul %24, %25, %cst_11 {dimension_numbers = #tpu.dot_dimension_numbers<[1], [0], [0], [1], [0, 0, 1, 1], [], []>} : vector<8x8xbf16>, vector<8x32xbf16>, vector<8x32xf32> -> vector<8x32xf32>
    %27 = vector.extract_strided_slice %1 {offsets = [0, 32], sizes = [8, 32], strides = [1, 1]} : vector<8x128xbf16> to vector<8x32xbf16>
    %28 = vector.extract_strided_slice %3 {offsets = [0, 32], sizes = [8, 32], strides = [1, 1]} : vector<8x128xbf16> to vector<8x32xbf16>
    %cst_12 = arith.constant dense<0.000000e+00> : vector<8x8xf32>
    %29 = tpu.matmul %27, %28, %cst_12 {dimension_numbers = #tpu.dot_dimension_numbers<[1], [1], [0], [0], [0, 0, 1, 0], [], []>} : vector<8x32xbf16>, vector<8x32xbf16>, vector<8x8xf32> -> vector<8x8xf32>
    %cst_13 = arith.constant -1.000000e+30 : f32
    %30 = vector.broadcast %cst_13 : f32 to vector<8x8xf32>
    %31 = arith.select %8, %29, %30 : vector<8x8xi1>, vector<8x8xf32>
    %cst_14 = arith.constant dense<0xFF800000> : vector<8xf32>
    %32 = vector.multi_reduction <maximumf>, %31, %cst_14 [1] : vector<8x8xf32> to vector<8xf32>
    %33 = vector.shape_cast %32 : vector<8xf32> to vector<8x1xf32>
    %34 = vector.broadcast %33 : vector<8x1xf32> to vector<8x8xf32>
    %35 = arith.subf %31, %34 : vector<8x8xf32>
    %36 = math.exp %35 : vector<8x8xf32>
    %cst_15 = arith.constant dense<0.000000e+00> : vector<8xf32>
    %37 = vector.multi_reduction <add>, %36, %cst_15 [1] : vector<8x8xf32> to vector<8xf32>
    %38 = vector.shape_cast %37 : vector<8xf32> to vector<8x1xf32>
    %39 = tpu.reciprocal %38 {approx = true} : vector<8x1xf32> -> vector<8x1xf32>
    %40 = vector.broadcast %39 : vector<8x1xf32> to vector<8x8xf32>
    %41 = arith.mulf %36, %40 : vector<8x8xf32>
    %42 = arith.truncf %41 : vector<8x8xf32> to vector<8x8xbf16>
    %43 = vector.extract_strided_slice %5 {offsets = [0, 32], sizes = [8, 32], strides = [1, 1]} : vector<8x128xbf16> to vector<8x32xbf16>
    %cst_16 = arith.constant dense<0.000000e+00> : vector<8x32xf32>
    %44 = tpu.matmul %42, %43, %cst_16 {dimension_numbers = #tpu.dot_dimension_numbers<[1], [0], [0], [1], [0, 0, 1, 1], [], []>} : vector<8x8xbf16>, vector<8x32xbf16>, vector<8x32xf32> -> vector<8x32xf32>
    %45 = vector.extract_strided_slice %1 {offsets = [0, 64], sizes = [8, 32], strides = [1, 1]} : vector<8x128xbf16> to vector<8x32xbf16>
    %46 = vector.extract_strided_slice %3 {offsets = [0, 64], sizes = [8, 32], strides = [1, 1]} : vector<8x128xbf16> to vector<8x32xbf16>
    %cst_17 = arith.constant dense<0.000000e+00> : vector<8x8xf32>
    %47 = tpu.matmul %45, %46, %cst_17 {dimension_numbers = #tpu.dot_dimension_numbers<[1], [1], [0], [0], [0, 0, 1, 0], [], []>} : vector<8x32xbf16>, vector<8x32xbf16>, vector<8x8xf32> -> vector<8x8xf32>
    %cst_18 = arith.constant -1.000000e+30 : f32
    %48 = vector.broadcast %cst_18 : f32 to vector<8x8xf32>
    %49 = arith.select %8, %47, %48 : vector<8x8xi1>, vector<8x8xf32>
    %cst_19 = arith.constant dense<0xFF800000> : vector<8xf32>
    %50 = vector.multi_reduction <maximumf>, %49, %cst_19 [1] : vector<8x8xf32> to vector<8xf32>
    %51 = vector.shape_cast %50 : vector<8xf32> to vector<8x1xf32>
    %52 = vector.broadcast %51 : vector<8x1xf32> to vector<8x8xf32>
    %53 = arith.subf %49, %52 : vector<8x8xf32>
    %54 = math.exp %53 : vector<8x8xf32>
    %cst_20 = arith.constant dense<0.000000e+00> : vector<8xf32>
    %55 = vector.multi_reduction <add>, %54, %cst_20 [1] : vector<8x8xf32> to vector<8xf32>
    %56 = vector.shape_cast %55 : vector<8xf32> to vector<8x1xf32>
    %57 = tpu.reciprocal %56 {approx = true} : vector<8x1xf32> -> vector<8x1xf32>
    %58 = vector.broadcast %57 : vector<8x1xf32> to vector<8x8xf32>
    %59 = arith.mulf %54, %58 : vector<8x8xf32>
    %60 = arith.truncf %59 : vector<8x8xf32> to vector<8x8xbf16>
    %61 = vector.extract_strided_slice %5 {offsets = [0, 64], sizes = [8, 32], strides = [1, 1]} : vector<8x128xbf16> to vector<8x32xbf16>
    %cst_21 = arith.constant dense<0.000000e+00> : vector<8x32xf32>
    %62 = tpu.matmul %60, %61, %cst_21 {dimension_numbers = #tpu.dot_dimension_numbers<[1], [0], [0], [1], [0, 0, 1, 1], [], []>} : vector<8x8xbf16>, vector<8x32xbf16>, vector<8x32xf32> -> vector<8x32xf32>
    %63 = vector.extract_strided_slice %1 {offsets = [0, 96], sizes = [8, 32], strides = [1, 1]} : vector<8x128xbf16> to vector<8x32xbf16>
    %64 = vector.extract_strided_slice %3 {offsets = [0, 96], sizes = [8, 32], strides = [1, 1]} : vector<8x128xbf16> to vector<8x32xbf16>
    %cst_22 = arith.constant dense<0.000000e+00> : vector<8x8xf32>
    %65 = tpu.matmul %63, %64, %cst_22 {dimension_numbers = #tpu.dot_dimension_numbers<[1], [1], [0], [0], [0, 0, 1, 0], [], []>} : vector<8x32xbf16>, vector<8x32xbf16>, vector<8x8xf32> -> vector<8x8xf32>
    %cst_23 = arith.constant -1.000000e+30 : f32
    %66 = vector.broadcast %cst_23 : f32 to vector<8x8xf32>
    %67 = arith.select %8, %65, %66 : vector<8x8xi1>, vector<8x8xf32>
    %cst_24 = arith.constant dense<0xFF800000> : vector<8xf32>
    %68 = vector.multi_reduction <maximumf>, %67, %cst_24 [1] : vector<8x8xf32> to vector<8xf32>
    %69 = vector.shape_cast %68 : vector<8xf32> to vector<8x1xf32>
    %70 = vector.broadcast %69 : vector<8x1xf32> to vector<8x8xf32>
    %71 = arith.subf %67, %70 : vector<8x8xf32>
    %72 = math.exp %71 : vector<8x8xf32>
    %cst_25 = arith.constant dense<0.000000e+00> : vector<8xf32>
    %73 = vector.multi_reduction <add>, %72, %cst_25 [1] : vector<8x8xf32> to vector<8xf32>
    %74 = vector.shape_cast %73 : vector<8xf32> to vector<8x1xf32>
    %75 = tpu.reciprocal %74 {approx = true} : vector<8x1xf32> -> vector<8x1xf32>
    %76 = vector.broadcast %75 : vector<8x1xf32> to vector<8x8xf32>
    %77 = arith.mulf %72, %76 : vector<8x8xf32>
    %78 = arith.truncf %77 : vector<8x8xf32> to vector<8x8xbf16>
    %79 = vector.extract_strided_slice %5 {offsets = [0, 96], sizes = [8, 32], strides = [1, 1]} : vector<8x128xbf16> to vector<8x32xbf16>
    %cst_26 = arith.constant dense<0.000000e+00> : vector<8x32xf32>
    %80 = tpu.matmul %78, %79, %cst_26 {dimension_numbers = #tpu.dot_dimension_numbers<[1], [0], [0], [1], [0, 0, 1, 1], [], []>} : vector<8x8xbf16>, vector<8x32xbf16>, vector<8x32xf32> -> vector<8x32xf32>
    %81 = tpu.concatenate %26, %44, %62, %80 in 1 : vector<8x32xf32>, vector<8x32xf32>, vector<8x32xf32>, vector<8x32xf32> -> vector<8x128xf32>
    %82 = arith.truncf %81 : vector<8x128xf32> to vector<8x128xbf16>
    %c0_27 = arith.constant 0 : index
    %c0_28 = arith.constant 0 : index
    %c0_29 = arith.constant 0 : index
    %83 = vector.load %arg4[%c0_27, %c0_28, %c0_29] : memref<1x8x128xbf16, #tpu.memory_space<vmem>>, vector<1x8x128xbf16>
    %84 = vector.shape_cast %83 : vector<1x8x128xbf16> to vector<8x128xbf16>
    %85 = vector.shape_cast %82 : vector<8x128xbf16> to vector<1x8x128xbf16>
    tpu.vector_store %arg4[%c0_27, %c0_28, %c0_29], %85 {strides = array<i32>} : memref<1x8x128xbf16, #tpu.memory_space<vmem>>, vector<1x8x128xbf16>,
    return
  }
  func.func @transform_0(%arg0: i32) -> (i32, i32, i32) {
    %c0_i32 = arith.constant 0 : i32
    %c0_i32_0 = arith.constant 0 : i32
    %c0_i32_1 = arith.constant 0 : i32
    return %arg0, %c0_i32, %c0_i32_0 : i32, i32, i32
  }
  func.func @transform_1(%arg0: i32) -> (i32, i32, i32) {
    %c0_i32 = arith.constant 0 : i32
    %c1_i32 = arith.constant 1 : i32
    %c0_i32_0 = arith.constant 0 : i32
    return %arg0, %c0_i32, %c1_i32 : i32, i32, i32
  }
  func.func @transform_2(%arg0: i32) -> (i32, i32, i32) {
    %c0_i32 = arith.constant 0 : i32
    %c2_i32 = arith.constant 2 : i32
    %c0_i32_0 = arith.constant 0 : i32
    return %arg0, %c0_i32, %c2_i32 : i32, i32, i32
  }
  func.func @transform_3(%arg0: i32) -> (i32, i32, i32) {
    %c0_i32 = arith.constant 0 : i32
    %c0_i32_0 = arith.constant 0 : i32
    %c0_i32_1 = arith.constant 0 : i32
    return %arg0, %c0_i32, %c0_i32_0 : i32, i32, i32
  }
}

module attributes {stable_mosaic.version = 11 : i64} {
  func.func @_attn_proj_mlp_kernel(%arg0: i32, %arg1: memref<8x128xbf16, #tpu.memory_space<vmem>>, %arg2: memref<128x128xbf16, #tpu.memory_space<vmem>>, %arg3: memref<1x128xf32, #tpu.memory_space<vmem>>, %arg4: memref<8x128xf32, #tpu.memory_space<vmem>>, %arg5: memref<1x128xf32, #tpu.memory_space<vmem>>, %arg6: memref<1x128xf32, #tpu.memory_space<vmem>>, %arg7: memref<128x512xbf16, #tpu.memory_space<vmem>>, %arg8: memref<1x512xf32, #tpu.memory_space<vmem>>, %arg9: memref<512x128xbf16, #tpu.memory_space<vmem>>, %arg10: memref<1x128xf32, #tpu.memory_space<vmem>>, %arg11: memref<8x128xf32, #tpu.memory_space<vmem>>) attributes {dimension_semantics = [#tpu.dimension_semantics<parallel>], iteration_bounds = array<i64: 2>, scalar_prefetch = 0 : i64, scratch_operands = 0 : i64, tpu.core_type = #tpu.core_type<tc>, window_params = [{transform_indices = @transform_0, window_bounds = array<i64: 8, 128>}, {pipeline_mode = #tpu.pipeline_mode<synchronous>, transform_indices = @transform_1, window_bounds = array<i64: 128, 128>}, {pipeline_mode = #tpu.pipeline_mode<synchronous>, transform_indices = @transform_2, window_bounds = array<i64: 1, 128>}, {transform_indices = @transform_3, window_bounds = array<i64: 8, 128>}, {pipeline_mode = #tpu.pipeline_mode<synchronous>, transform_indices = @transform_4, window_bounds = array<i64: 1, 128>}, {pipeline_mode = #tpu.pipeline_mode<synchronous>, transform_indices = @transform_5, window_bounds = array<i64: 1, 128>}, {pipeline_mode = #tpu.pipeline_mode<synchronous>, transform_indices = @transform_6, window_bounds = array<i64: 128, 512>}, {pipeline_mode = #tpu.pipeline_mode<synchronous>, transform_indices = @transform_7, window_bounds = array<i64: 1, 512>}, {pipeline_mode = #tpu.pipeline_mode<synchronous>, transform_indices = @transform_8, window_bounds = array<i64: 512, 128>}, {pipeline_mode = #tpu.pipeline_mode<synchronous>, transform_indices = @transform_9, window_bounds = array<i64: 1, 128>}, {transform_indices = @transform_10, window_bounds = array<i64: 8, 128>}]} {
    %c0 = arith.constant 0 : index
    %c0_0 = arith.constant 0 : index
    %0 = vector.load %arg1[%c0, %c0_0] : memref<8x128xbf16, #tpu.memory_space<vmem>>, vector<8x128xbf16>
    %c0_1 = arith.constant 0 : index
    %c0_2 = arith.constant 0 : index
    %1 = vector.load %arg2[%c0_1, %c0_2] : memref<128x128xbf16, #tpu.memory_space<vmem>>, vector<128x128xbf16>
    %cst = arith.constant dense<0.000000e+00> : vector<8x128xf32>
    %2 = tpu.matmul %0, %1, %cst {dimension_numbers = #tpu.dot_dimension_numbers<[1], [0], [0], [1], [0, 0, 1, 1], [], []>} : vector<8x128xbf16>, vector<128x128xbf16>, vector<8x128xf32> -> vector<8x128xf32>
    %c0_3 = arith.constant 0 : index
    %c0_4 = arith.constant 0 : index
    %3 = vector.load %arg4[%c0_3, %c0_4] : memref<8x128xf32, #tpu.memory_space<vmem>>, vector<8x128xf32>
    %4 = arith.addf %3, %2 : vector<8x128xf32>
    %c0_5 = arith.constant 0 : index
    %c0_6 = arith.constant 0 : index
    %5 = vector.load %arg3[%c0_5, %c0_6] : memref<1x128xf32, #tpu.memory_space<vmem>>, vector<1x128xf32>
    %6 = vector.broadcast %5 : vector<1x128xf32> to vector<8x128xf32>
    %7 = arith.addf %4, %6 : vector<8x128xf32>
    %c0_7 = arith.constant 0 : index
    %c0_8 = arith.constant 0 : index
    %8 = vector.load %arg5[%c0_7, %c0_8] : memref<1x128xf32, #tpu.memory_space<vmem>>, vector<1x128xf32>
    %c0_9 = arith.constant 0 : index
    %c0_10 = arith.constant 0 : index
    %9 = vector.load %arg6[%c0_9, %c0_10] : memref<1x128xf32, #tpu.memory_space<vmem>>, vector<1x128xf32>
    %cst_11 = arith.constant dense<0.000000e+00> : vector<8xf32>
    %10 = vector.multi_reduction <add>, %7, %cst_11 [1] : vector<8x128xf32> to vector<8xf32>
    %11 = vector.shape_cast %10 : vector<8xf32> to vector<8x1xf32>
    %cst_12 = arith.constant 1.280000e+02 : f32
    %12 = vector.broadcast %cst_12 : f32 to vector<8x1xf32>
    %13 = arith.divf %11, %12 : vector<8x1xf32>
    %14 = vector.broadcast %13 : vector<8x1xf32> to vector<8x128xf32>
    %15 = arith.subf %7, %14 : vector<8x128xf32>
    %16 = arith.mulf %15, %15 : vector<8x128xf32>
    %cst_13 = arith.constant dense<0.000000e+00> : vector<8xf32>
    %17 = vector.multi_reduction <add>, %16, %cst_13 [1] : vector<8x128xf32> to vector<8xf32>
    %18 = vector.shape_cast %17 : vector<8xf32> to vector<8x1xf32>
    %cst_14 = arith.constant 1.280000e+02 : f32
    %19 = vector.broadcast %cst_14 : f32 to vector<8x1xf32>
    %20 = arith.divf %18, %19 : vector<8x1xf32>
    %cst_15 = arith.constant 9.99999974E-6 : f32
    %21 = vector.broadcast %cst_15 : f32 to vector<8x1xf32>
    %22 = arith.addf %20, %21 : vector<8x1xf32>
    %23 = math.rsqrt %22 : vector<8x1xf32>
    %24 = vector.broadcast %23 : vector<8x1xf32> to vector<8x128xf32>
    %25 = arith.mulf %15, %24 : vector<8x128xf32>
    %26 = vector.broadcast %8 : vector<1x128xf32> to vector<8x128xf32>
    %27 = arith.mulf %25, %26 : vector<8x128xf32>
    %28 = vector.broadcast %9 : vector<1x128xf32> to vector<8x128xf32>
    %29 = arith.addf %27, %28 : vector<8x128xf32>
    %30 = arith.truncf %29 : vector<8x128xf32> to vector<8x128xbf16>
    %c0_16 = arith.constant 0 : index
    %c0_17 = arith.constant 0 : index
    %31 = vector.load %arg7[%c0_16, %c0_17] : memref<128x512xbf16, #tpu.memory_space<vmem>>, vector<128x512xbf16>
    %cst_18 = arith.constant dense<0.000000e+00> : vector<8x512xf32>
    %32 = tpu.matmul %30, %31, %cst_18 {dimension_numbers = #tpu.dot_dimension_numbers<[1], [0], [0], [1], [0, 0, 1, 1], [], []>} : vector<8x128xbf16>, vector<128x512xbf16>, vector<8x512xf32> -> vector<8x512xf32>
    %c0_19 = arith.constant 0 : index
    %c0_20 = arith.constant 0 : index
    %33 = vector.load %arg8[%c0_19, %c0_20] : memref<1x512xf32, #tpu.memory_space<vmem>>, vector<1x512xf32>
    %34 = vector.broadcast %33 : vector<1x512xf32> to vector<8x512xf32>
    %35 = arith.addf %32, %34 : vector<8x512xf32>
    %cst_21 = arith.constant 5.000000e-01 : f32
    %36 = vector.broadcast %cst_21 : f32 to vector<8x512xf32>
    %37 = arith.mulf %36, %35 : vector<8x512xf32>
    %cst_22 = arith.constant 4.471500e-02 : f32
    %38 = vector.broadcast %cst_22 : f32 to vector<8x512xf32>
    %39 = arith.mulf %38, %35 : vector<8x512xf32>
    %40 = arith.mulf %39, %35 : vector<8x512xf32>
    %41 = arith.mulf %40, %35 : vector<8x512xf32>
    %42 = arith.addf %35, %41 : vector<8x512xf32>
    %cst_23 = arith.constant 0.797884583 : f32
    %43 = vector.broadcast %cst_23 : f32 to vector<8x512xf32>
    %44 = arith.mulf %43, %42 : vector<8x512xf32>
    %45 = math.tanh %44 : vector<8x512xf32>
    %cst_24 = arith.constant 1.000000e+00 : f32
    %46 = vector.broadcast %cst_24 : f32 to vector<8x512xf32>
    %47 = arith.addf %46, %45 : vector<8x512xf32>
    %48 = arith.mulf %37, %47 : vector<8x512xf32>
    %49 = arith.truncf %48 : vector<8x512xf32> to vector<8x512xbf16>
    %c0_25 = arith.constant 0 : index
    %c0_26 = arith.constant 0 : index
    %50 = vector.load %arg9[%c0_25, %c0_26] : memref<512x128xbf16, #tpu.memory_space<vmem>>, vector<512x128xbf16>
    %cst_27 = arith.constant dense<0.000000e+00> : vector<8x128xf32>
    %51 = tpu.matmul %49, %50, %cst_27 {dimension_numbers = #tpu.dot_dimension_numbers<[1], [0], [0], [1], [0, 0, 1, 1], [], []>} : vector<8x512xbf16>, vector<512x128xbf16>, vector<8x128xf32> -> vector<8x128xf32>
    %c0_28 = arith.constant 0 : index
    %c0_29 = arith.constant 0 : index
    %52 = vector.load %arg10[%c0_28, %c0_29] : memref<1x128xf32, #tpu.memory_space<vmem>>, vector<1x128xf32>
    %53 = vector.broadcast %52 : vector<1x128xf32> to vector<8x128xf32>
    %54 = arith.addf %51, %53 : vector<8x128xf32>
    %55 = arith.addf %7, %54 : vector<8x128xf32>
    %c0_30 = arith.constant 0 : index
    %c0_31 = arith.constant 0 : index
    %56 = vector.load %arg11[%c0_30, %c0_31] : memref<8x128xf32, #tpu.memory_space<vmem>>, vector<8x128xf32>
    tpu.vector_store %arg11[%c0_30, %c0_31], %55 {strides = array<i32>} : memref<8x128xf32, #tpu.memory_space<vmem>>, vector<8x128xf32>,
    return
  }
  func.func @transform_0(%arg0: i32) -> (i32, i32) {
    %c0_i32 = arith.constant 0 : i32
    %c0_i32_0 = arith.constant 0 : i32
    return %arg0, %c0_i32 : i32, i32
  }
  func.func @transform_1(%arg0: i32) -> (i32, i32) {
    %c0_i32 = arith.constant 0 : i32
    %c0_i32_0 = arith.constant 0 : i32
    %c0_i32_1 = arith.constant 0 : i32
    return %c0_i32, %c0_i32_0 : i32, i32
  }
  func.func @transform_2(%arg0: i32) -> (i32, i32) {
    %c0_i32 = arith.constant 0 : i32
    %c0_i32_0 = arith.constant 0 : i32
    %c0_i32_1 = arith.constant 0 : i32
    return %c0_i32, %c0_i32_0 : i32, i32
  }
  func.func @transform_3(%arg0: i32) -> (i32, i32) {
    %c0_i32 = arith.constant 0 : i32
    %c0_i32_0 = arith.constant 0 : i32
    return %arg0, %c0_i32 : i32, i32
  }
  func.func @transform_4(%arg0: i32) -> (i32, i32) {
    %c0_i32 = arith.constant 0 : i32
    %c0_i32_0 = arith.constant 0 : i32
    %c0_i32_1 = arith.constant 0 : i32
    return %c0_i32, %c0_i32_0 : i32, i32
  }
  func.func @transform_5(%arg0: i32) -> (i32, i32) {
    %c0_i32 = arith.constant 0 : i32
    %c0_i32_0 = arith.constant 0 : i32
    %c0_i32_1 = arith.constant 0 : i32
    return %c0_i32, %c0_i32_0 : i32, i32
  }
  func.func @transform_6(%arg0: i32) -> (i32, i32) {
    %c0_i32 = arith.constant 0 : i32
    %c0_i32_0 = arith.constant 0 : i32
    %c0_i32_1 = arith.constant 0 : i32
    return %c0_i32, %c0_i32_0 : i32, i32
  }
  func.func @transform_7(%arg0: i32) -> (i32, i32) {
    %c0_i32 = arith.constant 0 : i32
    %c0_i32_0 = arith.constant 0 : i32
    %c0_i32_1 = arith.constant 0 : i32
    return %c0_i32, %c0_i32_0 : i32, i32
  }
  func.func @transform_8(%arg0: i32) -> (i32, i32) {
    %c0_i32 = arith.constant 0 : i32
    %c0_i32_0 = arith.constant 0 : i32
    %c0_i32_1 = arith.constant 0 : i32
    return %c0_i32, %c0_i32_0 : i32, i32
  }
  func.func @transform_9(%arg0: i32) -> (i32, i32) {
    %c0_i32 = arith.constant 0 : i32
    %c0_i32_0 = arith.constant 0 : i32
    %c0_i32_1 = arith.constant 0 : i32
    return %c0_i32, %c0_i32_0 : i32, i32
  }
  func.func @transform_10(%arg0: i32) -> (i32, i32) {
    %c0_i32 = arith.constant 0 : i32
    %c0_i32_0 = arith.constant 0 : i32
    return %arg0, %c0_i32 : i32, i32
  }
}

module attributes {stable_mosaic.version = 11 : i64} {
  func.func @_layernorm_kernel(%arg0: i32, %arg1: memref<8x128xf32, #tpu.memory_space<vmem>>, %arg2: memref<1x128xf32, #tpu.memory_space<vmem>>, %arg3: memref<1x128xf32, #tpu.memory_space<vmem>>, %arg4: memref<8x128xf32, #tpu.memory_space<vmem>>) attributes {dimension_semantics = [#tpu.dimension_semantics<parallel>], iteration_bounds = array<i64: 2>, scalar_prefetch = 0 : i64, scratch_operands = 0 : i64, tpu.core_type = #tpu.core_type<tc>, window_params = [{transform_indices = @transform_0, window_bounds = array<i64: 8, 128>}, {pipeline_mode = #tpu.pipeline_mode<synchronous>, transform_indices = @transform_1, window_bounds = array<i64: 1, 128>}, {pipeline_mode = #tpu.pipeline_mode<synchronous>, transform_indices = @transform_2, window_bounds = array<i64: 1, 128>}, {transform_indices = @transform_3, window_bounds = array<i64: 8, 128>}]} {
    %c0 = arith.constant 0 : index
    %c0_0 = arith.constant 0 : index
    %0 = vector.load %arg1[%c0, %c0_0] : memref<8x128xf32, #tpu.memory_space<vmem>>, vector<8x128xf32>
    %c0_1 = arith.constant 0 : index
    %c0_2 = arith.constant 0 : index
    %1 = vector.load %arg2[%c0_1, %c0_2] : memref<1x128xf32, #tpu.memory_space<vmem>>, vector<1x128xf32>
    %c0_3 = arith.constant 0 : index
    %c0_4 = arith.constant 0 : index
    %2 = vector.load %arg3[%c0_3, %c0_4] : memref<1x128xf32, #tpu.memory_space<vmem>>, vector<1x128xf32>
    %cst = arith.constant dense<0.000000e+00> : vector<8xf32>
    %3 = vector.multi_reduction <add>, %0, %cst [1] : vector<8x128xf32> to vector<8xf32>
    %4 = vector.shape_cast %3 : vector<8xf32> to vector<8x1xf32>
    %cst_5 = arith.constant 1.280000e+02 : f32
    %5 = vector.broadcast %cst_5 : f32 to vector<8x1xf32>
    %6 = arith.divf %4, %5 : vector<8x1xf32>
    %7 = vector.broadcast %6 : vector<8x1xf32> to vector<8x128xf32>
    %8 = arith.subf %0, %7 : vector<8x128xf32>
    %9 = arith.mulf %8, %8 : vector<8x128xf32>
    %cst_6 = arith.constant dense<0.000000e+00> : vector<8xf32>
    %10 = vector.multi_reduction <add>, %9, %cst_6 [1] : vector<8x128xf32> to vector<8xf32>
    %11 = vector.shape_cast %10 : vector<8xf32> to vector<8x1xf32>
    %cst_7 = arith.constant 1.280000e+02 : f32
    %12 = vector.broadcast %cst_7 : f32 to vector<8x1xf32>
    %13 = arith.divf %11, %12 : vector<8x1xf32>
    %cst_8 = arith.constant 9.99999974E-6 : f32
    %14 = vector.broadcast %cst_8 : f32 to vector<8x1xf32>
    %15 = arith.addf %13, %14 : vector<8x1xf32>
    %16 = math.rsqrt %15 : vector<8x1xf32>
    %17 = vector.broadcast %16 : vector<8x1xf32> to vector<8x128xf32>
    %18 = arith.mulf %8, %17 : vector<8x128xf32>
    %19 = vector.broadcast %1 : vector<1x128xf32> to vector<8x128xf32>
    %20 = arith.mulf %18, %19 : vector<8x128xf32>
    %21 = vector.broadcast %2 : vector<1x128xf32> to vector<8x128xf32>
    %22 = arith.addf %20, %21 : vector<8x128xf32>
    %c0_9 = arith.constant 0 : index
    %c0_10 = arith.constant 0 : index
    %23 = vector.load %arg4[%c0_9, %c0_10] : memref<8x128xf32, #tpu.memory_space<vmem>>, vector<8x128xf32>
    tpu.vector_store %arg4[%c0_9, %c0_10], %22 {strides = array<i32>} : memref<8x128xf32, #tpu.memory_space<vmem>>, vector<8x128xf32>,
    return
  }
  func.func @transform_0(%arg0: i32) -> (i32, i32) {
    %c0_i32 = arith.constant 0 : i32
    %c0_i32_0 = arith.constant 0 : i32
    return %arg0, %c0_i32 : i32, i32
  }
  func.func @transform_1(%arg0: i32) -> (i32, i32) {
    %c0_i32 = arith.constant 0 : i32
    %c0_i32_0 = arith.constant 0 : i32
    %c0_i32_1 = arith.constant 0 : i32
    return %c0_i32, %c0_i32_0 : i32, i32
  }
  func.func @transform_2(%arg0: i32) -> (i32, i32) {
    %c0_i32 = arith.constant 0 : i32
    %c0_i32_0 = arith.constant 0 : i32
    %c0_i32_1 = arith.constant 0 : i32
    return %c0_i32, %c0_i32_0 : i32, i32
  }
  func.func @transform_3(%arg0: i32) -> (i32, i32) {
    %c0_i32 = arith.constant 0 : i32
    %c0_i32_0 = arith.constant 0 : i32
    return %arg0, %c0_i32 : i32, i32
  }
}

module attributes {stable_mosaic.version = 11 : i64} {
  func.func @_lm_head_xent_kernel(%arg0: i32, %arg1: i32, %arg2: i32, %arg3: memref<8x128xf32, #tpu.memory_space<vmem>>, %arg4: memref<256x128xbf16, #tpu.memory_space<vmem>>, %arg5: memref<8x1xi32, #tpu.memory_space<vmem>>, %arg6: memref<8x256xf32, #tpu.memory_space<vmem>>, %arg7: memref<8x1xf32, #tpu.memory_space<vmem>>, %arg8: memref<8x256xf32, #tpu.memory_space<vmem>>, %arg9: memref<8x1xf32, #tpu.memory_space<vmem>>, %arg10: memref<8x1xf32, #tpu.memory_space<vmem>>, %arg11: memref<8x1xf32, #tpu.memory_space<vmem>>) attributes {dimension_semantics = [#tpu.dimension_semantics<parallel>, #tpu.dimension_semantics<arbitrary>, #tpu.dimension_semantics<arbitrary>], iteration_bounds = array<i64: 2, 1, 1>, scalar_prefetch = 0 : i64, scratch_operands = 4 : i64, tpu.core_type = #tpu.core_type<tc>, window_params = [{transform_indices = @transform_0, window_bounds = array<i64: 8, 128>}, {transform_indices = @transform_1, window_bounds = array<i64: 256, 128>}, {transform_indices = @transform_2, window_bounds = array<i64: 8, 1>}, {transform_indices = @transform_3, window_bounds = array<i64: 8, 256>}, {transform_indices = @transform_4, window_bounds = array<i64: 8, 1>}]} {
    %c0_i32 = arith.constant 0 : i32
    %0 = arith.cmpi eq, %arg2, %c0_i32 : i32
    %1 = arith.extui %0 : i1 to i32
    %c0_i32_0 = arith.constant 0 : i32
    %2 = arith.cmpi ne, %1, %c0_i32_0 : i32
    scf.if %2 {
      %cst_10 = arith.constant 0.000000e+00 : f32
      %13 = vector.broadcast %cst_10 : f32 to vector<8x256xf32>
      %c0_11 = arith.constant 0 : index
      %c0_12 = arith.constant 0 : index
      %14 = vector.load %arg8[%c0_11, %c0_12] : memref<8x256xf32, #tpu.memory_space<vmem>>, vector<8x256xf32>
      tpu.vector_store %arg8[%c0_11, %c0_12], %13 {strides = array<i32>} : memref<8x256xf32, #tpu.memory_space<vmem>>, vector<8x256xf32>,
    } else {
    }
    %c0 = arith.constant 0 : index
    %c0_1 = arith.constant 0 : index
    %3 = vector.load %arg8[%c0, %c0_1] : memref<8x256xf32, #tpu.memory_space<vmem>>, vector<8x256xf32>
    %c0_2 = arith.constant 0 : index
    %c0_3 = arith.constant 0 : index
    %4 = vector.load %arg3[%c0_2, %c0_3] : memref<8x128xf32, #tpu.memory_space<vmem>>, vector<8x128xf32>
    %5 = arith.truncf %4 : vector<8x128xf32> to vector<8x128xbf16>
    %c0_4 = arith.constant 0 : index
    %c0_5 = arith.constant 0 : index
    %6 = vector.load %arg4[%c0_4, %c0_5] : memref<256x128xbf16, #tpu.memory_space<vmem>>, vector<256x128xbf16>
    %cst = arith.constant dense<0.000000e+00> : vector<8x256xf32>
    %7 = tpu.matmul %5, %6, %cst {dimension_numbers = #tpu.dot_dimension_numbers<[1], [1], [0], [0], [0, 0, 1, 0], [], []>} : vector<8x128xbf16>, vector<256x128xbf16>, vector<8x256xf32> -> vector<8x256xf32>
    %8 = arith.addf %3, %7 : vector<8x256xf32>
    %c0_6 = arith.constant 0 : index
    %c0_7 = arith.constant 0 : index
    %9 = vector.load %arg8[%c0_6, %c0_7] : memref<8x256xf32, #tpu.memory_space<vmem>>, vector<8x256xf32>
    tpu.vector_store %arg8[%c0_6, %c0_7], %8 {strides = array<i32>} : memref<8x256xf32, #tpu.memory_space<vmem>>, vector<8x256xf32>,
    %c0_i32_8 = arith.constant 0 : i32
    %10 = arith.cmpi eq, %arg2, %c0_i32_8 : i32
    %11 = arith.extui %10 : i1 to i32
    %c0_i32_9 = arith.constant 0 : i32
    %12 = arith.cmpi ne, %11, %c0_i32_9 : i32
    scf.if %12 {
      %c0_10 = arith.constant 0 : index
      %c0_11 = arith.constant 0 : index
      %13 = vector.load %arg8[%c0_10, %c0_11] : memref<8x256xf32, #tpu.memory_space<vmem>>, vector<8x256xf32>
      %c0_12 = arith.constant 0 : index
      %c0_13 = arith.constant 0 : index
      %14 = vector.load %arg6[%c0_12, %c0_13] : memref<8x256xf32, #tpu.memory_space<vmem>>, vector<8x256xf32>
      tpu.vector_store %arg6[%c0_12, %c0_13], %13 {strides = array<i32>} : memref<8x256xf32, #tpu.memory_space<vmem>>, vector<8x256xf32>,
      %c0_i32_14 = arith.constant 0 : i32
      %15 = arith.cmpi eq, %arg1, %c0_i32_14 : i32
      %16 = arith.extui %15 : i1 to i32
      %c0_i32_15 = arith.constant 0 : i32
      %17 = arith.cmpi ne, %16, %c0_i32_15 : i32
      scf.if %17 {
        %cst_36 = arith.constant -1.000000e+30 : f32
        %51 = vector.broadcast %cst_36 : f32 to vector<8x1xf32>
        %c0_37 = arith.constant 0 : index
        %c0_38 = arith.constant 0 : index
        %52 = vector.load %arg9[%c0_37, %c0_38] : memref<8x1xf32, #tpu.memory_space<vmem>>, vector<8x1xf32>
        tpu.vector_store %arg9[%c0_37, %c0_38], %51 {strides = array<i32>} : memref<8x1xf32, #tpu.memory_space<vmem>>, vector<8x1xf32>,
        %cst_39 = arith.constant 0.000000e+00 : f32
        %53 = vector.broadcast %cst_39 : f32 to vector<8x1xf32>
        %c0_40 = arith.constant 0 : index
        %c0_41 = arith.constant 0 : index
        %54 = vector.load %arg10[%c0_40, %c0_41] : memref<8x1xf32, #tpu.memory_space<vmem>>, vector<8x1xf32>
        tpu.vector_store %arg10[%c0_40, %c0_41], %53 {strides = array<i32>} : memref<8x1xf32, #tpu.memory_space<vmem>>, vector<8x1xf32>,
        %cst_42 = arith.constant 0.000000e+00 : f32
        %55 = vector.broadcast %cst_42 : f32 to vector<8x1xf32>
        %c0_43 = arith.constant 0 : index
        %c0_44 = arith.constant 0 : index
        %56 = vector.load %arg11[%c0_43, %c0_44] : memref<8x1xf32, #tpu.memory_space<vmem>>, vector<8x1xf32>
        tpu.vector_store %arg11[%c0_43, %c0_44], %55 {strides = array<i32>} : memref<8x1xf32, #tpu.memory_space<vmem>>, vector<8x1xf32>,
      } else {
      }
      %c0_16 = arith.constant 0 : index
      %c0_17 = arith.constant 0 : index
      %18 = vector.load %arg9[%c0_16, %c0_17] : memref<8x1xf32, #tpu.memory_space<vmem>>, vector<8x1xf32>
      %cst_18 = arith.constant dense<0xFF800000> : vector<8xf32>
      %19 = vector.multi_reduction <maximumf>, %13, %cst_18 [1] : vector<8x256xf32> to vector<8xf32>
      %20 = vector.shape_cast %19 : vector<8xf32> to vector<8x1xf32>
      %21 = arith.maximumf %18, %20 : vector<8x1xf32>
      %c0_19 = arith.constant 0 : index
      %c0_20 = arith.constant 0 : index
      %22 = vector.load %arg10[%c0_19, %c0_20] : memref<8x1xf32, #tpu.memory_space<vmem>>, vector<8x1xf32>
      %23 = arith.subf %18, %21 : vector<8x1xf32>
      %24 = math.exp %23 : vector<8x1xf32>
      %25 = arith.mulf %22, %24 : vector<8x1xf32>
      %26 = vector.broadcast %21 : vector<8x1xf32> to vector<8x256xf32>
      %27 = arith.subf %13, %26 : vector<8x256xf32>
      %28 = math.exp %27 : vector<8x256xf32>
      %cst_21 = arith.constant dense<0.000000e+00> : vector<8xf32>
      %29 = vector.multi_reduction <add>, %28, %cst_21 [1] : vector<8x256xf32> to vector<8xf32>
      %30 = vector.shape_cast %29 : vector<8xf32> to vector<8x1xf32>
      %31 = arith.addf %25, %30 : vector<8x1xf32>
      %c0_22 = arith.constant 0 : index
      %c0_23 = arith.constant 0 : index
      %32 = vector.load %arg10[%c0_22, %c0_23] : memref<8x1xf32, #tpu.memory_space<vmem>>, vector<8x1xf32>
      tpu.vector_store %arg10[%c0_22, %c0_23], %31 {strides = array<i32>} : memref<8x1xf32, #tpu.memory_space<vmem>>, vector<8x1xf32>,
      %c0_24 = arith.constant 0 : index
      %c0_25 = arith.constant 0 : index
      %33 = vector.load %arg9[%c0_24, %c0_25] : memref<8x1xf32, #tpu.memory_space<vmem>>, vector<8x1xf32>
      tpu.vector_store %arg9[%c0_24, %c0_25], %21 {strides = array<i32>} : memref<8x1xf32, #tpu.memory_space<vmem>>, vector<8x1xf32>,
      %34 = tpu.iota {dimensions = array<i32: 1>} : vector<8x256xi32>
      %c256_i32 = arith.constant 256 : i32
      %35 = arith.muli %arg1, %c256_i32 : i32
      %36 = vector.broadcast %35 : i32 to vector<8x256xi32>
      %37 = arith.addi %34, %36 : vector<8x256xi32>
      %c0_26 = arith.constant 0 : index
      %c0_27 = arith.constant 0 : index
      %38 = vector.load %arg11[%c0_26, %c0_27] : memref<8x1xf32, #tpu.memory_space<vmem>>, vector<8x1xf32>
      %c0_28 = arith.constant 0 : index
      %c0_29 = arith.constant 0 : index
      %39 = vector.load %arg5[%c0_28, %c0_29] : memref<8x1xi32, #tpu.memory_space<vmem>>, vector<8x1xi32>
      %40 = vector.broadcast %39 : vector<8x1xi32> to vector<8x256xi32>
      %41 = arith.cmpi eq, %37, %40 : vector<8x256xi32>
      %cst_30 = arith.constant 0.000000e+00 : f32
      %42 = vector.broadcast %cst_30 : f32 to vector<8x256xf32>
      %43 = arith.select %41, %13, %42 : vector<8x256xi1>, vector<8x256xf32>
      %cst_31 = arith.constant dense<0.000000e+00> : vector<8xf32>
      %44 = vector.multi_reduction <add>, %43, %cst_31 [1] : vector<8x256xf32> to vector<8xf32>
      %45 = vector.shape_cast %44 : vector<8xf32> to vector<8x1xf32>
      %46 = arith.addf %38, %45 : vector<8x1xf32>
      %c0_32 = arith.constant 0 : index
      %c0_33 = arith.constant 0 : index
      %47 = vector.load %arg11[%c0_32, %c0_33] : memref<8x1xf32, #tpu.memory_space<vmem>>, vector<8x1xf32>
      tpu.vector_store %arg11[%c0_32, %c0_33], %46 {strides = array<i32>} : memref<8x1xf32, #tpu.memory_space<vmem>>, vector<8x1xf32>,
      %c0_i32_34 = arith.constant 0 : i32
      %48 = arith.cmpi eq, %arg1, %c0_i32_34 : i32
      %49 = arith.extui %48 : i1 to i32
      %c0_i32_35 = arith.constant 0 : i32
      %50 = arith.cmpi ne, %49, %c0_i32_35 : i32
      scf.if %50 {
        %c0_36 = arith.constant 0 : index
        %c0_37 = arith.constant 0 : index
        %51 = vector.load %arg5[%c0_36, %c0_37] : memref<8x1xi32, #tpu.memory_space<vmem>>, vector<8x1xi32>
        %c0_i32_38 = arith.constant 0 : i32
        %52 = vector.broadcast %c0_i32_38 : i32 to vector<8x1xi32>
        %53 = arith.cmpi sge, %51, %52 : vector<8x1xi32>
        %54 = arith.extui %53 : vector<8x1xi1> to vector<8x1xi32>
        %55 = arith.sitofp %54 : vector<8x1xi32> to vector<8x1xf32>
        %c0_39 = arith.constant 0 : index
        %c0_40 = arith.constant 0 : index
        %56 = vector.load %arg9[%c0_39, %c0_40] : memref<8x1xf32, #tpu.memory_space<vmem>>, vector<8x1xf32>
        %c0_41 = arith.constant 0 : index
        %c0_42 = arith.constant 0 : index
        %57 = vector.load %arg10[%c0_41, %c0_42] : memref<8x1xf32, #tpu.memory_space<vmem>>, vector<8x1xf32>
        %58 = math.log %57 : vector<8x1xf32>
        %59 = arith.addf %56, %58 : vector<8x1xf32>
        %c0_43 = arith.constant 0 : index
        %c0_44 = arith.constant 0 : index
        %60 = vector.load %arg11[%c0_43, %c0_44] : memref<8x1xf32, #tpu.memory_space<vmem>>, vector<8x1xf32>
        %61 = arith.subf %59, %60 : vector<8x1xf32>
        %62 = arith.mulf %55, %61 : vector<8x1xf32>
        %c0_45 = arith.constant 0 : index
        %c0_46 = arith.constant 0 : index
        %63 = vector.load %arg7[%c0_45, %c0_46] : memref<8x1xf32, #tpu.memory_space<vmem>>, vector<8x1xf32>
        tpu.vector_store %arg7[%c0_45, %c0_46], %62 {strides = array<i32>} : memref<8x1xf32, #tpu.memory_space<vmem>>, vector<8x1xf32>,
      } else {
      }
    } else {
    }
    return
  }
  func.func @transform_0(%arg0: i32, %arg1: i32, %arg2: i32) -> (i32, i32) {
    %c0_i32 = arith.constant 0 : i32
    return %arg0, %arg2 : i32, i32
  }
  func.func @transform_1(%arg0: i32, %arg1: i32, %arg2: i32) -> (i32, i32) {
    %c0_i32 = arith.constant 0 : i32
    return %arg1, %arg2 : i32, i32
  }
  func.func @transform_2(%arg0: i32, %arg1: i32, %arg2: i32) -> (i32, i32) {
    %c0_i32 = arith.constant 0 : i32
    %c0_i32_0 = arith.constant 0 : i32
    return %arg0, %c0_i32 : i32, i32
  }
  func.func @transform_3(%arg0: i32, %arg1: i32, %arg2: i32) -> (i32, i32) {
    %c0_i32 = arith.constant 0 : i32
    return %arg0, %arg1 : i32, i32
  }
  func.func @transform_4(%arg0: i32, %arg1: i32, %arg2: i32) -> (i32, i32) {
    %c0_i32 = arith.constant 0 : i32
    %c0_i32_0 = arith.constant 0 : i32
    return %arg0, %c0_i32 : i32, i32
  }
}

</mosaic_0001>

<llo_original>
// kernel: gpt_neo_forward.9
$region0: #{gpt_neo_forward.9}
  #allocation0 [shape = 'u32[]', space=smem, size = 0x4, offset = 0x4, fixed_abs, tag = 'smem constant byte address 0x4 - core index']
  #allocation1 [shape = 'u32[144,128]{1,0:T(1,128)}', space=vmem, size = 0x12000, scoped, tag = 'internal scratch']
  %s0 = inlined_call_operand.vmem [shape: bf16[2,8,384], index: 0, kind: input, shape index: {}, may-alias: {0,1,2}]
  %s1 = inlined_call_operand.vmem [shape: bf16[2,8,384], index: 1, kind: input, shape index: {}, may-alias: {0,1,2}]
  %s2 = inlined_call_operand.vmem [shape: bf16[2,8,384], index: 2, kind: input, shape index: {}, may-alias: {0,1,2}]
  %s3 = inlined_call_operand.vmem [shape: bf16[2,8,128], index: 3, kind: output, shape index: {}]
  %s4 = sld [smem:[#allocation0]]
  $region45: #{gpt_neo_forward.9} parent=0
    _
  %s6 = ssub.s32 1, %s4
  %s7 = scalar_select 0, %s6, %s4
  loop: start=0, step=1, limit=4
  $region2: #{gpt_neo_forward.9} parent=0 // loop_pre_header
    _
  $region3: #{gpt_neo_forward.9} parent=0 // loop_header
    %s9 = sphi 0, %s13
    %p10 = scmp.ge.s32.totalorder %s9, 4
    %s19 = sphi 0, %s21
    %s22 = sphi 0, %s19
    %s23 = sphi 0, %s22
    %s39 = sphi 0, %s23
    %s45 = sphi 0, %s47
    %s48 = sphi 0, %s45
    %s49 = sphi 0, %s48
    %s65 = sphi 0, %s49
    %s71 = sphi 0, %s73
    %s74 = sphi 0, %s71
    %s75 = sphi 0, %s74
    %s91 = sphi 0, %s75
    %s97 = sphi 0, %s99
    %s100 = sphi 0, %s97
    %s101 = sphi 0, %s100
    %s117 = sphi 0, %s101
  $region4: #{gpt_neo_forward.9} parent=0 // loop_header_branch
    %12 = sbr.rel (%p10) target = $region8
  $region5: #{gpt_neo_forward.9} parent=0 // loop_body
    %s14 = ssub.s32 %s9, 1
    %s15 = ssub.s32 %s9, 2
    %s16 = sadd.s32 %s9, 1
    %s17 = ssub.s32 %s9, %s16
    %p18 = scmp.eq.s32.totalorder %s17, 0
    %s20 = sadd.s32 %s19, 1
    %s21 = scalar_select %p18, %s19, %s20
    %p24 = pneg %p18
    %p25 = scmp.eq.s32.totalorder %s9, 1
    %p26 = por %p24, %p25
    %p27 = scmp.ne.s32.totalorder %s19, %s22
    %p28 = scmp.eq.s32.totalorder %s9, 0
    %p29 = por %p27, %p28
    %p30 = scmp.ne.s32.totalorder %s19, %s22
    %p31 = scmp.eq.s32.totalorder %s14, 1
    %p32 = por %p30, %p31
    %p33 = scmp.ne.s32.totalorder %s22, %s23
    %p34 = scmp.eq.s32.totalorder %s14, 0
    %p35 = por %p33, %p34
    %p36 = scmp.ne.s32.totalorder %s22, %s23
    %p37 = scmp.eq.s32.totalorder %s15, 1
    %p38 = por %p36, %p37
    %p40 = scmp.ne.s32.totalorder %s23, %s39
    %p41 = scmp.eq.s32.totalorder %s15, 0
    %p42 = por %p40, %p41
    %s43 = ssub.s32 %s9, %s16
    %p44 = scmp.eq.s32.totalorder %s43, 0
    %s46 = sadd.s32 %s45, 1
    %s47 = scalar_select %p44, %s45, %s46
    %p50 = pneg %p44
    %p51 = scmp.eq.s32.totalorder %s9, 1
    %p52 = por %p50, %p51
    %p53 = scmp.ne.s32.totalorder %s45, %s48
    %p54 = scmp.eq.s32.totalorder %s9, 0
    %p55 = por %p53, %p54
    %p56 = scmp.ne.s32.totalorder %s45, %s48
    %p57 = scmp.eq.s32.totalorder %s14, 1
    %p58 = por %p56, %p57
    %p59 = scmp.ne.s32.totalorder %s48, %s49
    %p60 = scmp.eq.s32.totalorder %s14, 0
    %p61 = por %p59, %p60
    %p62 = scmp.ne.s32.totalorder %s48, %s49
    %p63 = scmp.eq.s32.totalorder %s15, 1
    %p64 = por %p62, %p63
    %p66 = scmp.ne.s32.totalorder %s49, %s65
    %p67 = scmp.eq.s32.totalorder %s15, 0
    %p68 = por %p66, %p67
    %s69 = ssub.s32 %s9, %s16
    %p70 = scmp.eq.s32.totalorder %s69, 0
    %s72 = sadd.s32 %s71, 1
    %s73 = scalar_select %p70, %s71, %s72
    %p76 = pneg %p70
    %p77 = scmp.eq.s32.totalorder %s9, 1
    %p78 = por %p76, %p77
    %p79 = scmp.ne.s32.totalorder %s71, %s74
    %p80 = scmp.eq.s32.totalorder %s9, 0
    %p81 = por %p79, %p80
    %p82 = scmp.ne.s32.totalorder %s71, %s74
    %p83 = scmp.eq.s32.totalorder %s14, 1
    %p84 = por %p82, %p83
    %p85 = scmp.ne.s32.totalorder %s74, %s75
    %p86 = scmp.eq.s32.totalorder %s14, 0
    %p87 = por %p85, %p86
    %p88 = scmp.ne.s32.totalorder %s74, %s75
    %p89 = scmp.eq.s32.totalorder %s15, 1
    %p90 = por %p88, %p89
    %p92 = scmp.ne.s32.totalorder %s75, %s91
    %p93 = scmp.eq.s32.totalorder %s15, 0
    %p94 = por %p92, %p93
    %s95 = ssub.s32 %s9, %s16
    %p96 = scmp.eq.s32.totalorder %s95, 0
    %s98 = sadd.s32 %s97, 1
    %s99 = scalar_select %p96, %s97, %s98
    %p102 = pneg %p96
    %p103 = scmp.eq.s32.totalorder %s9, 1
    %p104 = por %p102, %p103
    %p105 = scmp.ne.s32.totalorder %s97, %s100
    %p106 = scmp.eq.s32.totalorder %s9, 0
    %p107 = por %p105, %p106
    %p108 = scmp.ne.s32.totalorder %s97, %s100
    %p109 = scmp.eq.s32.totalorder %s14, 1
    %p110 = por %p108, %p109
    %p111 = scmp.ne.s32.totalorder %s100, %s101
    %p112 = scmp.eq.s32.totalorder %s14, 0
    %p113 = por %p111, %p112
    %p114 = scmp.ne.s32.totalorder %s100, %s101
    %p115 = scmp.eq.s32.totalorder %s15, 1
    %p116 = por %p114, %p115
    %p118 = scmp.ne.s32.totalorder %s101, %s117
    %p119 = scmp.eq.s32.totalorder %s15, 0
    %p120 = por %p118, %p119
    %p121 = scmp.le.s32.totalorder 1, %s9
    %p122 = scmp.lt.s32.totalorder %s9, 3
    %p123 = pnand %p121, %p122
    %p124 = pneg %p123
    // Predicated region
    $region9: #{gpt_neo_forward.9} parent=5 // pred_check
      _
    $region10: #{gpt_neo_forward.9} parent=5 // pred_check_branch
      %126 = sbr.rel (%p123) target = $region12
    $region11: #{gpt_neo_forward.9} parent=5 // pred_region
      %s127 = ssub.s32 %s9, 1
    $region12: #{gpt_neo_forward.9} parent=5 // pred_fallthru
      _
    %p128 = scmp.lt.s32.totalorder %s9, 2
    // Predicated region
    $region13: #{gpt_neo_forward.9} parent=5 // pred_check
      %p129 = pneg %p128
    $region14: #{gpt_neo_forward.9} parent=5 // pred_check_branch
      %131 = sbr.rel (%p129) target = $region16
    $region15: #{gpt_neo_forward.9} parent=5 // pred_region
      // Predicated region
      $region17: #{gpt_neo_forward.9} parent=15 // pred_check
        %p132 = pneg %p29
      $region18: #{gpt_neo_forward.9} parent=15 // pred_check_branch
        %134 = sbr.rel (%p132) target = $region20
      $region19: #{gpt_neo_forward.9} parent=15 // pred_region
        %p135 = scmp.lt.s32.totalorder %s9, 1
        %s136 = scalar_select %p135, %s9, 1
        %s137 = smul.addr %s136, 3
        %s138 = smul.addr %s137, 4
        %s139 = scalar_lea.vmem %s0, %s138
      $region20: #{gpt_neo_forward.9} parent=15 // pred_fallthru
        _
      // Predicated region
      $region21: #{gpt_neo_forward.9} parent=15 // pred_check
        %p140 = pneg %p55
      $region22: #{gpt_neo_forward.9} parent=15 // pred_check_branch
        %142 = sbr.rel (%p140) target = $region24
      $region23: #{gpt_neo_forward.9} parent=15 // pred_region
        %p143 = scmp.lt.s32.totalorder %s9, 1
        %s144 = scalar_select %p143, %s9, 1
        %s145 = smul.addr %s144, 3
        %s146 = sadd.s32 1, %s145
        %s147 = smul.addr %s146, 4
        %s148 = scalar_lea.vmem %s1, %s147
      $region24: #{gpt_neo_forward.9} parent=15 // pred_fallthru
        _
      // Predicated region
      $region25: #{gpt_neo_forward.9} parent=15 // pred_check
        %p149 = pneg %p81
      $region26: #{gpt_neo_forward.9} parent=15 // pred_check_branch
        %151 = sbr.rel (%p149) target = $region28
      $region27: #{gpt_neo_forward.9} parent=15 // pred_region
        %p152 = scmp.lt.s32.totalorder %s9, 1
        %s153 = scalar_select %p152, %s9, 1
        %s154 = smul.addr %s153, 3
        %s155 = sadd.s32 2, %s154
        %s156 = smul.addr %s155, 4
        %s157 = scalar_lea.vmem %s2, %s156
      $region28: #{gpt_neo_forward.9} parent=15 // pred_fallthru
        _
    $region16: #{gpt_neo_forward.9} parent=5 // pred_fallthru
      _
    %p158 = scmp.le.s32.totalorder 1, %s9
    %p159 = scmp.lt.s32.totalorder %s9, 3
    %p160 = pnand %p158, %p159
    %p161 = pneg %p160
    // Predicated region
    $region29: #{gpt_neo_forward.9} parent=5 // pred_check
      _
    $region30: #{gpt_neo_forward.9} parent=5 // pred_check_branch
      %163 = sbr.rel (%p160) target = $region32
    $region31: #{gpt_neo_forward.9} parent=5 // pred_region
      %s164 = ssub.s32 %s9, 1
      %p165 = scmp.lt.s32.totalorder %s14, 1
      %s166 = scalar_select %p165, %s14, 1
      %s167 = smul.addr %s166, 3
      %s168 = smul.addr %s167, 4
      %s169 = scalar_lea.vmem %s0, %s168
      %p170 = pneg %p35
      %p171 = pneg %p32
      %p172 = scmp.lt.s32.totalorder %s14, 1
      %s173 = scalar_select %p172, %s14, 1
      %s174 = smul.addr %s173, 3
      %s175 = sadd.s32 1, %s174
      %s176 = smul.addr %s175, 4
      %s177 = scalar_lea.vmem %s1, %s176
      %p178 = pneg %p61
      %p179 = pneg %p58
      %p180 = scmp.lt.s32.totalorder %s14, 1
      %s181 = scalar_select %p180, %s14, 1
      %s182 = smul.addr %s181, 3
      %s183 = sadd.s32 2, %s182
      %s184 = smul.addr %s183, 4
      %s185 = scalar_lea.vmem %s2, %s184
      %p186 = pneg %p87
      %p187 = pneg %p84
      %p188 = pneg %p113
      %p189 = pneg %p110
      %p190 = scmp.lt.s32.totalorder %s14, 1
      %s191 = scalar_select %p190, %s14, 1
      %s192 = smul.addr %s191, 4
      %s193 = scalar_lea.vmem %s3, %s192
      %p194 = scmp.lt.s32.totalorder %s14, 1
      %s195 = scalar_select %p194, %s14, 1
      %s196 = smul.addr %s195, 3
      %s197 = smul.addr %s196, 4
      %s198 = scalar_lea.vmem %s0, %s197
      %p199 = scmp.lt.s32.totalorder %s14, 1
      %s200 = scalar_select %p199, %s14, 1
      %s201 = smul.addr %s200, 3
      %s202 = sadd.s32 1, %s201
      %s203 = smul.addr %s202, 4
      %s204 = scalar_lea.vmem %s1, %s203
      %p205 = scmp.lt.s32.totalorder %s14, 1
      %s206 = scalar_select %p205, %s14, 1
      %s207 = smul.addr %s206, 3
      %s208 = sadd.s32 2, %s207
      %s209 = smul.addr %s208, 4
      %s210 = scalar_lea.vmem %s2, %s209
      %p211 = scmp.lt.s32.totalorder %s14, 1
      %s212 = scalar_select %p211, %s14, 1
      %s213 = smul.addr %s212, 4
      %s214 = scalar_lea.vmem %s3, %s213
      %v216 = vld [vmem:[%s198] sm:$0xf]
      %v217 = vld [vmem:[%s204] sm:$0xf]
      %v218 = vld [vmem:[%s210] sm:$0xf]
      %v219 = vlaneseq
      %v220 = vshrl.u32 %v219, 7
      %v221 = vlaneseq
      %v222 = vand.u32 %v221, 127
      %vm223 = vcmp.le.s32.totalorder %v222, %v220
      %vm224 = vcmask 261120
      %v226 = vsel %vm224, %v216, 0
      %v229 = vsel %vm224, %v217, 0
      %231 = vmatprep.subr.bf16.mxu0 0
      %232 = vmatpush1.bf16.xpose.msra.mxu0 %v229
      %233 = vmatprep.subr.bf16.mxu0 0
      %234 = vmatpush1.bf16.xpose.msra.mxu0 0
      %235 = vmatprep.subr.bf16.mxu0 0
      %236 = vmatpush1.bf16.xpose.msra.mxu0 0
      %237 = vmatprep.subr.bf16.mxu0 0
      %238 = vmatpush1.bf16.xpose.msra.mxu0 0
      %239 = vmatprep.subr.bf16.mxu0 0
      %240 = vmatpush1.bf16.xpose.msra.mxu0 0
      %241 = vmatprep.subr.bf16.mxu0 0
      %242 = vmatpush1.bf16.xpose.msra.mxu0 0
      %243 = vmatprep.subr.bf16.mxu0 0
      %244 = vmatpush1.bf16.xpose.msra.mxu0 0
      %245 = vmatprep.subr.bf16.mxu0 0
      %246 = vmatpush1.bf16.xpose.msra.mxu0 0
      %247 = vmatprep.subr.bf16.mxu0 0
      %248 = vmatpush1.bf16.xpose.msra.mxu0 0
      %249 = vmatprep.subr.bf16.mxu0 0
      %250 = vmatpush1.bf16.xpose.msra.mxu0 0
      %251 = vmatprep.subr.bf16.mxu0 0
      %252 = vmatpush1.bf16.xpose.msra.mxu0 0
      %253 = vmatprep.subr.bf16.mxu0 0
      %254 = vmatpush1.bf16.xpose.msra.mxu0 0
      %255 = vmatprep.subr.bf16.mxu0 0
      %256 = vmatpush1.bf16.xpose.msra.mxu0 0
      %257 = vmatprep.subr.bf16.mxu0 0
      %258 = vmatpush1.bf16.xpose.msra.mxu0 0
      %259 = vmatprep.subr.bf16.mxu0 0
      %260 = vmatpush1.bf16.xpose.msra.mxu0 0
      %261 = vmatprep.subr.bf16.mxu0 0
      %262 = vmatpush1.bf16.xpose.msra.mxu0 0
      %263 = vmatprep.mubr.bf16.mxu0 0
      %264 = vmatmul.mubr.bf16.gmra.mrb[0].mxu0 %v226
      %v265 = vpop.f32.mrb[0].mxu0
      %v266 = vadd.f32 0.0, %v265
      %v267 = vpop.f32.mrb[0].mxu0
      %v268 = vpop.f32.mrb[0].mxu0
      %v269 = vpop.f32.mrb[0].mxu0
      %270 = vdwg.mxu0
      %v271 = vsel %vm223, %v266, -1e+30
      %vm272 = vcmask 64512
      %v273 = vsel %vm272, %v271, -inf
      %274 = vmax.xlane.f32.xlu0 %v273
      %v275 = vpop.xlane.xlu0 %274
      %v276 = vsub.f32 %v271, %v275
      %v277 = vmul.f32 %v276, 1.442695
      %v278 = vpow.pop %v277
      %v279 = vsel %vm272, %v278, 0.0
      %280 = vadd.xlane.f32.xlu0 %v279
      %v281 = vpop.xlane.xlu0 %280
      %v282 = vrcp.pop %v281
      %v283 = vmul.f32 %v278, %v282
      %v284 = vpack.c.bf16 %v283, %v283
      %v286 = vsel %vm272, %v284, 0
      %vm288 = vcmask 1043456
      %v290 = vsel %vm288, %v218, 0
      %292 = vmatprep.subr.bf16.mxu0 0
      %293 = vmatpush1.bf16.msra.mxu0 %v290
      %294 = vmatprep.subr.bf16.mxu0 0
      %295 = vmatpush1.bf16.msra.mxu0 0
      %296 = vmatprep.subr.bf16.mxu0 0
      %297 = vmatpush1.bf16.msra.mxu0 0
      %298 = vmatprep.subr.bf16.mxu0 0
      %299 = vmatpush1.bf16.msra.mxu0 0
      %300 = vmatprep.subr.bf16.mxu0 0
      %301 = vmatpush1.bf16.msra.mxu0 0
      %302 = vmatprep.subr.bf16.mxu0 0
      %303 = vmatpush1.bf16.msra.mxu0 0
      %304 = vmatprep.subr.bf16.mxu0 0
      %305 = vmatpush1.bf16.msra.mxu0 0
      %306 = vmatprep.subr.bf16.mxu0 0
      %307 = vmatpush1.bf16.msra.mxu0 0
      %308 = vmatprep.subr.bf16.mxu0 0
      %309 = vmatpush1.bf16.msra.mxu0 0
      %310 = vmatprep.subr.bf16.mxu0 0
      %311 = vmatpush1.bf16.msra.mxu0 0
      %312 = vmatprep.subr.bf16.mxu0 0
      %313 = vmatpush1.bf16.msra.mxu0 0
      %314 = vmatprep.subr.bf16.mxu0 0
      %315 = vmatpush1.bf16.msra.mxu0 0
      %316 = vmatprep.subr.bf16.mxu0 0
      %317 = vmatpush1.bf16.msra.mxu0 0
      %318 = vmatprep.subr.bf16.mxu0 0
      %319 = vmatpush1.bf16.msra.mxu0 0
      %320 = vmatprep.subr.bf16.mxu0 0
      %321 = vmatpush1.bf16.msra.mxu0 0
      %322 = vmatprep.subr.bf16.mxu0 0
      %323 = vmatpush1.bf16.msra.mxu0 0
      %324 = vmatprep.mubr.bf16.mxu0 0
      %325 = vmatmul.mubr.bf16.gmra.mrb[0].mxu0 %v286
      %v326 = vpop.f32.mrb[0].mxu0
      %v327 = vadd.f32 0.0, %v326
      %v328 = vpop.f32.mrb[0].mxu0
      %v329 = vpop.f32.mrb[0].mxu0
      %v330 = vpop.f32.mrb[0].mxu0
      %331 = vdwg.mxu0
      %v333 = vunpack.c.l.b16 %v216
      %v334 = vpack.c.b16 %v333, %v333
      %335 = vrot.lane.b32.xlu0 %v334, 96
      %v336 = vpop.permute.xlu0 %335
      %v338 = vunpack.c.l.b16 %v217
      %v339 = vpack.c.b16 %v338, %v338
      %340 = vrot.lane.b32.xlu0 %v339, 96
      %v341 = vpop.permute.xlu0 %340
      %v343 = vsel %vm224, %v336, 0
      %v346 = vsel %vm224, %v341, 0
      %348 = vmatprep.subr.bf16.mxu0 0
      %349 = vmatpush1.bf16.xpose.msra.mxu0 %v346
      %350 = vmatprep.subr.bf16.mxu0 0
      %351 = vmatpush1.bf16.xpose.msra.mxu0 0
      %352 = vmatprep.subr.bf16.mxu0 0
      %353 = vmatpush1.bf16.xpose.msra.mxu0 0
      %354 = vmatprep.subr.bf16.mxu0 0
      %355 = vmatpush1.bf16.xpose.msra.mxu0 0
      %356 = vmatprep.subr.bf16.mxu0 0
      %357 = vmatpush1.bf16.xpose.msra.mxu0 0
      %358 = vmatprep.subr.bf16.mxu0 0
      %359 = vmatpush1.bf16.xpose.msra.mxu0 0
      %360 = vmatprep.subr.bf16.mxu0 0
      %361 = vmatpush1.bf16.xpose.msra.mxu0 0
      %362 = vmatprep.subr.bf16.mxu0 0
      %363 = vmatpush1.bf16.xpose.msra.mxu0 0
      %364 = vmatprep.subr.bf16.mxu0 0
      %365 = vmatpush1.bf16.xpose.msra.mxu0 0
      %366 = vmatprep.subr.bf16.mxu0 0
      %367 = vmatpush1.bf16.xpose.msra.mxu0 0
      %368 = vmatprep.subr.bf16.mxu0 0
      %369 = vmatpush1.bf16.xpose.msra.mxu0 0
      %370 = vmatprep.subr.bf16.mxu0 0
      %371 = vmatpush1.bf16.xpose.msra.mxu0 0
      %372 = vmatprep.subr.bf16.mxu0 0
      %373 = vmatpush1.bf16.xpose.msra.mxu0 0
      %374 = vmatprep.subr.bf16.mxu0 0
      %375 = vmatpush1.bf16.xpose.msra.mxu0 0
      %376 = vmatprep.subr.bf16.mxu0 0
      %377 = vmatpush1.bf16.xpose.msra.mxu0 0
      %378 = vmatprep.subr.bf16.mxu0 0
      %379 = vmatpush1.bf16.xpose.msra.mxu0 0
      %380 = vmatprep.mubr.bf16.mxu0 0
      %381 = vmatmul.mubr.bf16.gmra.mrb[0].mxu0 %v343
      %v382 = vpop.f32.mrb[0].mxu0
      %v383 = vadd.f32 0.0, %v382
      %v384 = vpop.f32.mrb[0].mxu0
      %v385 = vpop.f32.mrb[0].mxu0
      %v386 = vpop.f32.mrb[0].mxu0
      %387 = vdwg.mxu0
      %v388 = vsel %vm223, %v383, -1e+30
      %v389 = vsel %vm272, %v388, -inf
      %390 = vmax.xlane.f32.xlu0 %v389
      %v391 = vpop.xlane.xlu0 %390
      %v392 = vsub.f32 %v388, %v391
      %v393 = vmul.f32 %v392, 1.442695
      %v394 = vpow.pop %v393
      %v395 = vsel %vm272, %v394, 0.0
      %396 = vadd.xlane.f32.xlu0 %v395
      %v397 = vpop.xlane.xlu0 %396
      %v398 = vrcp.pop %v397
      %v399 = vmul.f32 %v394, %v398
      %v400 = vpack.c.bf16 %v399, %v399
      %v402 = vunpack.c.l.b16 %v218
      %v403 = vpack.c.b16 %v402, %v402
      %404 = vrot.lane.b32.xlu0 %v403, 96
      %v405 = vpop.permute.xlu0 %404
      %v407 = vsel %vm272, %v400, 0
      %v410 = vsel %vm288, %v405, 0
      %412 = vmatprep.subr.bf16.mxu0 0
      %413 = vmatpush1.bf16.msra.mxu0 %v410
      %414 = vmatprep.subr.bf16.mxu0 0
      %415 = vmatpush1.bf16.msra.mxu0 0
      %416 = vmatprep.subr.bf16.mxu0 0
      %417 = vmatpush1.bf16.msra.mxu0 0
      %418 = vmatprep.subr.bf16.mxu0 0
      %419 = vmatpush1.bf16.msra.mxu0 0
      %420 = vmatprep.subr.bf16.mxu0 0
      %421 = vmatpush1.bf16.msra.mxu0 0
      %422 = vmatprep.subr.bf16.mxu0 0
      %423 = vmatpush1.bf16.msra.mxu0 0
      %424 = vmatprep.subr.bf16.mxu0 0
      %425 = vmatpush1.bf16.msra.mxu0 0
      %426 = vmatprep.subr.bf16.mxu0 0
      %427 = vmatpush1.bf16.msra.mxu0 0
      %428 = vmatprep.subr.bf16.mxu0 0
      %429 = vmatpush1.bf16.msra.mxu0 0
      %430 = vmatprep.subr.bf16.mxu0 0
      %431 = vmatpush1.bf16.msra.mxu0 0
      %432 = vmatprep.subr.bf16.mxu0 0
      %433 = vmatpush1.bf16.msra.mxu0 0
      %434 = vmatprep.subr.bf16.mxu0 0
      %435 = vmatpush1.bf16.msra.mxu0 0
      %436 = vmatprep.subr.bf16.mxu0 0
      %437 = vmatpush1.bf16.msra.mxu0 0
      %438 = vmatprep.subr.bf16.mxu0 0
      %439 = vmatpush1.bf16.msra.mxu0 0
      %440 = vmatprep.subr.bf16.mxu0 0
      %441 = vmatpush1.bf16.msra.mxu0 0
      %442 = vmatprep.subr.bf16.mxu0 0
      %443 = vmatpush1.bf16.msra.mxu0 0
      %444 = vmatprep.mubr.bf16.mxu0 0
      %445 = vmatmul.mubr.bf16.gmra.mrb[0].mxu0 %v407
      %v446 = vpop.f32.mrb[0].mxu0
      %v447 = vadd.f32 0.0, %v446
      %v448 = vpop.f32.mrb[0].mxu0
      %v449 = vpop.f32.mrb[0].mxu0
      %v450 = vpop.f32.mrb[0].mxu0
      %451 = vdwg.mxu0
      %452 = vrot.lane.b32.xlu0 %v334, 64
      %v453 = vpop.permute.xlu0 %452
      %454 = vrot.lane.b32.xlu0 %v339, 64
      %v455 = vpop.permute.xlu0 %454
      %v457 = vsel %vm224, %v453, 0
      %v460 = vsel %vm224, %v455, 0
      %462 = vmatprep.subr.bf16.mxu0 0
      %463 = vmatpush1.bf16.xpose.msra.mxu0 %v460
      %464 = vmatprep.subr.bf16.mxu0 0
      %465 = vmatpush1.bf16.xpose.msra.mxu0 0
      %466 = vmatprep.subr.bf16.mxu0 0
      %467 = vmatpush1.bf16.xpose.msra.mxu0 0
      %468 = vmatprep.subr.bf16.mxu0 0
      %469 = vmatpush1.bf16.xpose.msra.mxu0 0
      %470 = vmatprep.subr.bf16.mxu0 0
      %471 = vmatpush1.bf16.xpose.msra.mxu0 0
      %472 = vmatprep.subr.bf16.mxu0 0
      %473 = vmatpush1.bf16.xpose.msra.mxu0 0
      %474 = vmatprep.subr.bf16.mxu0 0
      %475 = vmatpush1.bf16.xpose.msra.mxu0 0
      %476 = vmatprep.subr.bf16.mxu0 0
      %477 = vmatpush1.bf16.xpose.msra.mxu0 0
      %478 = vmatprep.subr.bf16.mxu0 0
      %479 = vmatpush1.bf16.xpose.msra.mxu0 0
      %480 = vmatprep.subr.bf16.mxu0 0
      %481 = vmatpush1.bf16.xpose.msra.mxu0 0
      %482 = vmatprep.subr.bf16.mxu0 0
      %483 = vmatpush1.bf16.xpose.msra.mxu0 0
      %484 = vmatprep.subr.bf16.mxu0 0
      %485 = vmatpush1.bf16.xpose.msra.mxu0 0
      %486 = vmatprep.subr.bf16.mxu0 0
      %487 = vmatpush1.bf16.xpose.msra.mxu0 0
      %488 = vmatprep.subr.bf16.mxu0 0
      %489 = vmatpush1.bf16.xpose.msra.mxu0 0
      %490 = vmatprep.subr.bf16.mxu0 0
      %491 = vmatpush1.bf16.xpose.msra.mxu0 0
      %492 = vmatprep.subr.bf16.mxu0 0
      %493 = vmatpush1.bf16.xpose.msra.mxu0 0
      %494 = vmatprep.mubr.bf16.mxu0 0
      %495 = vmatmul.mubr.bf16.gmra.mrb[0].mxu0 %v457
      %v496 = vpop.f32.mrb[0].mxu0
      %v497 = vadd.f32 0.0, %v496
      %v498 = vpop.f32.mrb[0].mxu0
      %v499 = vpop.f32.mrb[0].mxu0
      %v500 = vpop.f32.mrb[0].mxu0
      %501 = vdwg.mxu0
      %v502 = vsel %vm223, %v497, -1e+30
      %v503 = vsel %vm272, %v502, -inf
      %504 = vmax.xlane.f32.xlu0 %v503
      %v505 = vpop.xlane.xlu0 %504
      %v506 = vsub.f32 %v502, %v505
      %v507 = vmul.f32 %v506, 1.442695
      %v508 = vpow.pop %v507
      %v509 = vsel %vm272, %v508, 0.0
      %510 = vadd.xlane.f32.xlu0 %v509
      %v511 = vpop.xlane.xlu0 %510
      %v512 = vrcp.pop %v511
      %v513 = vmul.f32 %v508, %v512
      %v514 = vpack.c.bf16 %v513, %v513
      %515 = vrot.lane.b32.xlu0 %v403, 64
      %v516 = vpop.permute.xlu0 %515
      %v518 = vsel %vm272, %v514, 0
      %v521 = vsel %vm288, %v516, 0
      %523 = vmatprep.subr.bf16.mxu0 0
      %524 = vmatpush1.bf16.msra.mxu0 %v521
      %525 = vmatprep.subr.bf16.mxu0 0
      %526 = vmatpush1.bf16.msra.mxu0 0
      %527 = vmatprep.subr.bf16.mxu0 0
      %528 = vmatpush1.bf16.msra.mxu0 0
      %529 = vmatprep.subr.bf16.mxu0 0
      %530 = vmatpush1.bf16.msra.mxu0 0
      %531 = vmatprep.subr.bf16.mxu0 0
      %532 = vmatpush1.bf16.msra.mxu0 0
      %533 = vmatprep.subr.bf16.mxu0 0
      %534 = vmatpush1.bf16.msra.mxu0 0
      %535 = vmatprep.subr.bf16.mxu0 0
      %536 = vmatpush1.bf16.msra.mxu0 0
      %537 = vmatprep.subr.bf16.mxu0 0
      %538 = vmatpush1.bf16.msra.mxu0 0
      %539 = vmatprep.subr.bf16.mxu0 0
      %540 = vmatpush1.bf16.msra.mxu0 0
      %541 = vmatprep.subr.bf16.mxu0 0
      %542 = vmatpush1.bf16.msra.mxu0 0
      %543 = vmatprep.subr.bf16.mxu0 0
      %544 = vmatpush1.bf16.msra.mxu0 0
      %545 = vmatprep.subr.bf16.mxu0 0
      %546 = vmatpush1.bf16.msra.mxu0 0
      %547 = vmatprep.subr.bf16.mxu0 0
      %548 = vmatpush1.bf16.msra.mxu0 0
      %549 = vmatprep.subr.bf16.mxu0 0
      %550 = vmatpush1.bf16.msra.mxu0 0
      %551 = vmatprep.subr.bf16.mxu0 0
      %552 = vmatpush1.bf16.msra.mxu0 0
      %553 = vmatprep.subr.bf16.mxu0 0
      %554 = vmatpush1.bf16.msra.mxu0 0
      %555 = vmatprep.mubr.bf16.mxu0 0
      %556 = vmatmul.mubr.bf16.gmra.mrb[0].mxu0 %v518
      %v557 = vpop.f32.mrb[0].mxu0
      %v558 = vadd.f32 0.0, %v557
      %v559 = vpop.f32.mrb[0].mxu0
      %v560 = vpop.f32.mrb[0].mxu0
      %v561 = vpop.f32.mrb[0].mxu0
      %562 = vdwg.mxu0
      %563 = vrot.lane.b32.xlu0 %v334, 32
      %v564 = vpop.permute.xlu0 %563
      %565 = vrot.lane.b32.xlu0 %v339, 32
      %v566 = vpop.permute.xlu0 %565
      %v568 = vsel %vm224, %v564, 0
      %v571 = vsel %vm224, %v566, 0
      %573 = vmatprep.subr.bf16.mxu0 0
      %574 = vmatpush1.bf16.xpose.msra.mxu0 %v571
      %575 = vmatprep.subr.bf16.mxu0 0
      %576 = vmatpush1.bf16.xpose.msra.mxu0 0
      %577 = vmatprep.subr.bf16.mxu0 0
      %578 = vmatpush1.bf16.xpose.msra.mxu0 0
      %579 = vmatprep.subr.bf16.mxu0 0
      %580 = vmatpush1.bf16.xpose.msra.mxu0 0
      %581 = vmatprep.subr.bf16.mxu0 0
      %582 = vmatpush1.bf16.xpose.msra.mxu0 0
      %583 = vmatprep.subr.bf16.mxu0 0
      %584 = vmatpush1.bf16.xpose.msra.mxu0 0
      %585 = vmatprep.subr.bf16.mxu0 0
      %586 = vmatpush1.bf16.xpose.msra.mxu0 0
      %587 = vmatprep.subr.bf16.mxu0 0
      %588 = vmatpush1.bf16.xpose.msra.mxu0 0
      %589 = vmatprep.subr.bf16.mxu0 0
      %590 = vmatpush1.bf16.xpose.msra.mxu0 0
      %591 = vmatprep.subr.bf16.mxu0 0
      %592 = vmatpush1.bf16.xpose.msra.mxu0 0
      %593 = vmatprep.subr.bf16.mxu0 0
      %594 = vmatpush1.bf16.xpose.msra.mxu0 0
      %595 = vmatprep.subr.bf16.mxu0 0
      %596 = vmatpush1.bf16.xpose.msra.mxu0 0
      %597 = vmatprep.subr.bf16.mxu0 0
      %598 = vmatpush1.bf16.xpose.msra.mxu0 0
      %599 = vmatprep.subr.bf16.mxu0 0
      %600 = vmatpush1.bf16.xpose.msra.mxu0 0
      %601 = vmatprep.subr.bf16.mxu0 0
      %602 = vmatpush1.bf16.xpose.msra.mxu0 0
      %603 = vmatprep.subr.bf16.mxu0 0
      %604 = vmatpush1.bf16.xpose.msra.mxu0 0
      %605 = vmatprep.mubr.bf16.mxu0 0
      %606 = vmatmul.mubr.bf16.gmra.mrb[0].mxu0 %v568
      %v607 = vpop.f32.mrb[0].mxu0
      %v608 = vadd.f32 0.0, %v607
      %v609 = vpop.f32.mrb[0].mxu0
      %v610 = vpop.f32.mrb[0].mxu0
      %v611 = vpop.f32.mrb[0].mxu0
      %612 = vdwg.mxu0
      %v613 = vsel %vm223, %v608, -1e+30
      %v614 = vsel %vm272, %v613, -inf
      %615 = vmax.xlane.f32.xlu0 %v614
      %v616 = vpop.xlane.xlu0 %615
      %v617 = vsub.f32 %v613, %v616
      %v618 = vmul.f32 %v617, 1.442695
      %v619 = vpow.pop %v618
      %v620 = vsel %vm272, %v619, 0.0
      %621 = vadd.xlane.f32.xlu0 %v620
      %v622 = vpop.xlane.xlu0 %621
      %v623 = vrcp.pop %v622
      %v624 = vmul.f32 %v619, %v623
      %v625 = vpack.c.bf16 %v624, %v624
      %626 = vrot.lane.b32.xlu0 %v403, 32
      %v627 = vpop.permute.xlu0 %626
      %v629 = vsel %vm272, %v625, 0
      %v632 = vsel %vm288, %v627, 0
      %634 = vmatprep.subr.bf16.mxu0 0
      %635 = vmatpush1.bf16.msra.mxu0 %v632
      %636 = vmatprep.subr.bf16.mxu0 0
      %637 = vmatpush1.bf16.msra.mxu0 0
      %638 = vmatprep.subr.bf16.mxu0 0
      %639 = vmatpush1.bf16.msra.mxu0 0
      %640 = vmatprep.subr.bf16.mxu0 0
      %641 = vmatpush1.bf16.msra.mxu0 0
      %642 = vmatprep.subr.bf16.mxu0 0
      %643 = vmatpush1.bf16.msra.mxu0 0
      %644 = vmatprep.subr.bf16.mxu0 0
      %645 = vmatpush1.bf16.msra.mxu0 0
      %646 = vmatprep.subr.bf16.mxu0 0
      %647 = vmatpush1.bf16.msra.mxu0 0
      %648 = vmatprep.subr.bf16.mxu0 0
      %649 = vmatpush1.bf16.msra.mxu0 0
      %650 = vmatprep.subr.bf16.mxu0 0
      %651 = vmatpush1.bf16.msra.mxu0 0
      %652 = vmatprep.subr.bf16.mxu0 0
      %653 = vmatpush1.bf16.msra.mxu0 0
      %654 = vmatprep.subr.bf16.mxu0 0
      %655 = vmatpush1.bf16.msra.mxu0 0
      %656 = vmatprep.subr.bf16.mxu0 0
      %657 = vmatpush1.bf16.msra.mxu0 0
      %658 = vmatprep.subr.bf16.mxu0 0
      %659 = vmatpush1.bf16.msra.mxu0 0
      %660 = vmatprep.subr.bf16.mxu0 0
      %661 = vmatpush1.bf16.msra.mxu0 0
      %662 = vmatprep.subr.bf16.mxu0 0
      %663 = vmatpush1.bf16.msra.mxu0 0
      %664 = vmatprep.subr.bf16.mxu0 0
      %665 = vmatpush1.bf16.msra.mxu0 0
      %666 = vmatprep.mubr.bf16.mxu0 0
      %667 = vmatmul.mubr.bf16.gmra.mrb[0].mxu0 %v629
      %v668 = vpop.f32.mrb[0].mxu0
      %v669 = vadd.f32 0.0, %v668
      %v670 = vpop.f32.mrb[0].mxu0
      %v671 = vpop.f32.mrb[0].mxu0
      %v672 = vpop.f32.mrb[0].mxu0
      %673 = vdwg.mxu0
      %675 = vrot.lane.b32.xlu0 %v447, 32
      %v676 = vpop.permute.xlu0 %675
      %679 = vrot.lane.b32.xlu0 %v558, 64
      %v680 = vpop.permute.xlu0 %679
      %683 = vrot.lane.b32.xlu0 %v669, 96
      %v684 = vpop.permute.xlu0 %683
      %v686 = vsel %vm224, %v327, %v676
      %vm687 = vcmask 523264
      %v688 = vsel %vm687, %v686, %v680
      %vm689 = vcmask 785408
      %v690 = vsel %vm689, %v688, %v684
      %v691 = vpack.c.bf16 %v690, %v690
      %692 = vst [vmem:[%s214] sm:$0xf] %v691
      %p693 = scmp.lt.s32.totalorder %s14, 1
      %s694 = scalar_select %p693, %s14, 1
      %s695 = smul.addr %s694, 4
      %s696 = scalar_lea.vmem %s3, %s695
      // Predicated region
      $region33: #{gpt_neo_forward.9} parent=31 // pred_check
        %p697 = pneg %p110
      $region34: #{gpt_neo_forward.9} parent=31 // pred_check_branch
        %699 = sbr.rel (%p697) target = $region36
      $region35: #{gpt_neo_forward.9} parent=31 // pred_region
        _
      $region36: #{gpt_neo_forward.9} parent=31 // pred_fallthru
        _
    $region32: #{gpt_neo_forward.9} parent=5 // pred_fallthru
      _
    %p700 = scmp.le.s32.totalorder 2, %s9
    // Predicated region
    $region37: #{gpt_neo_forward.9} parent=5 // pred_check
      %p701 = pneg %p700
    $region38: #{gpt_neo_forward.9} parent=5 // pred_check_branch
      %703 = sbr.rel (%p701) target = $region40
    $region39: #{gpt_neo_forward.9} parent=5 // pred_region
      %s704 = ssub.s32 %s9, 2
      // Predicated region
      $region41: #{gpt_neo_forward.9} parent=39 // pred_check
        %p705 = pneg %p116
      $region42: #{gpt_neo_forward.9} parent=39 // pred_check_branch
        %707 = sbr.rel (%p705) target = $region44
      $region43: #{gpt_neo_forward.9} parent=39 // pred_region
        %p708 = scmp.lt.s32.totalorder %s15, 1
        %s709 = scalar_select %p708, %s15, 1
        %s710 = smul.addr %s709, 4
        %s711 = scalar_lea.vmem %s3, %s710
      $region44: #{gpt_neo_forward.9} parent=39 // pred_fallthru
        _
    $region40: #{gpt_neo_forward.9} parent=5 // pred_fallthru
      _
  $region6: #{gpt_neo_forward.9} parent=0 // loop_footer
    %s13 = sadd.s32 1, %s9
  $region7: #{gpt_neo_forward.9} parent=0 // loop_footer_branch
    %8 = sbr.rel target = $region3
  $region8: #{gpt_neo_forward.9} parent=0 // loop_exit
    _

// kernel: gpt_neo_forward.8
$region0: #{gpt_neo_forward.8}
  #allocation0 [shape = 'u32[]', space=smem, size = 0x4, offset = 0x4, fixed_abs, tag = 'smem constant byte address 0x4 - core index']
  #allocation1 [shape = 'u32[144,128]{1,0:T(1,128)}', space=vmem, size = 0x12000, scoped, tag = 'internal scratch']
  %s0 = inlined_call_operand.vmem [shape: f32[16,128], index: 0, kind: input, shape index: {}]
  %s1 = inlined_call_operand.vmem [shape: f32[1,128], index: 1, kind: input, shape index: {}]
  %s2 = inlined_call_operand.vmem [shape: f32[1,128], index: 2, kind: input, shape index: {}]
  %s3 = inlined_call_operand.vmem [shape: bf16[128,384], index: 3, kind: input, shape index: {}]
  %s4 = inlined_call_operand.vmem [shape: bf16[16,384], index: 4, kind: output, shape index: {}]
  %s5 = sld [smem:[#allocation0]]
  $region49: #{gpt_neo_forward.8} parent=0
    _
  %s7 = ssub.s32 1, %s5
  %s8 = scalar_select 0, %s7, %s5
  loop: start=0, step=1, limit=4
  $region2: #{gpt_neo_forward.8} parent=0 // loop_pre_header
    _
  $region3: #{gpt_neo_forward.8} parent=0 // loop_header
    %s10 = sphi 0, %s14
    %p11 = scmp.ge.s32.totalorder %s10, 4
    %s20 = sphi 0, %s22
    %s23 = sphi 0, %s20
    %s24 = sphi 0, %s23
    %s40 = sphi 0, %s24
    %s44 = sphi 0, %s44
    %s46 = sphi 0, %s44
    %s47 = sphi 0, %s46
    %s61 = sphi 0, %s47
    %s65 = sphi 0, %s65
    %s67 = sphi 0, %s65
    %s68 = sphi 0, %s67
    %s82 = sphi 0, %s68
    %s86 = sphi 0, %s86
    %s88 = sphi 0, %s86
    %s89 = sphi 0, %s88
    %s103 = sphi 0, %s89
    %s109 = sphi 0, %s111
    %s112 = sphi 0, %s109
    %s113 = sphi 0, %s112
    %s129 = sphi 0, %s113
  $region4: #{gpt_neo_forward.8} parent=0 // loop_header_branch
    %13 = sbr.rel (%p11) target = $region8
  $region5: #{gpt_neo_forward.8} parent=0 // loop_body
    %s15 = ssub.s32 %s10, 1
    %s16 = ssub.s32 %s10, 2
    %s17 = sadd.s32 %s10, 1
    %s18 = ssub.s32 %s10, %s17
    %p19 = scmp.eq.s32.totalorder %s18, 0
    %s21 = sadd.s32 %s20, 1
    %s22 = scalar_select %p19, %s20, %s21
    %p25 = pneg %p19
    %p26 = scmp.eq.s32.totalorder %s10, 1
    %p27 = por %p25, %p26
    %p28 = scmp.ne.s32.totalorder %s20, %s23
    %p29 = scmp.eq.s32.totalorder %s10, 0
    %p30 = por %p28, %p29
    %p31 = scmp.ne.s32.totalorder %s20, %s23
    %p32 = scmp.eq.s32.totalorder %s15, 1
    %p33 = por %p31, %p32
    %p34 = scmp.ne.s32.totalorder %s23, %s24
    %p35 = scmp.eq.s32.totalorder %s15, 0
    %p36 = por %p34, %p35
    %p37 = scmp.ne.s32.totalorder %s23, %s24
    %p38 = scmp.eq.s32.totalorder %s16, 1
    %p39 = por %p37, %p38
    %p41 = scmp.ne.s32.totalorder %s24, %s40
    %p42 = scmp.eq.s32.totalorder %s16, 0
    %p43 = por %p41, %p42
    %s45 = sadd.s32 %s44, 1
    %p48 = scmp.eq.s32.totalorder %s10, 1
    %p49 = scmp.ne.s32.totalorder %s44, %s46
    %p50 = scmp.eq.s32.totalorder %s10, 0
    %p51 = por %p49, %p50
    %p52 = scmp.ne.s32.totalorder %s44, %s46
    %p53 = scmp.eq.s32.totalorder %s15, 1
    %p54 = por %p52, %p53
    %p55 = scmp.ne.s32.totalorder %s46, %s47
    %p56 = scmp.eq.s32.totalorder %s15, 0
    %p57 = por %p55, %p56
    %p58 = scmp.ne.s32.totalorder %s46, %s47
    %p59 = scmp.eq.s32.totalorder %s16, 1
    %p60 = por %p58, %p59
    %p62 = scmp.ne.s32.totalorder %s47, %s61
    %p63 = scmp.eq.s32.totalorder %s16, 0
    %p64 = por %p62, %p63
    %s66 = sadd.s32 %s65, 1
    %p69 = scmp.eq.s32.totalorder %s10, 1
    %p70 = scmp.ne.s32.totalorder %s65, %s67
    %p71 = scmp.eq.s32.totalorder %s10, 0
    %p72 = por %p70, %p71
    %p73 = scmp.ne.s32.totalorder %s65, %s67
    %p74 = scmp.eq.s32.totalorder %s15, 1
    %p75 = por %p73, %p74
    %p76 = scmp.ne.s32.totalorder %s67, %s68
    %p77 = scmp.eq.s32.totalorder %s15, 0
    %p78 = por %p76, %p77
    %p79 = scmp.ne.s32.totalorder %s67, %s68
    %p80 = scmp.eq.s32.totalorder %s16, 1
    %p81 = por %p79, %p80
    %p83 = scmp.ne.s32.totalorder %s68, %s82
    %p84 = scmp.eq.s32.totalorder %s16, 0
    %p85 = por %p83, %p84
    %s87 = sadd.s32 %s86, 1
    %p90 = scmp.eq.s32.totalorder %s10, 1
    %p91 = scmp.ne.s32.totalorder %s86, %s88
    %p92 = scmp.eq.s32.totalorder %s10, 0
    %p93 = por %p91, %p92
    %p94 = scmp.ne.s32.totalorder %s86, %s88
    %p95 = scmp.eq.s32.totalorder %s15, 1
    %p96 = por %p94, %p95
    %p97 = scmp.ne.s32.totalorder %s88, %s89
    %p98 = scmp.eq.s32.totalorder %s15, 0
    %p99 = por %p97, %p98
    %p100 = scmp.ne.s32.totalorder %s88, %s89
    %p101 = scmp.eq.s32.totalorder %s16, 1
    %p102 = por %p100, %p101
    %p104 = scmp.ne.s32.totalorder %s89, %s103
    %p105 = scmp.eq.s32.totalorder %s16, 0
    %p106 = por %p104, %p105
    %s107 = ssub.s32 %s10, %s17
    %p108 = scmp.eq.s32.totalorder %s107, 0
    %s110 = sadd.s32 %s109, 1
    %s111 = scalar_select %p108, %s109, %s110
    %p114 = pneg %p108
    %p115 = scmp.eq.s32.totalorder %s10, 1
    %p116 = por %p114, %p115
    %p117 = scmp.ne.s32.totalorder %s109, %s112
    %p118 = scmp.eq.s32.totalorder %s10, 0
    %p119 = por %p117, %p118
    %p120 = scmp.ne.s32.totalorder %s109, %s112
    %p121 = scmp.eq.s32.totalorder %s15, 1
    %p122 = por %p120, %p121
    %p123 = scmp.ne.s32.totalorder %s112, %s113
    %p124 = scmp.eq.s32.totalorder %s15, 0
    %p125 = por %p123, %p124
    %p126 = scmp.ne.s32.totalorder %s112, %s113
    %p127 = scmp.eq.s32.totalorder %s16, 1
    %p128 = por %p126, %p127
    %p130 = scmp.ne.s32.totalorder %s113, %s129
    %p131 = scmp.eq.s32.totalorder %s16, 0
    %p132 = por %p130, %p131
    %p133 = scmp.le.s32.totalorder 1, %s10
    %p134 = scmp.lt.s32.totalorder %s10, 3
    %p135 = pnand %p133, %p134
    %p136 = pneg %p135
    // Predicated region
    $region9: #{gpt_neo_forward.8} parent=5 // pred_check
      _
    $region10: #{gpt_neo_forward.8} parent=5 // pred_check_branch
      %138 = sbr.rel (%p135) target = $region12
    $region11: #{gpt_neo_forward.8} parent=5 // pred_region
      %s139 = ssub.s32 %s10, 1
      // Predicated region
      $region13: #{gpt_neo_forward.8} parent=11 // pred_check
        %p140 = pneg %p57
      $region14: #{gpt_neo_forward.8} parent=11 // pred_check_branch
        %142 = sbr.rel (%p140) target = $region16
      $region15: #{gpt_neo_forward.8} parent=11 // pred_region
        _
      $region16: #{gpt_neo_forward.8} parent=11 // pred_fallthru
        _
      // Predicated region
      $region17: #{gpt_neo_forward.8} parent=11 // pred_check
        %p143 = pneg %p78
      $region18: #{gpt_neo_forward.8} parent=11 // pred_check_branch
        %145 = sbr.rel (%p143) target = $region20
      $region19: #{gpt_neo_forward.8} parent=11 // pred_region
        _
      $region20: #{gpt_neo_forward.8} parent=11 // pred_fallthru
        _
      // Predicated region
      $region21: #{gpt_neo_forward.8} parent=11 // pred_check
        %p146 = pneg %p99
      $region22: #{gpt_neo_forward.8} parent=11 // pred_check_branch
        %148 = sbr.rel (%p146) target = $region24
      $region23: #{gpt_neo_forward.8} parent=11 // pred_region
        _
      $region24: #{gpt_neo_forward.8} parent=11 // pred_fallthru
        _
    $region12: #{gpt_neo_forward.8} parent=5 // pred_fallthru
      _
    %p149 = scmp.lt.s32.totalorder %s10, 2
    // Predicated region
    $region25: #{gpt_neo_forward.8} parent=5 // pred_check
      %p150 = pneg %p149
    $region26: #{gpt_neo_forward.8} parent=5 // pred_check_branch
      %152 = sbr.rel (%p150) target = $region28
    $region27: #{gpt_neo_forward.8} parent=5 // pred_region
      // Predicated region
      $region29: #{gpt_neo_forward.8} parent=27 // pred_check
        %p153 = pneg %p30
      $region30: #{gpt_neo_forward.8} parent=27 // pred_check_branch
        %155 = sbr.rel (%p153) target = $region32
      $region31: #{gpt_neo_forward.8} parent=27 // pred_region
        %p156 = scmp.lt.s32.totalorder %s10, 1
        %s157 = scalar_select %p156, %s10, 1
        %s158 = smul.addr %s157, 8
        %s159 = scalar_lea.vmem %s0, %s158
      $region32: #{gpt_neo_forward.8} parent=27 // pred_fallthru
        _
    $region28: #{gpt_neo_forward.8} parent=5 // pred_fallthru
      _
    %p160 = scmp.le.s32.totalorder 1, %s10
    %p161 = scmp.lt.s32.totalorder %s10, 3
    %p162 = pnand %p160, %p161
    %p163 = pneg %p162
    // Predicated region
    $region33: #{gpt_neo_forward.8} parent=5 // pred_check
      _
    $region34: #{gpt_neo_forward.8} parent=5 // pred_check_branch
      %165 = sbr.rel (%p162) target = $region36
    $region35: #{gpt_neo_forward.8} parent=5 // pred_region
      %s166 = ssub.s32 %s10, 1
      %p167 = scmp.lt.s32.totalorder %s15, 1
      %s168 = scalar_select %p167, %s15, 1
      %s169 = smul.addr %s168, 8
      %s170 = scalar_lea.vmem %s0, %s169
      %p171 = pneg %p36
      %p172 = pneg %p33
      %p173 = pneg %p57
      %p174 = pneg %p54
      %p175 = pneg %p78
      %p176 = pneg %p75
      %p177 = pneg %p99
      %p178 = pneg %p96
      %p179 = pneg %p125
      %p180 = pneg %p122
      %p181 = scmp.lt.s32.totalorder %s15, 1
      %s182 = scalar_select %p181, %s15, 1
      %s183 = smul.addr %s182, 3
      %s184 = smul.addr %s183, 4
      %s185 = scalar_lea.vmem %s4, %s184
      %p186 = scmp.lt.s32.totalorder %s15, 1
      %s187 = scalar_select %p186, %s15, 1
      %s188 = smul.addr %s187, 8
      %s189 = scalar_lea.vmem %s0, %s188
      %p190 = scmp.lt.s32.totalorder %s15, 1
      %s191 = scalar_select %p190, %s15, 1
      %s192 = smul.addr %s191, 3
      %s193 = smul.addr %s192, 4
      %s194 = scalar_lea.vmem %s4, %s193
      %v196 = vld [vmem:[%s189] sm:$0xff]
      %v197 = vld [vmem:[%s1] sm:$0x1]
      %v198 = vld [vmem:[%s2] sm:$0x1]
      %199 = vadd.xlane.f32.xlu0 %v196
      %v200 = vpop.xlane.xlu0 %199
      %v201 = vrcp.pop 128.0
      %v202 = vmul.f32 %v200, %v201
      %v203 = vsub.f32 %v196, %v202
      %v204 = vmul.f32 %v203, %v203
      %205 = vadd.xlane.f32.xlu0 %v204
      %v206 = vpop.xlane.xlu0 %205
      %v207 = vmul.f32 %v206, %v201
      %v208 = vadd.f32 %v207, 1e-05
      %v209 = vrsqrt.pop %v208
      %v210 = vmul.f32 %v203, %v209
      %v212 = vlaneseq
      %v213 = vshrl.u32 %v212, 7
      %v214 = vsub.s32 0, %v213
      %v215 = vrot.slane %v197, %v214
      %v217 = vmul.f32 %v210, %v215
      %v219 = vlaneseq
      %v220 = vshrl.u32 %v219, 7
      %v221 = vsub.s32 0, %v220
      %v222 = vrot.slane %v198, %v221
      %v224 = vadd.f32 %v217, %v222
      %v225 = vpack.c.bf16 %v224, %v224
      %v226 = vld [vmem:[%s3] sm:$0xff]
      %v227 = vld [vmem:[%s3 + $0x8] sm:$0xf]
      %v228 = vld [vmem:[%s3 + $0xc] sm:$0xff]
      %v229 = vld [vmem:[%s3 + $0x14] sm:$0xf]
      %v230 = vld [vmem:[%s3 + $0x18] sm:$0xff]
      %v231 = vld [vmem:[%s3 + $0x20] sm:$0xf]
      %v232 = vld [vmem:[%s3 + $0x24] sm:$0xff]
      %v233 = vld [vmem:[%s3 + $0x2c] sm:$0xf]
      %v234 = vld [vmem:[%s3 + $0x30] sm:$0xff]
      %v235 = vld [vmem:[%s3 + $0x38] sm:$0xf]
      %v236 = vld [vmem:[%s3 + $0x3c] sm:$0xff]
      %v237 = vld [vmem:[%s3 + $0x44] sm:$0xf]
      %v238 = vld [vmem:[%s3 + $0x48] sm:$0xff]
      %v239 = vld [vmem:[%s3 + $0x50] sm:$0xf]
      %v240 = vld [vmem:[%s3 + $0x54] sm:$0xff]
      %v241 = vld [vmem:[%s3 + $0x5c] sm:$0xf]
      %v242 = vld [vmem:[%s3 + $0x60] sm:$0xff]
      %v243 = vld [vmem:[%s3 + $0x68] sm:$0xf]
      %v244 = vld [vmem:[%s3 + $0x6c] sm:$0xff]
      %v245 = vld [vmem:[%s3 + $0x74] sm:$0xf]
      %v246 = vld [vmem:[%s3 + $0x78] sm:$0xff]
      %v247 = vld [vmem:[%s3 + $0x80] sm:$0xf]
      %v248 = vld [vmem:[%s3 + $0x84] sm:$0xff]
      %v249 = vld [vmem:[%s3 + $0x8c] sm:$0xf]
      %v250 = vld [vmem:[%s3 + $0x90] sm:$0xff]
      %v251 = vld [vmem:[%s3 + $0x98] sm:$0xf]
      %v252 = vld [vmem:[%s3 + $0x9c] sm:$0xff]
      %v253 = vld [vmem:[%s3 + $0xa4] sm:$0xf]
      %v254 = vld [vmem:[%s3 + $0xa8] sm:$0xff]
      %v255 = vld [vmem:[%s3 + $0xb0] sm:$0xf]
      %v256 = vld [vmem:[%s3 + $0xb4] sm:$0xff]
      %v257 = vld [vmem:[%s3 + $0xbc] sm:$0xf]
      %v290 = vunpack.c.l.b16 %v226
      %v291 = vunpack.c.h.b16 %v226
      %v292 = vunpack.c.l.b16 %v227
      %v293 = vunpack.c.l.b16 %v228
      %v294 = vunpack.c.h.b16 %v228
      %v295 = vunpack.c.l.b16 %v229
      %v296 = vunpack.c.l.b16 %v230
      %v297 = vunpack.c.h.b16 %v230
      %v298 = vunpack.c.l.b16 %v231
      %v299 = vunpack.c.l.b16 %v232
      %v300 = vunpack.c.h.b16 %v232
      %v301 = vunpack.c.l.b16 %v233
      %v302 = vunpack.c.l.b16 %v234
      %v303 = vunpack.c.h.b16 %v234
      %v304 = vunpack.c.l.b16 %v235
      %v305 = vunpack.c.l.b16 %v236
      %v306 = vunpack.c.h.b16 %v236
      %v307 = vunpack.c.l.b16 %v237
      %v308 = vunpack.c.l.b16 %v238
      %v309 = vunpack.c.h.b16 %v238
      %v310 = vunpack.c.l.b16 %v239
      %v311 = vunpack.c.l.b16 %v240
      %v312 = vunpack.c.h.b16 %v240
      %v313 = vunpack.c.l.b16 %v241
      %v314 = vunpack.c.l.b16 %v242
      %v315 = vunpack.c.h.b16 %v242
      %v316 = vunpack.c.l.b16 %v243
      %v317 = vunpack.c.l.b16 %v244
      %v318 = vunpack.c.h.b16 %v244
      %v319 = vunpack.c.l.b16 %v245
      %v320 = vunpack.c.l.b16 %v246
      %v321 = vunpack.c.h.b16 %v246
      %v322 = vunpack.c.l.b16 %v247
      %v323 = vunpack.c.l.b16 %v248
      %v324 = vunpack.c.h.b16 %v248
      %v325 = vunpack.c.l.b16 %v249
      %v326 = vunpack.c.l.b16 %v250
      %v327 = vunpack.c.h.b16 %v250
      %v328 = vunpack.c.l.b16 %v251
      %v329 = vunpack.c.l.b16 %v252
      %v330 = vunpack.c.h.b16 %v252
      %v331 = vunpack.c.l.b16 %v253
      %v332 = vunpack.c.l.b16 %v254
      %v333 = vunpack.c.h.b16 %v254
      %v334 = vunpack.c.l.b16 %v255
      %v335 = vunpack.c.l.b16 %v256
      %v336 = vunpack.c.h.b16 %v256
      %v337 = vunpack.c.l.b16 %v257
      %v338 = vpack.c.b16 %v293, %v290
      %v339 = vpack.c.b16 %v294, %v291
      %v340 = vpack.c.b16 %v295, %v292
      %v341 = vpack.c.b16 %v299, %v296
      %v342 = vpack.c.b16 %v300, %v297
      %v343 = vpack.c.b16 %v301, %v298
      %v344 = vpack.c.b16 %v305, %v302
      %v345 = vpack.c.b16 %v306, %v303
      %v346 = vpack.c.b16 %v307, %v304
      %v347 = vpack.c.b16 %v311, %v308
      %v348 = vpack.c.b16 %v312, %v309
      %v349 = vpack.c.b16 %v313, %v310
      %v350 = vpack.c.b16 %v317, %v314
      %v351 = vpack.c.b16 %v318, %v315
      %v352 = vpack.c.b16 %v319, %v316
      %v353 = vpack.c.b16 %v323, %v320
      %v354 = vpack.c.b16 %v324, %v321
      %v355 = vpack.c.b16 %v325, %v322
      %v356 = vpack.c.b16 %v329, %v326
      %v357 = vpack.c.b16 %v330, %v327
      %v358 = vpack.c.b16 %v331, %v328
      %v359 = vpack.c.b16 %v335, %v332
      %v360 = vpack.c.b16 %v336, %v333
      %v361 = vpack.c.b16 %v337, %v334
      %386 = vmatprep.subr.bf16.mxu0 %v339
      %387 = vmatpush1.bf16.msra.mxu0 %v338
      %388 = vmatprep.subr.bf16.mxu0 %v342
      %389 = vmatpush1.bf16.msra.mxu0 %v341
      %390 = vmatprep.subr.bf16.mxu0 %v345
      %391 = vmatpush1.bf16.msra.mxu0 %v344
      %392 = vmatprep.subr.bf16.mxu0 %v348
      %393 = vmatpush1.bf16.msra.mxu0 %v347
      %394 = vmatprep.subr.bf16.mxu0 %v351
      %395 = vmatpush1.bf16.msra.mxu0 %v350
      %396 = vmatprep.subr.bf16.mxu0 %v354
      %397 = vmatpush1.bf16.msra.mxu0 %v353
      %398 = vmatprep.subr.bf16.mxu0 %v357
      %399 = vmatpush1.bf16.msra.mxu0 %v356
      %400 = vmatprep.subr.bf16.mxu0 %v360
      %401 = vmatpush1.bf16.msra.mxu0 %v359
      %402 = vmatprep.subr.bf16.mxu0 0
      %403 = vmatpush1.bf16.msra.mxu0 0
      %404 = vmatprep.subr.bf16.mxu0 0
      %405 = vmatpush1.bf16.msra.mxu0 0
      %406 = vmatprep.subr.bf16.mxu0 0
      %407 = vmatpush1.bf16.msra.mxu0 0
      %408 = vmatprep.subr.bf16.mxu0 0
      %409 = vmatpush1.bf16.msra.mxu0 0
      %410 = vmatprep.subr.bf16.mxu0 0
      %411 = vmatpush1.bf16.msra.mxu0 0
      %412 = vmatprep.subr.bf16.mxu0 0
      %413 = vmatpush1.bf16.msra.mxu0 0
      %414 = vmatprep.subr.bf16.mxu0 0
      %415 = vmatpush1.bf16.msra.mxu0 0
      %416 = vmatprep.subr.bf16.mxu0 0
      %417 = vmatpush1.bf16.msra.mxu0 0
      %418 = vmatprep.mubr.bf16.mxu0 0
      %419 = vmatmul.mubr.bf16.gmra.mrb[0].mxu0 %v225
      %v420 = vpop.f32.mrb[0].mxu0
      %v421 = vadd.f32 0.0, %v420
      %v422 = vpop.f32.mrb[0].mxu0
      %v423 = vadd.f32 0.0, %v422
      %v424 = vpop.f32.mrb[0].mxu0
      %v425 = vpop.f32.mrb[0].mxu0
      %426 = vdwg.mxu0
      %427 = vmatprep.subr.bf16.mxu0 0
      %428 = vmatpush1.bf16.msra.mxu0 %v340
      %429 = vmatprep.subr.bf16.mxu0 0
      %430 = vmatpush1.bf16.msra.mxu0 %v343
      %431 = vmatprep.subr.bf16.mxu0 0
      %432 = vmatpush1.bf16.msra.mxu0 %v346
      %433 = vmatprep.subr.bf16.mxu0 0
      %434 = vmatpush1.bf16.msra.mxu0 %v349
      %435 = vmatprep.subr.bf16.mxu0 0
      %436 = vmatpush1.bf16.msra.mxu0 %v352
      %437 = vmatprep.subr.bf16.mxu0 0
      %438 = vmatpush1.bf16.msra.mxu0 %v355
      %439 = vmatprep.subr.bf16.mxu0 0
      %440 = vmatpush1.bf16.msra.mxu0 %v358
      %441 = vmatprep.subr.bf16.mxu0 0
      %442 = vmatpush1.bf16.msra.mxu0 %v361
      %443 = vmatprep.subr.bf16.mxu0 0
      %444 = vmatpush1.bf16.msra.mxu0 0
      %445 = vmatprep.subr.bf16.mxu0 0
      %446 = vmatpush1.bf16.msra.mxu0 0
      %447 = vmatprep.subr.bf16.mxu0 0
      %448 = vmatpush1.bf16.msra.mxu0 0
      %449 = vmatprep.subr.bf16.mxu0 0
      %450 = vmatpush1.bf16.msra.mxu0 0
      %451 = vmatprep.subr.bf16.mxu0 0
      %452 = vmatpush1.bf16.msra.mxu0 0
      %453 = vmatprep.subr.bf16.mxu0 0
      %454 = vmatpush1.bf16.msra.mxu0 0
      %455 = vmatprep.subr.bf16.mxu0 0
      %456 = vmatpush1.bf16.msra.mxu0 0
      %457 = vmatprep.subr.bf16.mxu0 0
      %458 = vmatpush1.bf16.msra.mxu0 0
      %459 = vmatprep.mubr.bf16.mxu0 0
      %460 = vmatmul.mubr.bf16.gmra.mrb[0].mxu0 %v225
      %v461 = vpop.f32.mrb[0].mxu0
      %v462 = vadd.f32 0.0, %v461
      %v463 = vpop.f32.mrb[0].mxu0
      %v464 = vpop.f32.mrb[0].mxu0
      %v465 = vpop.f32.mrb[0].mxu0
      %466 = vdwg.mxu0
      %v467 = vpack.c.bf16 %v421, %v421
      %v468 = vpack.c.bf16 %v423, %v423
      %v469 = vpack.c.bf16 %v462, %v462
      %v473 = vunpack.c.l.b16 %v467
      %v474 = vunpack.c.l.b16 %v468
      %v475 = vunpack.c.l.b16 %v469
      %v476 = vpack.c.b16 %v474, %v473
      %v477 = vpack.c.b16 %v475, %v475
      %480 = vst [vmem:[%s194] sm:$0xff] %v476
      %481 = vst [vmem:[%s194 + $0x8] sm:$0xf] %v477
      %p482 = scmp.lt.s32.totalorder %s15, 1
      %s483 = scalar_select %p482, %s15, 1
      %s484 = smul.addr %s483, 3
      %s485 = smul.addr %s484, 4
      %s486 = scalar_lea.vmem %s4, %s485
      // Predicated region
      $region37: #{gpt_neo_forward.8} parent=35 // pred_check
        %p487 = pneg %p122
      $region38: #{gpt_neo_forward.8} parent=35 // pred_check_branch
        %489 = sbr.rel (%p487) target = $region40
      $region39: #{gpt_neo_forward.8} parent=35 // pred_region
        _
      $region40: #{gpt_neo_forward.8} parent=35 // pred_fallthru
        _
    $region36: #{gpt_neo_forward.8} parent=5 // pred_fallthru
      _
    %p490 = scmp.le.s32.totalorder 2, %s10
    // Predicated region
    $region41: #{gpt_neo_forward.8} parent=5 // pred_check
      %p491 = pneg %p490
    $region42: #{gpt_neo_forward.8} parent=5 // pred_check_branch
      %493 = sbr.rel (%p491) target = $region44
    $region43: #{gpt_neo_forward.8} parent=5 // pred_region
      %s494 = ssub.s32 %s10, 2
      // Predicated region
      $region45: #{gpt_neo_forward.8} parent=43 // pred_check
        %p495 = pneg %p128
      $region46: #{gpt_neo_forward.8} parent=43 // pred_check_branch
        %497 = sbr.rel (%p495) target = $region48
      $region47: #{gpt_neo_forward.8} parent=43 // pred_region
        %p498 = scmp.lt.s32.totalorder %s16, 1
        %s499 = scalar_select %p498, %s16, 1
        %s500 = smul.addr %s499, 3
        %s501 = smul.addr %s500, 4
        %s502 = scalar_lea.vmem %s4, %s501
      $region48: #{gpt_neo_forward.8} parent=43 // pred_fallthru
        _
    $region44: #{gpt_neo_forward.8} parent=5 // pred_fallthru
      _
  $region6: #{gpt_neo_forward.8} parent=0 // loop_footer
    %s14 = sadd.s32 1, %s10
  $region7: #{gpt_neo_forward.8} parent=0 // loop_footer_branch
    %9 = sbr.rel target = $region3
  $region8: #{gpt_neo_forward.8} parent=0 // loop_exit
    _

// kernel: gpt_neo_forward.14
$region0: #{gpt_neo_forward.14}
  #allocation0 [shape = 'u32[]', space=smem, size = 0x4, offset = 0x4, fixed_abs, tag = 'smem constant byte address 0x4 - core index']
  #allocation1 [shape = 'u32[144,128]{1,0:T(1,128)}', space=vmem, size = 0x12000, scoped, tag = 'internal scratch']
  %s0 = inlined_call_operand.vmem [shape: f32[16,128], index: 0, kind: input, shape index: {}]
  %s1 = inlined_call_operand.vmem [shape: f32[1,128], index: 1, kind: input, shape index: {}]
  %s2 = inlined_call_operand.vmem [shape: f32[1,128], index: 2, kind: input, shape index: {}]
  %s3 = inlined_call_operand.vmem [shape: f32[16,128], index: 3, kind: output, shape index: {}]
  %s4 = sld [smem:[#allocation0]]
  $region45: #{gpt_neo_forward.14} parent=0
    _
  %s6 = ssub.s32 1, %s4
  %s7 = scalar_select 0, %s6, %s4
  loop: start=0, step=1, limit=4
  $region2: #{gpt_neo_forward.14} parent=0 // loop_pre_header
    _
  $region3: #{gpt_neo_forward.14} parent=0 // loop_header
    %s9 = sphi 0, %s13
    %p10 = scmp.ge.s32.totalorder %s9, 4
    %s19 = sphi 0, %s21
    %s22 = sphi 0, %s19
    %s23 = sphi 0, %s22
    %s39 = sphi 0, %s23
    %s43 = sphi 0, %s43
    %s45 = sphi 0, %s43
    %s46 = sphi 0, %s45
    %s60 = sphi 0, %s46
    %s64 = sphi 0, %s64
    %s66 = sphi 0, %s64
    %s67 = sphi 0, %s66
    %s81 = sphi 0, %s67
    %s87 = sphi 0, %s89
    %s90 = sphi 0, %s87
    %s91 = sphi 0, %s90
    %s107 = sphi 0, %s91
  $region4: #{gpt_neo_forward.14} parent=0 // loop_header_branch
    %12 = sbr.rel (%p10) target = $region8
  $region5: #{gpt_neo_forward.14} parent=0 // loop_body
    %s14 = ssub.s32 %s9, 1
    %s15 = ssub.s32 %s9, 2
    %s16 = sadd.s32 %s9, 1
    %s17 = ssub.s32 %s9, %s16
    %p18 = scmp.eq.s32.totalorder %s17, 0
    %s20 = sadd.s32 %s19, 1
    %s21 = scalar_select %p18, %s19, %s20
    %p24 = pneg %p18
    %p25 = scmp.eq.s32.totalorder %s9, 1
    %p26 = por %p24, %p25
    %p27 = scmp.ne.s32.totalorder %s19, %s22
    %p28 = scmp.eq.s32.totalorder %s9, 0
    %p29 = por %p27, %p28
    %p30 = scmp.ne.s32.totalorder %s19, %s22
    %p31 = scmp.eq.s32.totalorder %s14, 1
    %p32 = por %p30, %p31
    %p33 = scmp.ne.s32.totalorder %s22, %s23
    %p34 = scmp.eq.s32.totalorder %s14, 0
    %p35 = por %p33, %p34
    %p36 = scmp.ne.s32.totalorder %s22, %s23
    %p37 = scmp.eq.s32.totalorder %s15, 1
    %p38 = por %p36, %p37
    %p40 = scmp.ne.s32.totalorder %s23, %s39
    %p41 = scmp.eq.s32.totalorder %s15, 0
    %p42 = por %p40, %p41
    %s44 = sadd.s32 %s43, 1
    %p47 = scmp.eq.s32.totalorder %s9, 1
    %p48 = scmp.ne.s32.totalorder %s43, %s45
    %p49 = scmp.eq.s32.totalorder %s9, 0
    %p50 = por %p48, %p49
    %p51 = scmp.ne.s32.totalorder %s43, %s45
    %p52 = scmp.eq.s32.totalorder %s14, 1
    %p53 = por %p51, %p52
    %p54 = scmp.ne.s32.totalorder %s45, %s46
    %p55 = scmp.eq.s32.totalorder %s14, 0
    %p56 = por %p54, %p55
    %p57 = scmp.ne.s32.totalorder %s45, %s46
    %p58 = scmp.eq.s32.totalorder %s15, 1
    %p59 = por %p57, %p58
    %p61 = scmp.ne.s32.totalorder %s46, %s60
    %p62 = scmp.eq.s32.totalorder %s15, 0
    %p63 = por %p61, %p62
    %s65 = sadd.s32 %s64, 1
    %p68 = scmp.eq.s32.totalorder %s9, 1
    %p69 = scmp.ne.s32.totalorder %s64, %s66
    %p70 = scmp.eq.s32.totalorder %s9, 0
    %p71 = por %p69, %p70
    %p72 = scmp.ne.s32.totalorder %s64, %s66
    %p73 = scmp.eq.s32.totalorder %s14, 1
    %p74 = por %p72, %p73
    %p75 = scmp.ne.s32.totalorder %s66, %s67
    %p76 = scmp.eq.s32.totalorder %s14, 0
    %p77 = por %p75, %p76
    %p78 = scmp.ne.s32.totalorder %s66, %s67
    %p79 = scmp.eq.s32.totalorder %s15, 1
    %p80 = por %p78, %p79
    %p82 = scmp.ne.s32.totalorder %s67, %s81
    %p83 = scmp.eq.s32.totalorder %s15, 0
    %p84 = por %p82, %p83
    %s85 = ssub.s32 %s9, %s16
    %p86 = scmp.eq.s32.totalorder %s85, 0
    %s88 = sadd.s32 %s87, 1
    %s89 = scalar_select %p86, %s87, %s88
    %p92 = pneg %p86
    %p93 = scmp.eq.s32.totalorder %s9, 1
    %p94 = por %p92, %p93
    %p95 = scmp.ne.s32.totalorder %s87, %s90
    %p96 = scmp.eq.s32.totalorder %s9, 0
    %p97 = por %p95, %p96
    %p98 = scmp.ne.s32.totalorder %s87, %s90
    %p99 = scmp.eq.s32.totalorder %s14, 1
    %p100 = por %p98, %p99
    %p101 = scmp.ne.s32.totalorder %s90, %s91
    %p102 = scmp.eq.s32.totalorder %s14, 0
    %p103 = por %p101, %p102
    %p104 = scmp.ne.s32.totalorder %s90, %s91
    %p105 = scmp.eq.s32.totalorder %s15, 1
    %p106 = por %p104, %p105
    %p108 = scmp.ne.s32.totalorder %s91, %s107
    %p109 = scmp.eq.s32.totalorder %s15, 0
    %p110 = por %p108, %p109
    %p111 = scmp.le.s32.totalorder 1, %s9
    %p112 = scmp.lt.s32.totalorder %s9, 3
    %p113 = pnand %p111, %p112
    %p114 = pneg %p113
    // Predicated region
    $region9: #{gpt_neo_forward.14} parent=5 // pred_check
      _
    $region10: #{gpt_neo_forward.14} parent=5 // pred_check_branch
      %116 = sbr.rel (%p113) target = $region12
    $region11: #{gpt_neo_forward.14} parent=5 // pred_region
      %s117 = ssub.s32 %s9, 1
      // Predicated region
      $region13: #{gpt_neo_forward.14} parent=11 // pred_check
        %p118 = pneg %p56
      $region14: #{gpt_neo_forward.14} parent=11 // pred_check_branch
        %120 = sbr.rel (%p118) target = $region16
      $region15: #{gpt_neo_forward.14} parent=11 // pred_region
        _
      $region16: #{gpt_neo_forward.14} parent=11 // pred_fallthru
        _
      // Predicated region
      $region17: #{gpt_neo_forward.14} parent=11 // pred_check
        %p121 = pneg %p77
      $region18: #{gpt_neo_forward.14} parent=11 // pred_check_branch
        %123 = sbr.rel (%p121) target = $region20
      $region19: #{gpt_neo_forward.14} parent=11 // pred_region
        _
      $region20: #{gpt_neo_forward.14} parent=11 // pred_fallthru
        _
    $region12: #{gpt_neo_forward.14} parent=5 // pred_fallthru
      _
    %p124 = scmp.lt.s32.totalorder %s9, 2
    // Predicated region
    $region21: #{gpt_neo_forward.14} parent=5 // pred_check
      %p125 = pneg %p124
    $region22: #{gpt_neo_forward.14} parent=5 // pred_check_branch
      %127 = sbr.rel (%p125) target = $region24
    $region23: #{gpt_neo_forward.14} parent=5 // pred_region
      // Predicated region
      $region25: #{gpt_neo_forward.14} parent=23 // pred_check
        %p128 = pneg %p29
      $region26: #{gpt_neo_forward.14} parent=23 // pred_check_branch
        %130 = sbr.rel (%p128) target = $region28
      $region27: #{gpt_neo_forward.14} parent=23 // pred_region
        %p131 = scmp.lt.s32.totalorder %s9, 1
        %s132 = scalar_select %p131, %s9, 1
        %s133 = smul.addr %s132, 8
        %s134 = scalar_lea.vmem %s0, %s133
      $region28: #{gpt_neo_forward.14} parent=23 // pred_fallthru
        _
    $region24: #{gpt_neo_forward.14} parent=5 // pred_fallthru
      _
    %p135 = scmp.le.s32.totalorder 1, %s9
    %p136 = scmp.lt.s32.totalorder %s9, 3
    %p137 = pnand %p135, %p136
    %p138 = pneg %p137
    // Predicated region
    $region29: #{gpt_neo_forward.14} parent=5 // pred_check
      _
    $region30: #{gpt_neo_forward.14} parent=5 // pred_check_branch
      %140 = sbr.rel (%p137) target = $region32
    $region31: #{gpt_neo_forward.14} parent=5 // pred_region
      %s141 = ssub.s32 %s9, 1
      %p142 = scmp.lt.s32.totalorder %s14, 1
      %s143 = scalar_select %p142, %s14, 1
      %s144 = smul.addr %s143, 8
      %s145 = scalar_lea.vmem %s0, %s144
      %p146 = pneg %p35
      %p147 = pneg %p32
      %p148 = pneg %p56
      %p149 = pneg %p53
      %p150 = pneg %p77
      %p151 = pneg %p74
      %p152 = pneg %p103
      %p153 = pneg %p100
      %p154 = scmp.lt.s32.totalorder %s14, 1
      %s155 = scalar_select %p154, %s14, 1
      %s156 = smul.addr %s155, 8
      %s157 = scalar_lea.vmem %s3, %s156
      %p158 = scmp.lt.s32.totalorder %s14, 1
      %s159 = scalar_select %p158, %s14, 1
      %s160 = smul.addr %s159, 8
      %s161 = scalar_lea.vmem %s0, %s160
      %p162 = scmp.lt.s32.totalorder %s14, 1
      %s163 = scalar_select %p162, %s14, 1
      %s164 = smul.addr %s163, 8
      %s165 = scalar_lea.vmem %s3, %s164
      %v166 = vld [vmem:[%s161] sm:$0xff]
      %v167 = vld [vmem:[%s1] sm:$0x1]
      %v168 = vld [vmem:[%s2] sm:$0x1]
      %169 = vadd.xlane.f32.xlu0 %v166
      %v170 = vpop.xlane.xlu0 %169
      %v171 = vrcp.pop 128.0
      %v172 = vmul.f32 %v170, %v171
      %v173 = vsub.f32 %v166, %v172
      %v174 = vmul.f32 %v173, %v173
      %175 = vadd.xlane.f32.xlu0 %v174
      %v176 = vpop.xlane.xlu0 %175
      %v177 = vmul.f32 %v176, %v171
      %v178 = vadd.f32 %v177, 1e-05
      %v179 = vrsqrt.pop %v178
      %v180 = vmul.f32 %v173, %v179
      %v182 = vlaneseq
      %v183 = vshrl.u32 %v182, 7
      %v184 = vsub.s32 0, %v183
      %v185 = vrot.slane %v167, %v184
      %v187 = vmul.f32 %v180, %v185
      %v189 = vlaneseq
      %v190 = vshrl.u32 %v189, 7
      %v191 = vsub.s32 0, %v190
      %v192 = vrot.slane %v168, %v191
      %v194 = vadd.f32 %v187, %v192
      %195 = vst [vmem:[%s165] sm:$0xff] %v194
      %p196 = scmp.lt.s32.totalorder %s14, 1
      %s197 = scalar_select %p196, %s14, 1
      %s198 = smul.addr %s197, 8
      %s199 = scalar_lea.vmem %s3, %s198
      // Predicated region
      $region33: #{gpt_neo_forward.14} parent=31 // pred_check
        %p200 = pneg %p100
      $region34: #{gpt_neo_forward.14} parent=31 // pred_check_branch
        %202 = sbr.rel (%p200) target = $region36
      $region35: #{gpt_neo_forward.14} parent=31 // pred_region
        _
      $region36: #{gpt_neo_forward.14} parent=31 // pred_fallthru
        _
    $region32: #{gpt_neo_forward.14} parent=5 // pred_fallthru
      _
    %p203 = scmp.le.s32.totalorder 2, %s9
    // Predicated region
    $region37: #{gpt_neo_forward.14} parent=5 // pred_check
      %p204 = pneg %p203
    $region38: #{gpt_neo_forward.14} parent=5 // pred_check_branch
      %206 = sbr.rel (%p204) target = $region40
    $region39: #{gpt_neo_forward.14} parent=5 // pred_region
      %s207 = ssub.s32 %s9, 2
      // Predicated region
      $region41: #{gpt_neo_forward.14} parent=39 // pred_check
        %p208 = pneg %p106
      $region42: #{gpt_neo_forward.14} parent=39 // pred_check_branch
        %210 = sbr.rel (%p208) target = $region44
      $region43: #{gpt_neo_forward.14} parent=39 // pred_region
        %p211 = scmp.lt.s32.totalorder %s15, 1
        %s212 = scalar_select %p211, %s15, 1
        %s213 = smul.addr %s212, 8
        %s214 = scalar_lea.vmem %s3, %s213
      $region44: #{gpt_neo_forward.14} parent=39 // pred_fallthru
        _
    $region40: #{gpt_neo_forward.14} parent=5 // pred_fallthru
      _
  $region6: #{gpt_neo_forward.14} parent=0 // loop_footer
    %s13 = sadd.s32 1, %s9
  $region7: #{gpt_neo_forward.14} parent=0 // loop_footer_branch
    %8 = sbr.rel target = $region3
  $region8: #{gpt_neo_forward.14} parent=0 // loop_exit
    _

// kernel: gpt_neo_forward.10
$region0: #{gpt_neo_forward.10}
  #allocation0 [shape = 'u32[]', space=smem, size = 0x4, offset = 0x4, fixed_abs, tag = 'smem constant byte address 0x4 - core index']
  #allocation1 [shape = 'u32[144,128]{1,0:T(1,128)}', space=vmem, size = 0x12000, scoped, tag = 'internal scratch']
  %s0 = inlined_call_operand.vmem [shape: bf16[16,128], index: 0, kind: input, shape index: {}]
  %s1 = inlined_call_operand.vmem [shape: bf16[128,128], index: 1, kind: input, shape index: {}]
  %s2 = inlined_call_operand.vmem [shape: f32[1,128], index: 2, kind: input, shape index: {}]
  %s3 = inlined_call_operand.vmem [shape: f32[16,128], index: 3, kind: input, shape index: {}]
  %s4 = inlined_call_operand.vmem [shape: f32[1,128], index: 4, kind: input, shape index: {}]
  %s5 = inlined_call_operand.vmem [shape: f32[1,128], index: 5, kind: input, shape index: {}]
  %s6 = inlined_call_operand.vmem [shape: bf16[128,512], index: 6, kind: input, shape index: {}]
  %s7 = inlined_call_operand.vmem [shape: f32[1,512], index: 7, kind: input, shape index: {}]
  %s8 = inlined_call_operand.vmem [shape: bf16[512,128], index: 8, kind: input, shape index: {}]
  %s9 = inlined_call_operand.vmem [shape: f32[1,128], index: 9, kind: input, shape index: {}]
  %s10 = inlined_call_operand.vmem [shape: f32[16,128], index: 10, kind: output, shape index: {}]
  %s11 = sld [smem:[#allocation0]]
  $region73: #{gpt_neo_forward.10} parent=0
    _
  %s13 = ssub.s32 1, %s11
  %s14 = scalar_select 0, %s13, %s11
  loop: start=0, step=1, limit=4
  $region2: #{gpt_neo_forward.10} parent=0 // loop_pre_header
    _
  $region3: #{gpt_neo_forward.10} parent=0 // loop_header
    %s16 = sphi 0, %s20
    %p17 = scmp.ge.s32.totalorder %s16, 4
    %s26 = sphi 0, %s28
    %s29 = sphi 0, %s26
    %s30 = sphi 0, %s29
    %s46 = sphi 0, %s30
    %s50 = sphi 0, %s50
    %s52 = sphi 0, %s50
    %s53 = sphi 0, %s52
    %s67 = sphi 0, %s53
    %s71 = sphi 0, %s71
    %s73 = sphi 0, %s71
    %s74 = sphi 0, %s73
    %s88 = sphi 0, %s74
    %s94 = sphi 0, %s96
    %s97 = sphi 0, %s94
    %s98 = sphi 0, %s97
    %s114 = sphi 0, %s98
    %s118 = sphi 0, %s118
    %s120 = sphi 0, %s118
    %s121 = sphi 0, %s120
    %s135 = sphi 0, %s121
    %s139 = sphi 0, %s139
    %s141 = sphi 0, %s139
    %s142 = sphi 0, %s141
    %s156 = sphi 0, %s142
    %s160 = sphi 0, %s160
    %s162 = sphi 0, %s160
    %s163 = sphi 0, %s162
    %s177 = sphi 0, %s163
    %s181 = sphi 0, %s181
    %s183 = sphi 0, %s181
    %s184 = sphi 0, %s183
    %s198 = sphi 0, %s184
    %s202 = sphi 0, %s202
    %s204 = sphi 0, %s202
    %s205 = sphi 0, %s204
    %s219 = sphi 0, %s205
    %s223 = sphi 0, %s223
    %s225 = sphi 0, %s223
    %s226 = sphi 0, %s225
    %s240 = sphi 0, %s226
    %s246 = sphi 0, %s248
    %s249 = sphi 0, %s246
    %s250 = sphi 0, %s249
    %s266 = sphi 0, %s250
  $region4: #{gpt_neo_forward.10} parent=0 // loop_header_branch
    %19 = sbr.rel (%p17) target = $region8
  $region5: #{gpt_neo_forward.10} parent=0 // loop_body
    %s21 = ssub.s32 %s16, 1
    %s22 = ssub.s32 %s16, 2
    %s23 = sadd.s32 %s16, 1
    %s24 = ssub.s32 %s16, %s23
    %p25 = scmp.eq.s32.totalorder %s24, 0
    %s27 = sadd.s32 %s26, 1
    %s28 = scalar_select %p25, %s26, %s27
    %p31 = pneg %p25
    %p32 = scmp.eq.s32.totalorder %s16, 1
    %p33 = por %p31, %p32
    %p34 = scmp.ne.s32.totalorder %s26, %s29
    %p35 = scmp.eq.s32.totalorder %s16, 0
    %p36 = por %p34, %p35
    %p37 = scmp.ne.s32.totalorder %s26, %s29
    %p38 = scmp.eq.s32.totalorder %s21, 1
    %p39 = por %p37, %p38
    %p40 = scmp.ne.s32.totalorder %s29, %s30
    %p41 = scmp.eq.s32.totalorder %s21, 0
    %p42 = por %p40, %p41
    %p43 = scmp.ne.s32.totalorder %s29, %s30
    %p44 = scmp.eq.s32.totalorder %s22, 1
    %p45 = por %p43, %p44
    %p47 = scmp.ne.s32.totalorder %s30, %s46
    %p48 = scmp.eq.s32.totalorder %s22, 0
    %p49 = por %p47, %p48
    %s51 = sadd.s32 %s50, 1
    %p54 = scmp.eq.s32.totalorder %s16, 1
    %p55 = scmp.ne.s32.totalorder %s50, %s52
    %p56 = scmp.eq.s32.totalorder %s16, 0
    %p57 = por %p55, %p56
    %p58 = scmp.ne.s32.totalorder %s50, %s52
    %p59 = scmp.eq.s32.totalorder %s21, 1
    %p60 = por %p58, %p59
    %p61 = scmp.ne.s32.totalorder %s52, %s53
    %p62 = scmp.eq.s32.totalorder %s21, 0
    %p63 = por %p61, %p62
    %p64 = scmp.ne.s32.totalorder %s52, %s53
    %p65 = scmp.eq.s32.totalorder %s22, 1
    %p66 = por %p64, %p65
    %p68 = scmp.ne.s32.totalorder %s53, %s67
    %p69 = scmp.eq.s32.totalorder %s22, 0
    %p70 = por %p68, %p69
    %s72 = sadd.s32 %s71, 1
    %p75 = scmp.eq.s32.totalorder %s16, 1
    %p76 = scmp.ne.s32.totalorder %s71, %s73
    %p77 = scmp.eq.s32.totalorder %s16, 0
    %p78 = por %p76, %p77
    %p79 = scmp.ne.s32.totalorder %s71, %s73
    %p80 = scmp.eq.s32.totalorder %s21, 1
    %p81 = por %p79, %p80
    %p82 = scmp.ne.s32.totalorder %s73, %s74
    %p83 = scmp.eq.s32.totalorder %s21, 0
    %p84 = por %p82, %p83
    %p85 = scmp.ne.s32.totalorder %s73, %s74
    %p86 = scmp.eq.s32.totalorder %s22, 1
    %p87 = por %p85, %p86
    %p89 = scmp.ne.s32.totalorder %s74, %s88
    %p90 = scmp.eq.s32.totalorder %s22, 0
    %p91 = por %p89, %p90
    %s92 = ssub.s32 %s16, %s23
    %p93 = scmp.eq.s32.totalorder %s92, 0
    %s95 = sadd.s32 %s94, 1
    %s96 = scalar_select %p93, %s94, %s95
    %p99 = pneg %p93
    %p100 = scmp.eq.s32.totalorder %s16, 1
    %p101 = por %p99, %p100
    %p102 = scmp.ne.s32.totalorder %s94, %s97
    %p103 = scmp.eq.s32.totalorder %s16, 0
    %p104 = por %p102, %p103
    %p105 = scmp.ne.s32.totalorder %s94, %s97
    %p106 = scmp.eq.s32.totalorder %s21, 1
    %p107 = por %p105, %p106
    %p108 = scmp.ne.s32.totalorder %s97, %s98
    %p109 = scmp.eq.s32.totalorder %s21, 0
    %p110 = por %p108, %p109
    %p111 = scmp.ne.s32.totalorder %s97, %s98
    %p112 = scmp.eq.s32.totalorder %s22, 1
    %p113 = por %p111, %p112
    %p115 = scmp.ne.s32.totalorder %s98, %s114
    %p116 = scmp.eq.s32.totalorder %s22, 0
    %p117 = por %p115, %p116
    %s119 = sadd.s32 %s118, 1
    %p122 = scmp.eq.s32.totalorder %s16, 1
    %p123 = scmp.ne.s32.totalorder %s118, %s120
    %p124 = scmp.eq.s32.totalorder %s16, 0
    %p125 = por %p123, %p124
    %p126 = scmp.ne.s32.totalorder %s118, %s120
    %p127 = scmp.eq.s32.totalorder %s21, 1
    %p128 = por %p126, %p127
    %p129 = scmp.ne.s32.totalorder %s120, %s121
    %p130 = scmp.eq.s32.totalorder %s21, 0
    %p131 = por %p129, %p130
    %p132 = scmp.ne.s32.totalorder %s120, %s121
    %p133 = scmp.eq.s32.totalorder %s22, 1
    %p134 = por %p132, %p133
    %p136 = scmp.ne.s32.totalorder %s121, %s135
    %p137 = scmp.eq.s32.totalorder %s22, 0
    %p138 = por %p136, %p137
    %s140 = sadd.s32 %s139, 1
    %p143 = scmp.eq.s32.totalorder %s16, 1
    %p144 = scmp.ne.s32.totalorder %s139, %s141
    %p145 = scmp.eq.s32.totalorder %s16, 0
    %p146 = por %p144, %p145
    %p147 = scmp.ne.s32.totalorder %s139, %s141
    %p148 = scmp.eq.s32.totalorder %s21, 1
    %p149 = por %p147, %p148
    %p150 = scmp.ne.s32.totalorder %s141, %s142
    %p151 = scmp.eq.s32.totalorder %s21, 0
    %p152 = por %p150, %p151
    %p153 = scmp.ne.s32.totalorder %s141, %s142
    %p154 = scmp.eq.s32.totalorder %s22, 1
    %p155 = por %p153, %p154
    %p157 = scmp.ne.s32.totalorder %s142, %s156
    %p158 = scmp.eq.s32.totalorder %s22, 0
    %p159 = por %p157, %p158
    %s161 = sadd.s32 %s160, 1
    %p164 = scmp.eq.s32.totalorder %s16, 1
    %p165 = scmp.ne.s32.totalorder %s160, %s162
    %p166 = scmp.eq.s32.totalorder %s16, 0
    %p167 = por %p165, %p166
    %p168 = scmp.ne.s32.totalorder %s160, %s162
    %p169 = scmp.eq.s32.totalorder %s21, 1
    %p170 = por %p168, %p169
    %p171 = scmp.ne.s32.totalorder %s162, %s163
    %p172 = scmp.eq.s32.totalorder %s21, 0
    %p173 = por %p171, %p172
    %p174 = scmp.ne.s32.totalorder %s162, %s163
    %p175 = scmp.eq.s32.totalorder %s22, 1
    %p176 = por %p174, %p175
    %p178 = scmp.ne.s32.totalorder %s163, %s177
    %p179 = scmp.eq.s32.totalorder %s22, 0
    %p180 = por %p178, %p179
    %s182 = sadd.s32 %s181, 1
    %p185 = scmp.eq.s32.totalorder %s16, 1
    %p186 = scmp.ne.s32.totalorder %s181, %s183
    %p187 = scmp.eq.s32.totalorder %s16, 0
    %p188 = por %p186, %p187
    %p189 = scmp.ne.s32.totalorder %s181, %s183
    %p190 = scmp.eq.s32.totalorder %s21, 1
    %p191 = por %p189, %p190
    %p192 = scmp.ne.s32.totalorder %s183, %s184
    %p193 = scmp.eq.s32.totalorder %s21, 0
    %p194 = por %p192, %p193
    %p195 = scmp.ne.s32.totalorder %s183, %s184
    %p196 = scmp.eq.s32.totalorder %s22, 1
    %p197 = por %p195, %p196
    %p199 = scmp.ne.s32.totalorder %s184, %s198
    %p200 = scmp.eq.s32.totalorder %s22, 0
    %p201 = por %p199, %p200
    %s203 = sadd.s32 %s202, 1
    %p206 = scmp.eq.s32.totalorder %s16, 1
    %p207 = scmp.ne.s32.totalorder %s202, %s204
    %p208 = scmp.eq.s32.totalorder %s16, 0
    %p209 = por %p207, %p208
    %p210 = scmp.ne.s32.totalorder %s202, %s204
    %p211 = scmp.eq.s32.totalorder %s21, 1
    %p212 = por %p210, %p211
    %p213 = scmp.ne.s32.totalorder %s204, %s205
    %p214 = scmp.eq.s32.totalorder %s21, 0
    %p215 = por %p213, %p214
    %p216 = scmp.ne.s32.totalorder %s204, %s205
    %p217 = scmp.eq.s32.totalorder %s22, 1
    %p218 = por %p216, %p217
    %p220 = scmp.ne.s32.totalorder %s205, %s219
    %p221 = scmp.eq.s32.totalorder %s22, 0
    %p222 = por %p220, %p221
    %s224 = sadd.s32 %s223, 1
    %p227 = scmp.eq.s32.totalorder %s16, 1
    %p228 = scmp.ne.s32.totalorder %s223, %s225
    %p229 = scmp.eq.s32.totalorder %s16, 0
    %p230 = por %p228, %p229
    %p231 = scmp.ne.s32.totalorder %s223, %s225
    %p232 = scmp.eq.s32.totalorder %s21, 1
    %p233 = por %p231, %p232
    %p234 = scmp.ne.s32.totalorder %s225, %s226
    %p235 = scmp.eq.s32.totalorder %s21, 0
    %p236 = por %p234, %p235
    %p237 = scmp.ne.s32.totalorder %s225, %s226
    %p238 = scmp.eq.s32.totalorder %s22, 1
    %p239 = por %p237, %p238
    %p241 = scmp.ne.s32.totalorder %s226, %s240
    %p242 = scmp.eq.s32.totalorder %s22, 0
    %p243 = por %p241, %p242
    %s244 = ssub.s32 %s16, %s23
    %p245 = scmp.eq.s32.totalorder %s244, 0
    %s247 = sadd.s32 %s246, 1
    %s248 = scalar_select %p245, %s246, %s247
    %p251 = pneg %p245
    %p252 = scmp.eq.s32.totalorder %s16, 1
    %p253 = por %p251, %p252
    %p254 = scmp.ne.s32.totalorder %s246, %s249
    %p255 = scmp.eq.s32.totalorder %s16, 0
    %p256 = por %p254, %p255
    %p257 = scmp.ne.s32.totalorder %s246, %s249
    %p258 = scmp.eq.s32.totalorder %s21, 1
    %p259 = por %p257, %p258
    %p260 = scmp.ne.s32.totalorder %s249, %s250
    %p261 = scmp.eq.s32.totalorder %s21, 0
    %p262 = por %p260, %p261
    %p263 = scmp.ne.s32.totalorder %s249, %s250
    %p264 = scmp.eq.s32.totalorder %s22, 1
    %p265 = por %p263, %p264
    %p267 = scmp.ne.s32.totalorder %s250, %s266
    %p268 = scmp.eq.s32.totalorder %s22, 0
    %p269 = por %p267, %p268
    %p270 = scmp.le.s32.totalorder 1, %s16
    %p271 = scmp.lt.s32.totalorder %s16, 3
    %p272 = pnand %p270, %p271
    %p273 = pneg %p272
    // Predicated region
    $region9: #{gpt_neo_forward.10} parent=5 // pred_check
      _
    $region10: #{gpt_neo_forward.10} parent=5 // pred_check_branch
      %275 = sbr.rel (%p272) target = $region12
    $region11: #{gpt_neo_forward.10} parent=5 // pred_region
      %s276 = ssub.s32 %s16, 1
      // Predicated region
      $region13: #{gpt_neo_forward.10} parent=11 // pred_check
        %p277 = pneg %p63
      $region14: #{gpt_neo_forward.10} parent=11 // pred_check_branch
        %279 = sbr.rel (%p277) target = $region16
      $region15: #{gpt_neo_forward.10} parent=11 // pred_region
        _
      $region16: #{gpt_neo_forward.10} parent=11 // pred_fallthru
        _
      // Predicated region
      $region17: #{gpt_neo_forward.10} parent=11 // pred_check
        %p280 = pneg %p84
      $region18: #{gpt_neo_forward.10} parent=11 // pred_check_branch
        %282 = sbr.rel (%p280) target = $region20
      $region19: #{gpt_neo_forward.10} parent=11 // pred_region
        _
      $region20: #{gpt_neo_forward.10} parent=11 // pred_fallthru
        _
      // Predicated region
      $region21: #{gpt_neo_forward.10} parent=11 // pred_check
        %p283 = pneg %p131
      $region22: #{gpt_neo_forward.10} parent=11 // pred_check_branch
        %285 = sbr.rel (%p283) target = $region24
      $region23: #{gpt_neo_forward.10} parent=11 // pred_region
        _
      $region24: #{gpt_neo_forward.10} parent=11 // pred_fallthru
        _
      // Predicated region
      $region25: #{gpt_neo_forward.10} parent=11 // pred_check
        %p286 = pneg %p152
      $region26: #{gpt_neo_forward.10} parent=11 // pred_check_branch
        %288 = sbr.rel (%p286) target = $region28
      $region27: #{gpt_neo_forward.10} parent=11 // pred_region
        _
      $region28: #{gpt_neo_forward.10} parent=11 // pred_fallthru
        _
      // Predicated region
      $region29: #{gpt_neo_forward.10} parent=11 // pred_check
        %p289 = pneg %p173
      $region30: #{gpt_neo_forward.10} parent=11 // pred_check_branch
        %291 = sbr.rel (%p289) target = $region32
      $region31: #{gpt_neo_forward.10} parent=11 // pred_region
        _
      $region32: #{gpt_neo_forward.10} parent=11 // pred_fallthru
        _
      // Predicated region
      $region33: #{gpt_neo_forward.10} parent=11 // pred_check
        %p292 = pneg %p194
      $region34: #{gpt_neo_forward.10} parent=11 // pred_check_branch
        %294 = sbr.rel (%p292) target = $region36
      $region35: #{gpt_neo_forward.10} parent=11 // pred_region
        _
      $region36: #{gpt_neo_forward.10} parent=11 // pred_fallthru
        _
      // Predicated region
      $region37: #{gpt_neo_forward.10} parent=11 // pred_check
        %p295 = pneg %p215
      $region38: #{gpt_neo_forward.10} parent=11 // pred_check_branch
        %297 = sbr.rel (%p295) target = $region40
      $region39: #{gpt_neo_forward.10} parent=11 // pred_region
        _
      $region40: #{gpt_neo_forward.10} parent=11 // pred_fallthru
        _
      // Predicated region
      $region41: #{gpt_neo_forward.10} parent=11 // pred_check
        %p298 = pneg %p236
      $region42: #{gpt_neo_forward.10} parent=11 // pred_check_branch
        %300 = sbr.rel (%p298) target = $region44
      $region43: #{gpt_neo_forward.10} parent=11 // pred_region
        _
      $region44: #{gpt_neo_forward.10} parent=11 // pred_fallthru
        _
    $region12: #{gpt_neo_forward.10} parent=5 // pred_fallthru
      _
    %p301 = scmp.lt.s32.totalorder %s16, 2
    // Predicated region
    $region45: #{gpt_neo_forward.10} parent=5 // pred_check
      %p302 = pneg %p301
    $region46: #{gpt_neo_forward.10} parent=5 // pred_check_branch
      %304 = sbr.rel (%p302) target = $region48
    $region47: #{gpt_neo_forward.10} parent=5 // pred_region
      // Predicated region
      $region49: #{gpt_neo_forward.10} parent=47 // pred_check
        %p305 = pneg %p36
      $region50: #{gpt_neo_forward.10} parent=47 // pred_check_branch
        %307 = sbr.rel (%p305) target = $region52
      $region51: #{gpt_neo_forward.10} parent=47 // pred_region
        %p308 = scmp.lt.s32.totalorder %s16, 1
        %s309 = scalar_select %p308, %s16, 1
        %s310 = smul.addr %s309, 4
        %s311 = scalar_lea.vmem %s0, %s310
      $region52: #{gpt_neo_forward.10} parent=47 // pred_fallthru
        _
      // Predicated region
      $region53: #{gpt_neo_forward.10} parent=47 // pred_check
        %p312 = pneg %p104
      $region54: #{gpt_neo_forward.10} parent=47 // pred_check_branch
        %314 = sbr.rel (%p312) target = $region56
      $region55: #{gpt_neo_forward.10} parent=47 // pred_region
        %p315 = scmp.lt.s32.totalorder %s16, 1
        %s316 = scalar_select %p315, %s16, 1
        %s317 = smul.addr %s316, 8
        %s318 = scalar_lea.vmem %s3, %s317
      $region56: #{gpt_neo_forward.10} parent=47 // pred_fallthru
        _
    $region48: #{gpt_neo_forward.10} parent=5 // pred_fallthru
      _
    %p319 = scmp.le.s32.totalorder 1, %s16
    %p320 = scmp.lt.s32.totalorder %s16, 3
    %p321 = pnand %p319, %p320
    %p322 = pneg %p321
    // Predicated region
    $region57: #{gpt_neo_forward.10} parent=5 // pred_check
      _
    $region58: #{gpt_neo_forward.10} parent=5 // pred_check_branch
      %324 = sbr.rel (%p321) target = $region60
    $region59: #{gpt_neo_forward.10} parent=5 // pred_region
      %s325 = ssub.s32 %s16, 1
      %p326 = scmp.lt.s32.totalorder %s21, 1
      %s327 = scalar_select %p326, %s21, 1
      %s328 = smul.addr %s327, 4
      %s329 = scalar_lea.vmem %s0, %s328
      %p330 = pneg %p42
      %p331 = pneg %p39
      %p332 = pneg %p63
      %p333 = pneg %p60
      %p334 = pneg %p84
      %p335 = pneg %p81
      %p336 = scmp.lt.s32.totalorder %s21, 1
      %s337 = scalar_select %p336, %s21, 1
      %s338 = smul.addr %s337, 8
      %s339 = scalar_lea.vmem %s3, %s338
      %p340 = pneg %p110
      %p341 = pneg %p107
      %p342 = pneg %p131
      %p343 = pneg %p128
      %p344 = pneg %p152
      %p345 = pneg %p149
      %p346 = pneg %p173
      %p347 = pneg %p170
      %p348 = pneg %p194
      %p349 = pneg %p191
      %p350 = pneg %p215
      %p351 = pneg %p212
      %p352 = pneg %p236
      %p353 = pneg %p233
      %p354 = pneg %p262
      %p355 = pneg %p259
      %p356 = scmp.lt.s32.totalorder %s21, 1
      %s357 = scalar_select %p356, %s21, 1
      %s358 = smul.addr %s357, 8
      %s359 = scalar_lea.vmem %s10, %s358
      %p360 = scmp.lt.s32.totalorder %s21, 1
      %s361 = scalar_select %p360, %s21, 1
      %s362 = smul.addr %s361, 4
      %s363 = scalar_lea.vmem %s0, %s362
      %p364 = scmp.lt.s32.totalorder %s21, 1
      %s365 = scalar_select %p364, %s21, 1
      %s366 = smul.addr %s365, 8
      %s367 = scalar_lea.vmem %s3, %s366
      %p368 = scmp.lt.s32.totalorder %s21, 1
      %s369 = scalar_select %p368, %s21, 1
      %s370 = smul.addr %s369, 8
      %s371 = scalar_lea.vmem %s10, %s370
      %v373 = vld [vmem:[%s363] sm:$0xf]
      %v374 = vld [vmem:[%s1] sm:$0xf]
      %v375 = vld [vmem:[%s1 + $0x4] sm:$0xf]
      %v376 = vld [vmem:[%s1 + $0x8] sm:$0xf]
      %v377 = vld [vmem:[%s1 + $0xc] sm:$0xf]
      %v378 = vld [vmem:[%s1 + $0x10] sm:$0xf]
      %v379 = vld [vmem:[%s1 + $0x14] sm:$0xf]
      %v380 = vld [vmem:[%s1 + $0x18] sm:$0xf]
      %v381 = vld [vmem:[%s1 + $0x1c] sm:$0xf]
      %v382 = vld [vmem:[%s1 + $0x20] sm:$0xf]
      %v383 = vld [vmem:[%s1 + $0x24] sm:$0xf]
      %v384 = vld [vmem:[%s1 + $0x28] sm:$0xf]
      %v385 = vld [vmem:[%s1 + $0x2c] sm:$0xf]
      %v386 = vld [vmem:[%s1 + $0x30] sm:$0xf]
      %v387 = vld [vmem:[%s1 + $0x34] sm:$0xf]
      %v388 = vld [vmem:[%s1 + $0x38] sm:$0xf]
      %v389 = vld [vmem:[%s1 + $0x3c] sm:$0xf]
      %v406 = vunpack.c.l.b16 %v374
      %v407 = vunpack.c.l.b16 %v375
      %v408 = vunpack.c.l.b16 %v376
      %v409 = vunpack.c.l.b16 %v377
      %v410 = vunpack.c.l.b16 %v378
      %v411 = vunpack.c.l.b16 %v379
      %v412 = vunpack.c.l.b16 %v380
      %v413 = vunpack.c.l.b16 %v381
      %v414 = vunpack.c.l.b16 %v382
      %v415 = vunpack.c.l.b16 %v383
      %v416 = vunpack.c.l.b16 %v384
      %v417 = vunpack.c.l.b16 %v385
      %v418 = vunpack.c.l.b16 %v386
      %v419 = vunpack.c.l.b16 %v387
      %v420 = vunpack.c.l.b16 %v388
      %v421 = vunpack.c.l.b16 %v389
      %v422 = vpack.c.b16 %v407, %v406
      %v423 = vpack.c.b16 %v409, %v408
      %v424 = vpack.c.b16 %v411, %v410
      %v425 = vpack.c.b16 %v413, %v412
      %v426 = vpack.c.b16 %v415, %v414
      %v427 = vpack.c.b16 %v417, %v416
      %v428 = vpack.c.b16 %v419, %v418
      %v429 = vpack.c.b16 %v421, %v420
      %438 = vmatprep.subr.bf16.mxu0 0
      %439 = vmatpush1.bf16.msra.mxu0 %v422
      %440 = vmatprep.subr.bf16.mxu0 0
      %441 = vmatpush1.bf16.msra.mxu0 %v423
      %442 = vmatprep.subr.bf16.mxu0 0
      %443 = vmatpush1.bf16.msra.mxu0 %v424
      %444 = vmatprep.subr.bf16.mxu0 0
      %445 = vmatpush1.bf16.msra.mxu0 %v425
      %446 = vmatprep.subr.bf16.mxu0 0
      %447 = vmatpush1.bf16.msra.mxu0 %v426
      %448 = vmatprep.subr.bf16.mxu0 0
      %449 = vmatpush1.bf16.msra.mxu0 %v427
      %450 = vmatprep.subr.bf16.mxu0 0
      %451 = vmatpush1.bf16.msra.mxu0 %v428
      %452 = vmatprep.subr.bf16.mxu0 0
      %453 = vmatpush1.bf16.msra.mxu0 %v429
      %454 = vmatprep.subr.bf16.mxu0 0
      %455 = vmatpush1.bf16.msra.mxu0 0
      %456 = vmatprep.subr.bf16.mxu0 0
      %457 = vmatpush1.bf16.msra.mxu0 0
      %458 = vmatprep.subr.bf16.mxu0 0
      %459 = vmatpush1.bf16.msra.mxu0 0
      %460 = vmatprep.subr.bf16.mxu0 0
      %461 = vmatpush1.bf16.msra.mxu0 0
      %462 = vmatprep.subr.bf16.mxu0 0
      %463 = vmatpush1.bf16.msra.mxu0 0
      %464 = vmatprep.subr.bf16.mxu0 0
      %465 = vmatpush1.bf16.msra.mxu0 0
      %466 = vmatprep.subr.bf16.mxu0 0
      %467 = vmatpush1.bf16.msra.mxu0 0
      %468 = vmatprep.subr.bf16.mxu0 0
      %469 = vmatpush1.bf16.msra.mxu0 0
      %470 = vmatprep.mubr.bf16.mxu0 0
      %471 = vmatmul.mubr.bf16.gmra.mrb[0].mxu0 %v373
      %v472 = vpop.f32.mrb[0].mxu0
      %v473 = vadd.f32 0.0, %v472
      %v474 = vpop.f32.mrb[0].mxu0
      %v475 = vpop.f32.mrb[0].mxu0
      %v476 = vpop.f32.mrb[0].mxu0
      %477 = vdwg.mxu0
      %v478 = vld [vmem:[%s367] sm:$0xff]
      %v479 = vadd.f32 %v478, %v473
      %v480 = vld [vmem:[%s2] sm:$0x1]
      %v482 = vlaneseq
      %v483 = vshrl.u32 %v482, 7
      %v484 = vsub.s32 0, %v483
      %v485 = vrot.slane %v480, %v484
      %v487 = vadd.f32 %v479, %v485
      %v488 = vld [vmem:[%s4] sm:$0x1]
      %v489 = vld [vmem:[%s5] sm:$0x1]
      %490 = vadd.xlane.f32.xlu0 %v487
      %v491 = vpop.xlane.xlu0 %490
      %v492 = vrcp.pop 128.0
      %v493 = vmul.f32 %v491, %v492
      %v494 = vsub.f32 %v487, %v493
      %v495 = vmul.f32 %v494, %v494
      %496 = vadd.xlane.f32.xlu0 %v495
      %v497 = vpop.xlane.xlu0 %496
      %v498 = vmul.f32 %v497, %v492
      %v499 = vadd.f32 %v498, 1e-05
      %v500 = vrsqrt.pop %v499
      %v501 = vmul.f32 %v494, %v500
      %v503 = vlaneseq
      %v504 = vshrl.u32 %v503, 7
      %v505 = vsub.s32 0, %v504
      %v506 = vrot.slane %v488, %v505
      %v508 = vmul.f32 %v501, %v506
      %v510 = vlaneseq
      %v511 = vshrl.u32 %v510, 7
      %v512 = vsub.s32 0, %v511
      %v513 = vrot.slane %v489, %v512
      %v515 = vadd.f32 %v508, %v513
      %v516 = vpack.c.bf16 %v515, %v515
      %v517 = vld [vmem:[%s6] sm:$0xff]
      %v518 = vld [vmem:[%s6 + $0x8] sm:$0xff]
      %v519 = vld [vmem:[%s6 + $0x10] sm:$0xff]
      %v520 = vld [vmem:[%s6 + $0x18] sm:$0xff]
      %v521 = vld [vmem:[%s6 + $0x20] sm:$0xff]
      %v522 = vld [vmem:[%s6 + $0x28] sm:$0xff]
      %v523 = vld [vmem:[%s6 + $0x30] sm:$0xff]
      %v524 = vld [vmem:[%s6 + $0x38] sm:$0xff]
      %v525 = vld [vmem:[%s6 + $0x40] sm:$0xff]
      %v526 = vld [vmem:[%s6 + $0x48] sm:$0xff]
      %v527 = vld [vmem:[%s6 + $0x50] sm:$0xff]
      %v528 = vld [vmem:[%s6 + $0x58] sm:$0xff]
      %v529 = vld [vmem:[%s6 + $0x60] sm:$0xff]
      %v530 = vld [vmem:[%s6 + $0x68] sm:$0xff]
      %v531 = vld [vmem:[%s6 + $0x70] sm:$0xff]
      %v532 = vld [vmem:[%s6 + $0x78] sm:$0xff]
      %v533 = vld [vmem:[%s6 + $0x80] sm:$0xff]
      %v534 = vld [vmem:[%s6 + $0x88] sm:$0xff]
      %v535 = vld [vmem:[%s6 + $0x90] sm:$0xff]
      %v536 = vld [vmem:[%s6 + $0x98] sm:$0xff]
      %v537 = vld [vmem:[%s6 + $0xa0] sm:$0xff]
      %v538 = vld [vmem:[%s6 + $0xa8] sm:$0xff]
      %v539 = vld [vmem:[%s6 + $0xb0] sm:$0xff]
      %v540 = vld [vmem:[%s6 + $0xb8] sm:$0xff]
      %v541 = vld [vmem:[%s6 + $0xc0] sm:$0xff]
      %v542 = vld [vmem:[%s6 + $0xc8] sm:$0xff]
      %v543 = vld [vmem:[%s6 + $0xd0] sm:$0xff]
      %v544 = vld [vmem:[%s6 + $0xd8] sm:$0xff]
      %v545 = vld [vmem:[%s6 + $0xe0] sm:$0xff]
      %v546 = vld [vmem:[%s6 + $0xe8] sm:$0xff]
      %v547 = vld [vmem:[%s6 + $0xf0] sm:$0xff]
      %v548 = vld [vmem:[%s6 + $0xf8] sm:$0xff]
      %v549 = vld [vmem:[%s7] sm:$0xf]
      %v551 = vlaneseq
      %v552 = vshrl.u32 %v551, 7
      %v553 = vsub.s32 0, %v552
      %v554 = vrot.slane %v549, %v553
      %v555 = vlaneseq
      %v556 = vshrl.u32 %v555, 7
      %v557 = vsub.s32 1, %v556
      %v558 = vrot.slane %v549, %v557
      %v559 = vlaneseq
      %v560 = vshrl.u32 %v559, 7
      %v561 = vsub.s32 2, %v560
      %v562 = vrot.slane %v549, %v561
      %v563 = vlaneseq
      %v564 = vshrl.u32 %v563, 7
      %v565 = vsub.s32 3, %v564
      %v566 = vrot.slane %v549, %v565
      %v603 = vunpack.c.l.b16 %v517
      %v604 = vunpack.c.h.b16 %v517
      %v605 = vunpack.c.l.b16 %v518
      %v606 = vunpack.c.h.b16 %v518
      %v607 = vunpack.c.l.b16 %v519
      %v608 = vunpack.c.h.b16 %v519
      %v609 = vunpack.c.l.b16 %v520
      %v610 = vunpack.c.h.b16 %v520
      %v611 = vunpack.c.l.b16 %v521
      %v612 = vunpack.c.h.b16 %v521
      %v613 = vunpack.c.l.b16 %v522
      %v614 = vunpack.c.h.b16 %v522
      %v615 = vunpack.c.l.b16 %v523
      %v616 = vunpack.c.h.b16 %v523
      %v617 = vunpack.c.l.b16 %v524
      %v618 = vunpack.c.h.b16 %v524
      %v619 = vunpack.c.l.b16 %v525
      %v620 = vunpack.c.h.b16 %v525
      %v621 = vunpack.c.l.b16 %v526
      %v622 = vunpack.c.h.b16 %v526
      %v623 = vunpack.c.l.b16 %v527
      %v624 = vunpack.c.h.b16 %v527
      %v625 = vunpack.c.l.b16 %v528
      %v626 = vunpack.c.h.b16 %v528
      %v627 = vunpack.c.l.b16 %v529
      %v628 = vunpack.c.h.b16 %v529
      %v629 = vunpack.c.l.b16 %v530
      %v630 = vunpack.c.h.b16 %v530
      %v631 = vunpack.c.l.b16 %v531
      %v632 = vunpack.c.h.b16 %v531
      %v633 = vunpack.c.l.b16 %v532
      %v634 = vunpack.c.h.b16 %v532
      %v635 = vunpack.c.l.b16 %v533
      %v636 = vunpack.c.h.b16 %v533
      %v637 = vunpack.c.l.b16 %v534
      %v638 = vunpack.c.h.b16 %v534
      %v639 = vunpack.c.l.b16 %v535
      %v640 = vunpack.c.h.b16 %v535
      %v641 = vunpack.c.l.b16 %v536
      %v642 = vunpack.c.h.b16 %v536
      %v643 = vunpack.c.l.b16 %v537
      %v644 = vunpack.c.h.b16 %v537
      %v645 = vunpack.c.l.b16 %v538
      %v646 = vunpack.c.h.b16 %v538
      %v647 = vunpack.c.l.b16 %v539
      %v648 = vunpack.c.h.b16 %v539
      %v649 = vunpack.c.l.b16 %v540
      %v650 = vunpack.c.h.b16 %v540
      %v651 = vunpack.c.l.b16 %v541
      %v652 = vunpack.c.h.b16 %v541
      %v653 = vunpack.c.l.b16 %v542
      %v654 = vunpack.c.h.b16 %v542
      %v655 = vunpack.c.l.b16 %v543
      %v656 = vunpack.c.h.b16 %v543
      %v657 = vunpack.c.l.b16 %v544
      %v658 = vunpack.c.h.b16 %v544
      %v659 = vunpack.c.l.b16 %v545
      %v660 = vunpack.c.h.b16 %v545
      %v661 = vunpack.c.l.b16 %v546
      %v662 = vunpack.c.h.b16 %v546
      %v663 = vunpack.c.l.b16 %v547
      %v664 = vunpack.c.h.b16 %v547
      %v665 = vunpack.c.l.b16 %v548
      %v666 = vunpack.c.h.b16 %v548
      %v667 = vpack.c.b16 %v607, %v603
      %v668 = vpack.c.b16 %v608, %v604
      %v669 = vpack.c.b16 %v609, %v605
      %v670 = vpack.c.b16 %v610, %v606
      %v671 = vpack.c.b16 %v615, %v611
      %v672 = vpack.c.b16 %v616, %v612
      %v673 = vpack.c.b16 %v617, %v613
      %v674 = vpack.c.b16 %v618, %v614
      %v675 = vpack.c.b16 %v623, %v619
      %v676 = vpack.c.b16 %v624, %v620
      %v677 = vpack.c.b16 %v625, %v621
      %v678 = vpack.c.b16 %v626, %v622
      %v679 = vpack.c.b16 %v631, %v627
      %v680 = vpack.c.b16 %v632, %v628
      %v681 = vpack.c.b16 %v633, %v629
      %v682 = vpack.c.b16 %v634, %v630
      %v683 = vpack.c.b16 %v639, %v635
      %v684 = vpack.c.b16 %v640, %v636
      %v685 = vpack.c.b16 %v641, %v637
      %v686 = vpack.c.b16 %v642, %v638
      %v687 = vpack.c.b16 %v647, %v643
      %v688 = vpack.c.b16 %v648, %v644
      %v689 = vpack.c.b16 %v649, %v645
      %v690 = vpack.c.b16 %v650, %v646
      %v691 = vpack.c.b16 %v655, %v651
      %v692 = vpack.c.b16 %v656, %v652
      %v693 = vpack.c.b16 %v657, %v653
      %v694 = vpack.c.b16 %v658, %v654
      %v695 = vpack.c.b16 %v663, %v659
      %v696 = vpack.c.b16 %v664, %v660
      %v697 = vpack.c.b16 %v665, %v661
      %v698 = vpack.c.b16 %v666, %v662
      %731 = vmatprep.subr.bf16.mxu0 %v668
      %732 = vmatpush1.bf16.msra.mxu0 %v667
      %733 = vmatprep.subr.bf16.mxu0 %v672
      %734 = vmatpush1.bf16.msra.mxu0 %v671
      %735 = vmatprep.subr.bf16.mxu0 %v676
      %736 = vmatpush1.bf16.msra.mxu0 %v675
      %737 = vmatprep.subr.bf16.mxu0 %v680
      %738 = vmatpush1.bf16.msra.mxu0 %v679
      %739 = vmatprep.subr.bf16.mxu0 %v684
      %740 = vmatpush1.bf16.msra.mxu0 %v683
      %741 = vmatprep.subr.bf16.mxu0 %v688
      %742 = vmatpush1.bf16.msra.mxu0 %v687
      %743 = vmatprep.subr.bf16.mxu0 %v692
      %744 = vmatpush1.bf16.msra.mxu0 %v691
      %745 = vmatprep.subr.bf16.mxu0 %v696
      %746 = vmatpush1.bf16.msra.mxu0 %v695
      %747 = vmatprep.subr.bf16.mxu0 0
      %748 = vmatpush1.bf16.msra.mxu0 0
      %749 = vmatprep.subr.bf16.mxu0 0
      %750 = vmatpush1.bf16.msra.mxu0 0
      %751 = vmatprep.subr.bf16.mxu0 0
      %752 = vmatpush1.bf16.msra.mxu0 0
      %753 = vmatprep.subr.bf16.mxu0 0
      %754 = vmatpush1.bf16.msra.mxu0 0
      %755 = vmatprep.subr.bf16.mxu0 0
      %756 = vmatpush1.bf16.msra.mxu0 0
      %757 = vmatprep.subr.bf16.mxu0 0
      %758 = vmatpush1.bf16.msra.mxu0 0
      %759 = vmatprep.subr.bf16.mxu0 0
      %760 = vmatpush1.bf16.msra.mxu0 0
      %761 = vmatprep.subr.bf16.mxu0 0
      %762 = vmatpush1.bf16.msra.mxu0 0
      %763 = vmatprep.mubr.bf16.mxu0 0
      %764 = vmatmul.mubr.bf16.gmra.mrb[0].mxu0 %v516
      %v765 = vpop.f32.mrb[0].mxu0
      %v766 = vadd.f32 %v554, %v765
      %v767 = vpop.f32.mrb[0].mxu0
      %v768 = vadd.f32 %v558, %v767
      %v769 = vpop.f32.mrb[0].mxu0
      %v770 = vpop.f32.mrb[0].mxu0
      %771 = vdwg.mxu0
      %772 = vmatprep.subr.bf16.mxu0 %v670
      %773 = vmatpush1.bf16.msra.mxu0 %v669
      %774 = vmatprep.subr.bf16.mxu0 %v674
      %775 = vmatpush1.bf16.msra.mxu0 %v673
      %776 = vmatprep.subr.bf16.mxu0 %v678
      %777 = vmatpush1.bf16.msra.mxu0 %v677
      %778 = vmatprep.subr.bf16.mxu0 %v682
      %779 = vmatpush1.bf16.msra.mxu0 %v681
      %780 = vmatprep.subr.bf16.mxu0 %v686
      %781 = vmatpush1.bf16.msra.mxu0 %v685
      %782 = vmatprep.subr.bf16.mxu0 %v690
      %783 = vmatpush1.bf16.msra.mxu0 %v689
      %784 = vmatprep.subr.bf16.mxu0 %v694
      %785 = vmatpush1.bf16.msra.mxu0 %v693
      %786 = vmatprep.subr.bf16.mxu0 %v698
      %787 = vmatpush1.bf16.msra.mxu0 %v697
      %788 = vmatprep.subr.bf16.mxu0 0
      %789 = vmatpush1.bf16.msra.mxu0 0
      %790 = vmatprep.subr.bf16.mxu0 0
      %791 = vmatpush1.bf16.msra.mxu0 0
      %792 = vmatprep.subr.bf16.mxu0 0
      %793 = vmatpush1.bf16.msra.mxu0 0
      %794 = vmatprep.subr.bf16.mxu0 0
      %795 = vmatpush1.bf16.msra.mxu0 0
      %796 = vmatprep.subr.bf16.mxu0 0
      %797 = vmatpush1.bf16.msra.mxu0 0
      %798 = vmatprep.subr.bf16.mxu0 0
      %799 = vmatpush1.bf16.msra.mxu0 0
      %800 = vmatprep.subr.bf16.mxu0 0
      %801 = vmatpush1.bf16.msra.mxu0 0
      %802 = vmatprep.subr.bf16.mxu0 0
      %803 = vmatpush1.bf16.msra.mxu0 0
      %804 = vmatprep.mubr.bf16.mxu0 0
      %805 = vmatmul.mubr.bf16.gmra.mrb[0].mxu0 %v516
      %v806 = vpop.f32.mrb[0].mxu0
      %v807 = vadd.f32 %v562, %v806
      %v808 = vpop.f32.mrb[0].mxu0
      %v809 = vadd.f32 %v566, %v808
      %v810 = vpop.f32.mrb[0].mxu0
      %v811 = vpop.f32.mrb[0].mxu0
      %812 = vdwg.mxu0
      %v813 = vmul.f32 %v766, 0.5
      %v814 = vmul.f32 %v768, 0.5
      %v815 = vmul.f32 %v807, 0.5
      %v816 = vmul.f32 %v809, 0.5
      %v817 = vmul.f32 %v766, 0.044715
      %v818 = vmul.f32 %v768, 0.044715
      %v819 = vmul.f32 %v807, 0.044715
      %v820 = vmul.f32 %v809, 0.044715
      %v821 = vmul.f32 %v817, %v766
      %v822 = vmul.f32 %v818, %v768
      %v823 = vmul.f32 %v819, %v807
      %v824 = vmul.f32 %v820, %v809
      %v825 = vmul.f32 %v821, %v766
      %v826 = vmul.f32 %v822, %v768
      %v827 = vmul.f32 %v823, %v807
      %v828 = vmul.f32 %v824, %v809
      %v829 = vadd.f32 %v766, %v825
      %v830 = vadd.f32 %v768, %v826
      %v831 = vadd.f32 %v807, %v827
      %v832 = vadd.f32 %v809, %v828
      %v833 = vmul.f32 %v829, 0.7978846
      %v834 = vmul.f32 %v830, 0.7978846
      %v835 = vmul.f32 %v831, 0.7978846
      %v836 = vmul.f32 %v832, 0.7978846
      %v837 = vtanh.pop %v833
      %v838 = vtanh.pop %v834
      %v839 = vtanh.pop %v835
      %v840 = vtanh.pop %v836
      %v841 = vadd.f32 %v837, 1.0
      %v842 = vadd.f32 %v838, 1.0
      %v843 = vadd.f32 %v839, 1.0
      %v844 = vadd.f32 %v840, 1.0
      %v845 = vmul.f32 %v813, %v841
      %v846 = vmul.f32 %v814, %v842
      %v847 = vmul.f32 %v815, %v843
      %v848 = vmul.f32 %v816, %v844
      %v849 = vpack.c.bf16 %v845, %v845
      %v850 = vpack.c.bf16 %v846, %v846
      %v851 = vpack.c.bf16 %v847, %v847
      %v852 = vpack.c.bf16 %v848, %v848
      %v853 = vld [vmem:[%s8] sm:$0xf]
      %v854 = vld [vmem:[%s8 + $0x4] sm:$0xf]
      %v855 = vld [vmem:[%s8 + $0x8] sm:$0xf]
      %v856 = vld [vmem:[%s8 + $0xc] sm:$0xf]
      %v857 = vld [vmem:[%s8 + $0x10] sm:$0xf]
      %v858 = vld [vmem:[%s8 + $0x14] sm:$0xf]
      %v859 = vld [vmem:[%s8 + $0x18] sm:$0xf]
      %v860 = vld [vmem:[%s8 + $0x1c] sm:$0xf]
      %v861 = vld [vmem:[%s8 + $0x20] sm:$0xf]
      %v862 = vld [vmem:[%s8 + $0x24] sm:$0xf]
      %v863 = vld [vmem:[%s8 + $0x28] sm:$0xf]
      %v864 = vld [vmem:[%s8 + $0x2c] sm:$0xf]
      %v865 = vld [vmem:[%s8 + $0x30] sm:$0xf]
      %v866 = vld [vmem:[%s8 + $0x34] sm:$0xf]
      %v867 = vld [vmem:[%s8 + $0x38] sm:$0xf]
      %v868 = vld [vmem:[%s8 + $0x3c] sm:$0xf]
      %v869 = vld [vmem:[%s8 + $0x40] sm:$0xf]
      %v870 = vld [vmem:[%s8 + $0x44] sm:$0xf]
      %v871 = vld [vmem:[%s8 + $0x48] sm:$0xf]
      %v872 = vld [vmem:[%s8 + $0x4c] sm:$0xf]
      %v873 = vld [vmem:[%s8 + $0x50] sm:$0xf]
      %v874 = vld [vmem:[%s8 + $0x54] sm:$0xf]
      %v875 = vld [vmem:[%s8 + $0x58] sm:$0xf]
      %v876 = vld [vmem:[%s8 + $0x5c] sm:$0xf]
      %v877 = vld [vmem:[%s8 + $0x60] sm:$0xf]
      %v878 = vld [vmem:[%s8 + $0x64] sm:$0xf]
      %v879 = vld [vmem:[%s8 + $0x68] sm:$0xf]
      %v880 = vld [vmem:[%s8 + $0x6c] sm:$0xf]
      %v881 = vld [vmem:[%s8 + $0x70] sm:$0xf]
      %v882 = vld [vmem:[%s8 + $0x74] sm:$0xf]
      %v883 = vld [vmem:[%s8 + $0x78] sm:$0xf]
      %v884 = vld [vmem:[%s8 + $0x7c] sm:$0xf]
      %v885 = vld [vmem:[%s8 + $0x80] sm:$0xf]
      %v886 = vld [vmem:[%s8 + $0x84] sm:$0xf]
      %v887 = vld [vmem:[%s8 + $0x88] sm:$0xf]
      %v888 = vld [vmem:[%s8 + $0x8c] sm:$0xf]
      %v889 = vld [vmem:[%s8 + $0x90] sm:$0xf]
      %v890 = vld [vmem:[%s8 + $0x94] sm:$0xf]
      %v891 = vld [vmem:[%s8 + $0x98] sm:$0xf]
      %v892 = vld [vmem:[%s8 + $0x9c] sm:$0xf]
      %v893 = vld [vmem:[%s8 + $0xa0] sm:$0xf]
      %v894 = vld [vmem:[%s8 + $0xa4] sm:$0xf]
      %v895 = vld [vmem:[%s8 + $0xa8] sm:$0xf]
      %v896 = vld [vmem:[%s8 + $0xac] sm:$0xf]
      %v897 = vld [vmem:[%s8 + $0xb0] sm:$0xf]
      %v898 = vld [vmem:[%s8 + $0xb4] sm:$0xf]
      %v899 = vld [vmem:[%s8 + $0xb8] sm:$0xf]
      %v900 = vld [vmem:[%s8 + $0xbc] sm:$0xf]
      %v901 = vld [vmem:[%s8 + $0xc0] sm:$0xf]
      %v902 = vld [vmem:[%s8 + $0xc4] sm:$0xf]
      %v903 = vld [vmem:[%s8 + $0xc8] sm:$0xf]
      %v904 = vld [vmem:[%s8 + $0xcc] sm:$0xf]
      %v905 = vld [vmem:[%s8 + $0xd0] sm:$0xf]
      %v906 = vld [vmem:[%s8 + $0xd4] sm:$0xf]
      %v907 = vld [vmem:[%s8 + $0xd8] sm:$0xf]
      %v908 = vld [vmem:[%s8 + $0xdc] sm:$0xf]
      %v909 = vld [vmem:[%s8 + $0xe0] sm:$0xf]
      %v910 = vld [vmem:[%s8 + $0xe4] sm:$0xf]
      %v911 = vld [vmem:[%s8 + $0xe8] sm:$0xf]
      %v912 = vld [vmem:[%s8 + $0xec] sm:$0xf]
      %v913 = vld [vmem:[%s8 + $0xf0] sm:$0xf]
      %v914 = vld [vmem:[%s8 + $0xf4] sm:$0xf]
      %v915 = vld [vmem:[%s8 + $0xf8] sm:$0xf]
      %v916 = vld [vmem:[%s8 + $0xfc] sm:$0xf]
      %v917 = vld [vmem:[%s9] sm:$0x1]
      %v919 = vlaneseq
      %v920 = vshrl.u32 %v919, 7
      %v921 = vsub.s32 0, %v920
      %v922 = vrot.slane %v917, %v921
      %v988 = vunpack.c.l.b16 %v853
      %v989 = vunpack.c.l.b16 %v854
      %v990 = vunpack.c.l.b16 %v855
      %v991 = vunpack.c.l.b16 %v856
      %v992 = vunpack.c.l.b16 %v857
      %v993 = vunpack.c.l.b16 %v858
      %v994 = vunpack.c.l.b16 %v859
      %v995 = vunpack.c.l.b16 %v860
      %v996 = vunpack.c.l.b16 %v861
      %v997 = vunpack.c.l.b16 %v862
      %v998 = vunpack.c.l.b16 %v863
      %v999 = vunpack.c.l.b16 %v864
      %v1000 = vunpack.c.l.b16 %v865
      %v1001 = vunpack.c.l.b16 %v866
      %v1002 = vunpack.c.l.b16 %v867
      %v1003 = vunpack.c.l.b16 %v868
      %v1004 = vunpack.c.l.b16 %v869
      %v1005 = vunpack.c.l.b16 %v870
      %v1006 = vunpack.c.l.b16 %v871
      %v1007 = vunpack.c.l.b16 %v872
      %v1008 = vunpack.c.l.b16 %v873
      %v1009 = vunpack.c.l.b16 %v874
      %v1010 = vunpack.c.l.b16 %v875
      %v1011 = vunpack.c.l.b16 %v876
      %v1012 = vunpack.c.l.b16 %v877
      %v1013 = vunpack.c.l.b16 %v878
      %v1014 = vunpack.c.l.b16 %v879
      %v1015 = vunpack.c.l.b16 %v880
      %v1016 = vunpack.c.l.b16 %v881
      %v1017 = vunpack.c.l.b16 %v882
      %v1018 = vunpack.c.l.b16 %v883
      %v1019 = vunpack.c.l.b16 %v884
      %v1020 = vunpack.c.l.b16 %v885
      %v1021 = vunpack.c.l.b16 %v886
      %v1022 = vunpack.c.l.b16 %v887
      %v1023 = vunpack.c.l.b16 %v888
      %v1024 = vunpack.c.l.b16 %v889
      %v1025 = vunpack.c.l.b16 %v890
      %v1026 = vunpack.c.l.b16 %v891
      %v1027 = vunpack.c.l.b16 %v892
      %v1028 = vunpack.c.l.b16 %v893
      %v1029 = vunpack.c.l.b16 %v894
      %v1030 = vunpack.c.l.b16 %v895
      %v1031 = vunpack.c.l.b16 %v896
      %v1032 = vunpack.c.l.b16 %v897
      %v1033 = vunpack.c.l.b16 %v898
      %v1034 = vunpack.c.l.b16 %v899
      %v1035 = vunpack.c.l.b16 %v900
      %v1036 = vunpack.c.l.b16 %v901
      %v1037 = vunpack.c.l.b16 %v902
      %v1038 = vunpack.c.l.b16 %v903
      %v1039 = vunpack.c.l.b16 %v904
      %v1040 = vunpack.c.l.b16 %v905
      %v1041 = vunpack.c.l.b16 %v906
      %v1042 = vunpack.c.l.b16 %v907
      %v1043 = vunpack.c.l.b16 %v908
      %v1044 = vunpack.c.l.b16 %v909
      %v1045 = vunpack.c.l.b16 %v910
      %v1046 = vunpack.c.l.b16 %v911
      %v1047 = vunpack.c.l.b16 %v912
      %v1048 = vunpack.c.l.b16 %v913
      %v1049 = vunpack.c.l.b16 %v914
      %v1050 = vunpack.c.l.b16 %v915
      %v1051 = vunpack.c.l.b16 %v916
      %v1052 = vpack.c.b16 %v989, %v988
      %v1053 = vpack.c.b16 %v991, %v990
      %v1054 = vpack.c.b16 %v993, %v992
      %v1055 = vpack.c.b16 %v995, %v994
      %v1056 = vpack.c.b16 %v997, %v996
      %v1057 = vpack.c.b16 %v999, %v998
      %v1058 = vpack.c.b16 %v1001, %v1000
      %v1059 = vpack.c.b16 %v1003, %v1002
      %v1060 = vpack.c.b16 %v1005, %v1004
      %v1061 = vpack.c.b16 %v1007, %v1006
      %v1062 = vpack.c.b16 %v1009, %v1008
      %v1063 = vpack.c.b16 %v1011, %v1010
      %v1064 = vpack.c.b16 %v1013, %v1012
      %v1065 = vpack.c.b16 %v1015, %v1014
      %v1066 = vpack.c.b16 %v1017, %v1016
      %v1067 = vpack.c.b16 %v1019, %v1018
      %v1068 = vpack.c.b16 %v1021, %v1020
      %v1069 = vpack.c.b16 %v1023, %v1022
      %v1070 = vpack.c.b16 %v1025, %v1024
      %v1071 = vpack.c.b16 %v1027, %v1026
      %v1072 = vpack.c.b16 %v1029, %v1028
      %v1073 = vpack.c.b16 %v1031, %v1030
      %v1074 = vpack.c.b16 %v1033, %v1032
      %v1075 = vpack.c.b16 %v1035, %v1034
      %v1076 = vpack.c.b16 %v1037, %v1036
      %v1077 = vpack.c.b16 %v1039, %v1038
      %v1078 = vpack.c.b16 %v1041, %v1040
      %v1079 = vpack.c.b16 %v1043, %v1042
      %v1080 = vpack.c.b16 %v1045, %v1044
      %v1081 = vpack.c.b16 %v1047, %v1046
      %v1082 = vpack.c.b16 %v1049, %v1048
      %v1083 = vpack.c.b16 %v1051, %v1050
      %1116 = vmatprep.subr.bf16.mxu0 0
      %1117 = vmatpush1.bf16.msra.mxu0 %v1052
      %1118 = vmatprep.subr.bf16.mxu0 0
      %1119 = vmatpush1.bf16.msra.mxu0 %v1053
      %1120 = vmatprep.subr.bf16.mxu0 0
      %1121 = vmatpush1.bf16.msra.mxu0 %v1054
      %1122 = vmatprep.subr.bf16.mxu0 0
      %1123 = vmatpush1.bf16.msra.mxu0 %v1055
      %1124 = vmatprep.subr.bf16.mxu0 0
      %1125 = vmatpush1.bf16.msra.mxu0 %v1056
      %1126 = vmatprep.subr.bf16.mxu0 0
      %1127 = vmatpush1.bf16.msra.mxu0 %v1057
      %1128 = vmatprep.subr.bf16.mxu0 0
      %1129 = vmatpush1.bf16.msra.mxu0 %v1058
      %1130 = vmatprep.subr.bf16.mxu0 0
      %1131 = vmatpush1.bf16.msra.mxu0 %v1059
      %1132 = vmatprep.subr.bf16.mxu0 0
      %1133 = vmatpush1.bf16.msra.mxu0 %v1060
      %1134 = vmatprep.subr.bf16.mxu0 0
      %1135 = vmatpush1.bf16.msra.mxu0 %v1061
      %1136 = vmatprep.subr.bf16.mxu0 0
      %1137 = vmatpush1.bf16.msra.mxu0 %v1062
      %1138 = vmatprep.subr.bf16.mxu0 0
      %1139 = vmatpush1.bf16.msra.mxu0 %v1063
      %1140 = vmatprep.subr.bf16.mxu0 0
      %1141 = vmatpush1.bf16.msra.mxu0 %v1064
      %1142 = vmatprep.subr.bf16.mxu0 0
      %1143 = vmatpush1.bf16.msra.mxu0 %v1065
      %1144 = vmatprep.subr.bf16.mxu0 0
      %1145 = vmatpush1.bf16.msra.mxu0 %v1066
      %1146 = vmatprep.subr.bf16.mxu0 0
      %1147 = vmatpush1.bf16.msra.mxu0 %v1067
      %1148 = vmatprep.mubr.bf16.mxu0 %v850
      %1149 = vmatmul.mubr.bf16.gmra.mrb[0].mxu0 %v849
      %v1150 = vpop.f32.mrb[0].mxu0
      %v1151 = vadd.f32 %v922, %v1150
      %v1152 = vpop.f32.mrb[0].mxu0
      %v1153 = vpop.f32.mrb[0].mxu0
      %v1154 = vpop.f32.mrb[0].mxu0
      %1155 = vdwg.mxu0
      %1156 = vmatprep.subr.bf16.mxu0 0
      %1157 = vmatpush1.bf16.msra.mxu0 %v1068
      %1158 = vmatprep.subr.bf16.mxu0 0
      %1159 = vmatpush1.bf16.msra.mxu0 %v1069
      %1160 = vmatprep.subr.bf16.mxu0 0
      %1161 = vmatpush1.bf16.msra.mxu0 %v1070
      %1162 = vmatprep.subr.bf16.mxu0 0
      %1163 = vmatpush1.bf16.msra.mxu0 %v1071
      %1164 = vmatprep.subr.bf16.mxu0 0
      %1165 = vmatpush1.bf16.msra.mxu0 %v1072
      %1166 = vmatprep.subr.bf16.mxu0 0
      %1167 = vmatpush1.bf16.msra.mxu0 %v1073
      %1168 = vmatprep.subr.bf16.mxu0 0
      %1169 = vmatpush1.bf16.msra.mxu0 %v1074
      %1170 = vmatprep.subr.bf16.mxu0 0
      %1171 = vmatpush1.bf16.msra.mxu0 %v1075
      %1172 = vmatprep.subr.bf16.mxu0 0
      %1173 = vmatpush1.bf16.msra.mxu0 %v1076
      %1174 = vmatprep.subr.bf16.mxu0 0
      %1175 = vmatpush1.bf16.msra.mxu0 %v1077
      %1176 = vmatprep.subr.bf16.mxu0 0
      %1177 = vmatpush1.bf16.msra.mxu0 %v1078
      %1178 = vmatprep.subr.bf16.mxu0 0
      %1179 = vmatpush1.bf16.msra.mxu0 %v1079
      %1180 = vmatprep.subr.bf16.mxu0 0
      %1181 = vmatpush1.bf16.msra.mxu0 %v1080
      %1182 = vmatprep.subr.bf16.mxu0 0
      %1183 = vmatpush1.bf16.msra.mxu0 %v1081
      %1184 = vmatprep.subr.bf16.mxu0 0
      %1185 = vmatpush1.bf16.msra.mxu0 %v1082
      %1186 = vmatprep.subr.bf16.mxu0 0
      %1187 = vmatpush1.bf16.msra.mxu0 %v1083
      %1188 = vmatprep.mubr.bf16.mxu0 %v852
      %1189 = vmatmul.mubr.bf16.gmra.mrb[0].mxu0 %v851
      %v1190 = vpop.f32.mrb[0].mxu0
      %v1191 = vadd.f32 %v1151, %v1190
      %v1192 = vpop.f32.mrb[0].mxu0
      %v1193 = vpop.f32.mrb[0].mxu0
      %v1194 = vpop.f32.mrb[0].mxu0
      %1195 = vdwg.mxu0
      %v1196 = vadd.f32 %v487, %v1191
      %1197 = vst [vmem:[%s371] sm:$0xff] %v1196
      %p1198 = scmp.lt.s32.totalorder %s21, 1
      %s1199 = scalar_select %p1198, %s21, 1
      %s1200 = smul.addr %s1199, 8
      %s1201 = scalar_lea.vmem %s10, %s1200
      // Predicated region
      $region61: #{gpt_neo_forward.10} parent=59 // pred_check
        %p1202 = pneg %p259
      $region62: #{gpt_neo_forward.10} parent=59 // pred_check_branch
        %1204 = sbr.rel (%p1202) target = $region64
      $region63: #{gpt_neo_forward.10} parent=59 // pred_region
        _
      $region64: #{gpt_neo_forward.10} parent=59 // pred_fallthru
        _
    $region60: #{gpt_neo_forward.10} parent=5 // pred_fallthru
      _
    %p1205 = scmp.le.s32.totalorder 2, %s16
    // Predicated region
    $region65: #{gpt_neo_forward.10} parent=5 // pred_check
      %p1206 = pneg %p1205
    $region66: #{gpt_neo_forward.10} parent=5 // pred_check_branch
      %1208 = sbr.rel (%p1206) target = $region68
    $region67: #{gpt_neo_forward.10} parent=5 // pred_region
      %s1209 = ssub.s32 %s16, 2
      // Predicated region
      $region69: #{gpt_neo_forward.10} parent=67 // pred_check
        %p1210 = pneg %p265
      $region70: #{gpt_neo_forward.10} parent=67 // pred_check_branch
        %1212 = sbr.rel (%p1210) target = $region72
      $region71: #{gpt_neo_forward.10} parent=67 // pred_region
        %p1213 = scmp.lt.s32.totalorder %s22, 1
        %s1214 = scalar_select %p1213, %s22, 1
        %s1215 = smul.addr %s1214, 8
        %s1216 = scalar_lea.vmem %s10, %s1215
      $region72: #{gpt_neo_forward.10} parent=67 // pred_fallthru
        _
    $region68: #{gpt_neo_forward.10} parent=5 // pred_fallthru
      _
  $region6: #{gpt_neo_forward.10} parent=0 // loop_footer
    %s20 = sadd.s32 1, %s16
  $region7: #{gpt_neo_forward.10} parent=0 // loop_footer_branch
    %15 = sbr.rel target = $region3
  $region8: #{gpt_neo_forward.10} parent=0 // loop_exit
    _

// kernel: gpt_neo_forward.15
$region0: #{gpt_neo_forward.15}
  #allocation0 [shape = 'u32[]', space=smem, size = 0x4, offset = 0x4, fixed_abs, tag = 'smem constant byte address 0x4 - core index']
  #allocation1 [shape = 'u32[144,128]{1,0:T(1,128)}', space=vmem, size = 0x12000, scoped, tag = 'internal scratch']
  #allocation2 [shape = 'f32[8,256]{1,0:T(8,128)}', space=vmem, size = 0x2000, scoped, tag = 'scratch operand']
  #allocation3 [shape = 'f32[8,1]{1,0:T(8,128)}', space=vmem, size = 0x1000, scoped, tag = 'scratch operand']
  #allocation4 [shape = 'f32[8,1]{1,0:T(8,128)}', space=vmem, size = 0x1000, scoped, tag = 'scratch operand']
  #allocation5 [shape = 'f32[8,1]{1,0:T(8,128)}', space=vmem, size = 0x1000, scoped, tag = 'scratch operand']
  %s0 = inlined_call_operand.vmem [shape: f32[16,128], index: 0, kind: input, shape index: {}]
  %s1 = inlined_call_operand.vmem [shape: bf16[256,128], index: 1, kind: input, shape index: {}]
  %s2 = inlined_call_operand.vmem [shape: s32[16,1], index: 2, kind: input, shape index: {}]
  %s3 = inlined_call_operand.hbm [shape: f32[16,256], index: 3, kind: output, shape index: {0}]
  %s4 = inlined_call_operand.vmem [shape: f32[16,1], index: 4, kind: output, shape index: {1}]
  %5 = xla_tuple %s3, %s4
  %s6 = sld [smem:[#allocation0]]
  $region69: #{gpt_neo_forward.15} parent=0
    _
  %s8 = ssub.s32 1, %s6
  %s9 = scalar_select 0, %s8, %s6
  $region1: #{gpt_neo_forward.15} parent=0
    #allocation6 [shape = 'u8[16384]{0}', space=vmem, size = 0x4000, scoped, tag = 'output window, operand 0']
    #allocation7 [shape = 's32[2]{0}', space=sflag, size = 0x8, scoped, tag = 'scoped memory for gpt_neo_forward.15']
    %10 = vsyncpa [#allocation7], 0
    %s11 = scalar_lea.sflag [#allocation7], 1
    %12 = vsyncpa %s11, 0
    loop: start=0, step=1, limit=4
    $region2: #{gpt_neo_forward.15} parent=1 // loop_pre_header
      _
    $region3: #{gpt_neo_forward.15} parent=1 // loop_header
      %s14 = sphi 0, %s18
      %p15 = scmp.ge.s32.totalorder %s14, 4
      %s21 = sphi 0, %s40
      %s22 = sphi 0, %s36
      %s23 = sphi 0, %s32
      %s24 = sphi 0, %s21
      %s25 = sphi 0, %s22
      %s26 = sphi 0, %s23
      %s27 = sphi 0, %s24
      %s28 = sphi 0, %s25
      %s29 = sphi 0, %s26
      %s45 = sphi 0, %s47
      %s48 = sphi 0, %s45
      %s49 = sphi 0, %s48
      %s65 = sphi 0, %s49
      %s73 = sphi 0, %s75
      %s76 = sphi 0, %s73
      %s77 = sphi 0, %s76
      %s93 = sphi 0, %s77
      %s99 = sphi 0, %s101
      %s102 = sphi 0, %s99
      %s103 = sphi 0, %s102
      %s119 = sphi 0, %s103
      %s127 = sphi 0, %s129
      %s130 = sphi 0, %s127
      %s131 = sphi 0, %s130
      %s147 = sphi 0, %s131
      %s153 = sphi 0, %s155
      %s156 = sphi 0, %s153
      %s157 = sphi 0, %s156
      %s173 = sphi 0, %s157
    $region4: #{gpt_neo_forward.15} parent=1 // loop_header_branch
      %17 = sbr.rel (%p15) target = $region8
    $region5: #{gpt_neo_forward.15} parent=1 // loop_body
      %s19 = ssub.s32 %s14, 1
      %s20 = ssub.s32 %s14, 2
      %s30 = sadd.s32 1, %s23
      %p31 = scmp.ge.s32.totalorder %s30, 1
      %s32 = scalar_select %p31, 0, %s30
      %s33 = sadd.s32 1, %s22
      %s34 = scalar_select %p31, %s33, %s22
      %p35 = scmp.ge.s32.totalorder %s34, 1
      %s36 = scalar_select %p35, 0, %s34
      %s37 = sadd.s32 1, %s21
      %s38 = scalar_select %p35, %s37, %s21
      %p39 = scmp.ge.s32.totalorder %s38, 2
      %s40 = scalar_select %p39, 0, %s38
      %s41 = ssub.s32 %s21, %s40
      %s42 = ssub.s32 %s23, %s32
      %s43 = sor.u32 %s41, %s42
      %p44 = scmp.eq.s32.totalorder %s43, 0
      %s46 = sadd.s32 %s45, 1
      %s47 = scalar_select %p44, %s45, %s46
      %p50 = pneg %p44
      %p51 = scmp.eq.s32.totalorder %s14, 1
      %p52 = por %p50, %p51
      %p53 = scmp.ne.s32.totalorder %s45, %s48
      %p54 = scmp.eq.s32.totalorder %s14, 0
      %p55 = por %p53, %p54
      %p56 = scmp.ne.s32.totalorder %s45, %s48
      %p57 = scmp.eq.s32.totalorder %s19, 1
      %p58 = por %p56, %p57
      %p59 = scmp.ne.s32.totalorder %s48, %s49
      %p60 = scmp.eq.s32.totalorder %s19, 0
      %p61 = por %p59, %p60
      %p62 = scmp.ne.s32.totalorder %s48, %s49
      %p63 = scmp.eq.s32.totalorder %s20, 1
      %p64 = por %p62, %p63
      %p66 = scmp.ne.s32.totalorder %s49, %s65
      %p67 = scmp.eq.s32.totalorder %s20, 0
      %p68 = por %p66, %p67
      %s69 = ssub.s32 %s22, %s36
      %s70 = ssub.s32 %s23, %s32
      %s71 = sor.u32 %s69, %s70
      %p72 = scmp.eq.s32.totalorder %s71, 0
      %s74 = sadd.s32 %s73, 1
      %s75 = scalar_select %p72, %s73, %s74
      %p78 = pneg %p72
      %p79 = scmp.eq.s32.totalorder %s14, 1
      %p80 = por %p78, %p79
      %p81 = scmp.ne.s32.totalorder %s73, %s76
      %p82 = scmp.eq.s32.totalorder %s14, 0
      %p83 = por %p81, %p82
      %p84 = scmp.ne.s32.totalorder %s73, %s76
      %p85 = scmp.eq.s32.totalorder %s19, 1
      %p86 = por %p84, %p85
      %p87 = scmp.ne.s32.totalorder %s76, %s77
      %p88 = scmp.eq.s32.totalorder %s19, 0
      %p89 = por %p87, %p88
      %p90 = scmp.ne.s32.totalorder %s76, %s77
      %p91 = scmp.eq.s32.totalorder %s20, 1
      %p92 = por %p90, %p91
      %p94 = scmp.ne.s32.totalorder %s77, %s93
      %p95 = scmp.eq.s32.totalorder %s20, 0
      %p96 = por %p94, %p95
      %s97 = ssub.s32 %s21, %s40
      %p98 = scmp.eq.s32.totalorder %s97, 0
      %s100 = sadd.s32 %s99, 1
      %s101 = scalar_select %p98, %s99, %s100
      %p104 = pneg %p98
      %p105 = scmp.eq.s32.totalorder %s14, 1
      %p106 = por %p104, %p105
      %p107 = scmp.ne.s32.totalorder %s99, %s102
      %p108 = scmp.eq.s32.totalorder %s14, 0
      %p109 = por %p107, %p108
      %p110 = scmp.ne.s32.totalorder %s99, %s102
      %p111 = scmp.eq.s32.totalorder %s19, 1
      %p112 = por %p110, %p111
      %p113 = scmp.ne.s32.totalorder %s102, %s103
      %p114 = scmp.eq.s32.totalorder %s19, 0
      %p115 = por %p113, %p114
      %p116 = scmp.ne.s32.totalorder %s102, %s103
      %p117 = scmp.eq.s32.totalorder %s20, 1
      %p118 = por %p116, %p117
      %p120 = scmp.ne.s32.totalorder %s103, %s119
      %p121 = scmp.eq.s32.totalorder %s20, 0
      %p122 = por %p120, %p121
      %s123 = ssub.s32 %s21, %s40
      %s124 = ssub.s32 %s22, %s36
      %s125 = sor.u32 %s123, %s124
      %p126 = scmp.eq.s32.totalorder %s125, 0
      %s128 = sadd.s32 %s127, 1
      %s129 = scalar_select %p126, %s127, %s128
      %p132 = pneg %p126
      %p133 = scmp.eq.s32.totalorder %s14, 1
      %p134 = por %p132, %p133
      %p135 = scmp.ne.s32.totalorder %s127, %s130
      %p136 = scmp.eq.s32.totalorder %s14, 0
      %p137 = por %p135, %p136
      %p138 = scmp.ne.s32.totalorder %s127, %s130
      %p139 = scmp.eq.s32.totalorder %s19, 1
      %p140 = por %p138, %p139
      %p141 = scmp.ne.s32.totalorder %s130, %s131
      %p142 = scmp.eq.s32.totalorder %s19, 0
      %p143 = por %p141, %p142
      %p144 = scmp.ne.s32.totalorder %s130, %s131
      %p145 = scmp.eq.s32.totalorder %s20, 1
      %p146 = por %p144, %p145
      %p148 = scmp.ne.s32.totalorder %s131, %s147
      %p149 = scmp.eq.s32.totalorder %s20, 0
      %p150 = por %p148, %p149
      %s151 = ssub.s32 %s21, %s40
      %p152 = scmp.eq.s32.totalorder %s151, 0
      %s154 = sadd.s32 %s153, 1
      %s155 = scalar_select %p152, %s153, %s154
      %p158 = pneg %p152
      %p159 = scmp.eq.s32.totalorder %s14, 1
      %p160 = por %p158, %p159
      %p161 = scmp.ne.s32.totalorder %s153, %s156
      %p162 = scmp.eq.s32.totalorder %s14, 0
      %p163 = por %p161, %p162
      %p164 = scmp.ne.s32.totalorder %s153, %s156
      %p165 = scmp.eq.s32.totalorder %s19, 1
      %p166 = por %p164, %p165
      %p167 = scmp.ne.s32.totalorder %s156, %s157
      %p168 = scmp.eq.s32.totalorder %s19, 0
      %p169 = por %p167, %p168
      %p170 = scmp.ne.s32.totalorder %s156, %s157
      %p171 = scmp.eq.s32.totalorder %s20, 1
      %p172 = por %p170, %p171
      %p174 = scmp.ne.s32.totalorder %s157, %s173
      %p175 = scmp.eq.s32.totalorder %s20, 0
      %p176 = por %p174, %p175
      %p177 = scmp.le.s32.totalorder 1, %s14
      %p178 = scmp.lt.s32.totalorder %s14, 3
      %p179 = pnand %p177, %p178
      %p180 = pneg %p179
      // Predicated region
      $region9: #{gpt_neo_forward.15} parent=5 // pred_check
        _
      $region10: #{gpt_neo_forward.15} parent=5 // pred_check_branch
        %182 = sbr.rel (%p179) target = $region12
      $region11: #{gpt_neo_forward.15} parent=5 // pred_region
        %s183 = ssub.s32 %s14, 1
        // Predicated region
        $region13: #{gpt_neo_forward.15} parent=11 // pred_check
          %p184 = pneg %p89
        $region14: #{gpt_neo_forward.15} parent=11 // pred_check_branch
          %186 = sbr.rel (%p184) target = $region16
        $region15: #{gpt_neo_forward.15} parent=11 // pred_region
          %s187 = smul.u32 32, %s25
          %p188 = scmp.lt.s32.totalorder %s187, 31
          %s189 = scalar_select %p188, %s187, 31
          %p190 = scmp.lt.s32.totalorder %s26, 0
          %s191 = scalar_select %p190, %s26, 0
          %s192 = sadd.s32 %s191, %s189
          %s193 = smul.addr %s192, 4
          %s194 = scalar_lea.vmem %s1, %s193
          %s195 = smul.u32 32, %s25
        $region16: #{gpt_neo_forward.15} parent=11 // pred_fallthru
          _
      $region12: #{gpt_neo_forward.15} parent=5 // pred_fallthru
        _
      %p196 = scmp.lt.s32.totalorder %s14, 2
      // Predicated region
      $region17: #{gpt_neo_forward.15} parent=5 // pred_check
        %p197 = pneg %p196
      $region18: #{gpt_neo_forward.15} parent=5 // pred_check_branch
        %199 = sbr.rel (%p197) target = $region20
      $region19: #{gpt_neo_forward.15} parent=5 // pred_region
        // Predicated region
        $region21: #{gpt_neo_forward.15} parent=19 // pred_check
          %p200 = pneg %p55
        $region22: #{gpt_neo_forward.15} parent=19 // pred_check_branch
          %202 = sbr.rel (%p200) target = $region24
        $region23: #{gpt_neo_forward.15} parent=19 // pred_region
          %p203 = scmp.lt.s32.totalorder %s21, 1
          %s204 = scalar_select %p203, %s21, 1
          %p205 = scmp.lt.s32.totalorder %s23, 0
          %s206 = scalar_select %p205, %s23, 0
          %s207 = sadd.s32 %s206, %s204
          %s208 = smul.addr %s207, 8
          %s209 = scalar_lea.vmem %s0, %s208
        $region24: #{gpt_neo_forward.15} parent=19 // pred_fallthru
          _
        // Predicated region
        $region25: #{gpt_neo_forward.15} parent=19 // pred_check
          %p210 = pneg %p109
        $region26: #{gpt_neo_forward.15} parent=19 // pred_check_branch
          %212 = sbr.rel (%p210) target = $region28
        $region27: #{gpt_neo_forward.15} parent=19 // pred_region
          %p213 = scmp.lt.s32.totalorder %s21, 1
          %s214 = scalar_select %p213, %s21, 1
          %s215 = smul.addr %s214, 8
          %s216 = scalar_lea.vmem %s2, %s215
        $region28: #{gpt_neo_forward.15} parent=19 // pred_fallthru
          _
      $region20: #{gpt_neo_forward.15} parent=5 // pred_fallthru
        _
      %p217 = scmp.le.s32.totalorder 1, %s14
      %p218 = scmp.lt.s32.totalorder %s14, 3
      %p219 = pnand %p217, %p218
      %p220 = pneg %p219
      // Predicated region
      $region29: #{gpt_neo_forward.15} parent=5 // pred_check
        _
      $region30: #{gpt_neo_forward.15} parent=5 // pred_check_branch
        %222 = sbr.rel (%p219) target = $region32
      $region31: #{gpt_neo_forward.15} parent=5 // pred_region
        %s223 = ssub.s32 %s14, 1
        %p224 = scmp.lt.s32.totalorder %s24, 1
        %s225 = scalar_select %p224, %s24, 1
        %p226 = scmp.lt.s32.totalorder %s26, 0
        %s227 = scalar_select %p226, %s26, 0
        %s228 = sadd.s32 %s227, %s225
        %s229 = smul.addr %s228, 8
        %s230 = scalar_lea.vmem %s0, %s229
        %p231 = pneg %p61
        %p232 = pneg %p58
        %s233 = smul.u32 32, %s25
        %p234 = scmp.lt.s32.totalorder %s233, 31
        %s235 = scalar_select %p234, %s233, 31
        %p236 = scmp.lt.s32.totalorder %s26, 0
        %s237 = scalar_select %p236, %s26, 0
        %s238 = sadd.s32 %s237, %s235
        %s239 = smul.addr %s238, 4
        %s240 = scalar_lea.vmem %s1, %s239
        %p241 = pneg %p89
        %p242 = pneg %p86
        %p243 = scmp.lt.s32.totalorder %s24, 1
        %s244 = scalar_select %p243, %s24, 1
        %s245 = smul.addr %s244, 8
        %s246 = scalar_lea.vmem %s2, %s245
        %p247 = pneg %p115
        %p248 = pneg %p112
        %p249 = pneg %p143
        %p250 = pneg %p140
        %s251 = sand.u32 %s130, 1
        %s252 = scalar_lea.sflag [#allocation7], %s251
        %s253 = sand.u32 %s130, 1
        %s254 = smul.addr %s253, 16
        %s255 = scalar_lea.vmem [#allocation6], %s254
        %p256 = pneg %p169
        %p257 = pneg %p166
        %p258 = scmp.lt.s32.totalorder %s24, 1
        %s259 = scalar_select %p258, %s24, 1
        %s260 = smul.addr %s259, 8
        %s261 = scalar_lea.vmem %s4, %s260
        %p262 = scmp.lt.s32.totalorder %s24, 1
        %s263 = scalar_select %p262, %s24, 1
        %p264 = scmp.lt.s32.totalorder %s26, 0
        %s265 = scalar_select %p264, %s26, 0
        %s266 = sadd.s32 %s265, %s263
        %s267 = smul.addr %s266, 8
        %s268 = scalar_lea.vmem %s0, %s267
        %s269 = smul.u32 32, %s25
        %p270 = scmp.lt.s32.totalorder %s269, 31
        %s271 = scalar_select %p270, %s269, 31
        %p272 = scmp.lt.s32.totalorder %s26, 0
        %s273 = scalar_select %p272, %s26, 0
        %s274 = sadd.s32 %s273, %s271
        %s275 = smul.addr %s274, 4
        %s276 = scalar_lea.vmem %s1, %s275
        %s277 = smul.u32 32, %s25
        %p278 = scmp.lt.s32.totalorder %s24, 1
        %s279 = scalar_select %p278, %s24, 1
        %s280 = smul.addr %s279, 8
        %s281 = scalar_lea.vmem %s2, %s280
        %s282 = smul.u32 2, %s25
        %p283 = scmp.lt.s32.totalorder %s24, 1
        %s284 = scalar_select %p283, %s24, 1
        %s285 = smul.addr %s284, 8
        %s286 = scalar_lea.vmem %s4, %s285
        %p288 = scmp.eq.s32.totalorder %s26, 0
        // Predicated region
        $region33: #{gpt_neo_forward.15} parent=31 // pred_check
          %p289 = pneg %p288
        $region34: #{gpt_neo_forward.15} parent=31 // pred_check_branch
          %291 = sbr.rel (%p289) target = $region36
        $region35: #{gpt_neo_forward.15} parent=31 // pred_region
          %292 = vst [vmem:[#allocation2] sm:$0xff] 0.0
          %293 = vst [vmem:[#allocation2 + $0x8] sm:$0xff] 0.0
        $region36: #{gpt_neo_forward.15} parent=31 // pred_fallthru
          _
        %v294 = vld [vmem:[#allocation2] sm:$0xff]
        %v295 = vld [vmem:[#allocation2 + $0x8] sm:$0xff]
        %v296 = vld [vmem:[%s268] sm:$0xff]
        %v297 = vpack.c.bf16 %v296, %v296
        %v298 = vld [vmem:[%s276] sm:$0xf]
        %v299 = vld [vmem:[%s276 + $0x4] sm:$0xf]
        %v300 = vld [vmem:[%s276 + $0x8] sm:$0xf]
        %v301 = vld [vmem:[%s276 + $0xc] sm:$0xf]
        %v302 = vld [vmem:[%s276 + $0x10] sm:$0xf]
        %v303 = vld [vmem:[%s276 + $0x14] sm:$0xf]
        %v304 = vld [vmem:[%s276 + $0x18] sm:$0xf]
        %v305 = vld [vmem:[%s276 + $0x1c] sm:$0xf]
        %v306 = vld [vmem:[%s276 + $0x20] sm:$0xf]
        %v307 = vld [vmem:[%s276 + $0x24] sm:$0xf]
        %v308 = vld [vmem:[%s276 + $0x28] sm:$0xf]
        %v309 = vld [vmem:[%s276 + $0x2c] sm:$0xf]
        %v310 = vld [vmem:[%s276 + $0x30] sm:$0xf]
        %v311 = vld [vmem:[%s276 + $0x34] sm:$0xf]
        %v312 = vld [vmem:[%s276 + $0x38] sm:$0xf]
        %v313 = vld [vmem:[%s276 + $0x3c] sm:$0xf]
        %v314 = vld [vmem:[%s276 + $0x40] sm:$0xf]
        %v315 = vld [vmem:[%s276 + $0x44] sm:$0xf]
        %v316 = vld [vmem:[%s276 + $0x48] sm:$0xf]
        %v317 = vld [vmem:[%s276 + $0x4c] sm:$0xf]
        %v318 = vld [vmem:[%s276 + $0x50] sm:$0xf]
        %v319 = vld [vmem:[%s276 + $0x54] sm:$0xf]
        %v320 = vld [vmem:[%s276 + $0x58] sm:$0xf]
        %v321 = vld [vmem:[%s276 + $0x5c] sm:$0xf]
        %v322 = vld [vmem:[%s276 + $0x60] sm:$0xf]
        %v323 = vld [vmem:[%s276 + $0x64] sm:$0xf]
        %v324 = vld [vmem:[%s276 + $0x68] sm:$0xf]
        %v325 = vld [vmem:[%s276 + $0x6c] sm:$0xf]
        %v326 = vld [vmem:[%s276 + $0x70] sm:$0xf]
        %v327 = vld [vmem:[%s276 + $0x74] sm:$0xf]
        %v328 = vld [vmem:[%s276 + $0x78] sm:$0xf]
        %v329 = vld [vmem:[%s276 + $0x7c] sm:$0xf]
        %v362 = vunpack.c.l.b16 %v298
        %v363 = vunpack.c.l.b16 %v299
        %v364 = vunpack.c.l.b16 %v300
        %v365 = vunpack.c.l.b16 %v301
        %v366 = vunpack.c.l.b16 %v302
        %v367 = vunpack.c.l.b16 %v303
        %v368 = vunpack.c.l.b16 %v304
        %v369 = vunpack.c.l.b16 %v305
        %v370 = vunpack.c.l.b16 %v306
        %v371 = vunpack.c.l.b16 %v307
        %v372 = vunpack.c.l.b16 %v308
        %v373 = vunpack.c.l.b16 %v309
        %v374 = vunpack.c.l.b16 %v310
        %v375 = vunpack.c.l.b16 %v311
        %v376 = vunpack.c.l.b16 %v312
        %v377 = vunpack.c.l.b16 %v313
        %v378 = vunpack.c.l.b16 %v314
        %v379 = vunpack.c.l.b16 %v315
        %v380 = vunpack.c.l.b16 %v316
        %v381 = vunpack.c.l.b16 %v317
        %v382 = vunpack.c.l.b16 %v318
        %v383 = vunpack.c.l.b16 %v319
        %v384 = vunpack.c.l.b16 %v320
        %v385 = vunpack.c.l.b16 %v321
        %v386 = vunpack.c.l.b16 %v322
        %v387 = vunpack.c.l.b16 %v323
        %v388 = vunpack.c.l.b16 %v324
        %v389 = vunpack.c.l.b16 %v325
        %v390 = vunpack.c.l.b16 %v326
        %v391 = vunpack.c.l.b16 %v327
        %v392 = vunpack.c.l.b16 %v328
        %v393 = vunpack.c.l.b16 %v329
        %v394 = vpack.c.b16 %v363, %v362
        %v395 = vpack.c.b16 %v365, %v364
        %v396 = vpack.c.b16 %v367, %v366
        %v397 = vpack.c.b16 %v369, %v368
        %v398 = vpack.c.b16 %v371, %v370
        %v399 = vpack.c.b16 %v373, %v372
        %v400 = vpack.c.b16 %v375, %v374
        %v401 = vpack.c.b16 %v377, %v376
        %v402 = vpack.c.b16 %v379, %v378
        %v403 = vpack.c.b16 %v381, %v380
        %v404 = vpack.c.b16 %v383, %v382
        %v405 = vpack.c.b16 %v385, %v384
        %v406 = vpack.c.b16 %v387, %v386
        %v407 = vpack.c.b16 %v389, %v388
        %v408 = vpack.c.b16 %v391, %v390
        %v409 = vpack.c.b16 %v393, %v392
        %426 = vmatprep.subr.bf16.mxu0 0
        %427 = vmatpush1.bf16.xpose.msra.mxu0 %v394
        %428 = vmatprep.subr.bf16.mxu0 0
        %429 = vmatpush1.bf16.xpose.msra.mxu0 %v395
        %430 = vmatprep.subr.bf16.mxu0 0
        %431 = vmatpush1.bf16.xpose.msra.mxu0 %v396
        %432 = vmatprep.subr.bf16.mxu0 0
        %433 = vmatpush1.bf16.xpose.msra.mxu0 %v397
        %434 = vmatprep.subr.bf16.mxu0 0
        %435 = vmatpush1.bf16.xpose.msra.mxu0 %v398
        %436 = vmatprep.subr.bf16.mxu0 0
        %437 = vmatpush1.bf16.xpose.msra.mxu0 %v399
        %438 = vmatprep.subr.bf16.mxu0 0
        %439 = vmatpush1.bf16.xpose.msra.mxu0 %v400
        %440 = vmatprep.subr.bf16.mxu0 0
        %441 = vmatpush1.bf16.xpose.msra.mxu0 %v401
        %442 = vmatprep.subr.bf16.mxu0 0
        %443 = vmatpush1.bf16.xpose.msra.mxu0 %v402
        %444 = vmatprep.subr.bf16.mxu0 0
        %445 = vmatpush1.bf16.xpose.msra.mxu0 %v403
        %446 = vmatprep.subr.bf16.mxu0 0
        %447 = vmatpush1.bf16.xpose.msra.mxu0 %v404
        %448 = vmatprep.subr.bf16.mxu0 0
        %449 = vmatpush1.bf16.xpose.msra.mxu0 %v405
        %450 = vmatprep.subr.bf16.mxu0 0
        %451 = vmatpush1.bf16.xpose.msra.mxu0 %v406
        %452 = vmatprep.subr.bf16.mxu0 0
        %453 = vmatpush1.bf16.xpose.msra.mxu0 %v407
        %454 = vmatprep.subr.bf16.mxu0 0
        %455 = vmatpush1.bf16.xpose.msra.mxu0 %v408
        %456 = vmatprep.subr.bf16.mxu0 0
        %457 = vmatpush1.bf16.xpose.msra.mxu0 %v409
        %458 = vmatprep.mubr.bf16.mxu0 0
        %459 = vmatmul.mubr.bf16.gmra.mrb[0].mxu0 %v297
        %v460 = vpop.f32.mrb[0].mxu0
        %v461 = vadd.f32 0.0, %v460
        %v462 = vpop.f32.mrb[0].mxu0
        %v463 = vadd.f32 0.0, %v462
        %v464 = vpop.f32.mrb[0].mxu0
        %v465 = vpop.f32.mrb[0].mxu0
        %466 = vdwg.mxu0
        %v467 = vadd.f32 %v294, %v461
        %v468 = vadd.f32 %v295, %v463
        %469 = vst [vmem:[#allocation2] sm:$0xff] %v467
        %470 = vst [vmem:[#allocation2 + $0x8] sm:$0xff] %v468
        // Predicated region
        $region37: #{gpt_neo_forward.15} parent=31 // pred_check
          %p471 = pneg %p288
        $region38: #{gpt_neo_forward.15} parent=31 // pred_check_branch
          %473 = sbr.rel (%p471) target = $region40
        $region39: #{gpt_neo_forward.15} parent=31 // pred_region
          %v474 = vld [vmem:[#allocation2] sm:$0xff]
          %v475 = vld [vmem:[#allocation2 + $0x8] sm:$0xff]
          %476 = vst [vmem:[%s255] sm:$0xff] %v474
          %477 = vst [vmem:[%s255 + $0x8] sm:$0xff] %v475
          %p478 = scmp.eq.s32.totalorder %s25, 0
          // Predicated region
          $region41: #{gpt_neo_forward.15} parent=39 // pred_check
            %p479 = pneg %p478
          $region42: #{gpt_neo_forward.15} parent=39 // pred_check_branch
            %481 = sbr.rel (%p479) target = $region44
          $region43: #{gpt_neo_forward.15} parent=39 // pred_region
            %vm482 = vcmask 7168
            %483 = vst.msk [vmem:[#allocation3] sm:$0xff] %vm482, -1e+30
            %484 = vst.msk [vmem:[#allocation4] sm:$0xff] %vm482, 0.0
            %485 = vst.msk [vmem:[#allocation5] sm:$0xff] %vm482, 0.0
          $region44: #{gpt_neo_forward.15} parent=39 // pred_fallthru
            _
          %v486 = vld [vmem:[#allocation3] sm:$0xff]
          %v487 = vmax.f32 %v474, %v475
          %488 = vmax.xlane.f32.xlu0 %v487
          %v489 = vpop.xlane.xlu0 %488
          %v490 = vmax.f32 %v486, %v489
          %v491 = vld [vmem:[#allocation4] sm:$0xff]
          %v492 = vsub.f32 %v486, %v490
          %v493 = vmul.f32 %v492, 1.442695
          %v494 = vpow.pop %v493
          %v495 = vmul.f32 %v491, %v494
          %497 = vset.pattern.permute.xlu0 0
          %498 = vperm.xlu0 %497, %v490
          %v499 = vpop.permute.xlu0 %498
          %v501 = vsub.f32 %v474, %v499
          %v502 = vsub.f32 %v475, %v499
          %v503 = vmul.f32 %v501, 1.442695
          %v504 = vpow.pop %v503
          %v505 = vmul.f32 %v502, 1.442695
          %v506 = vpow.pop %v505
          %v507 = vadd.f32 %v504, %v506
          %508 = vadd.xlane.f32.xlu0 %v507
          %v509 = vpop.xlane.xlu0 %508
          %v510 = vadd.f32 %v495, %v509
          %vm511 = vcmask 7168
          %512 = vst.msk [vmem:[#allocation4] sm:$0xff] %vm511, %v510
          %513 = vst.msk [vmem:[#allocation3] sm:$0xff] %vm511, %v490
          %v514 = vlaneseq
          %v515 = vand.u32 %v514, 127
          %v516 = vadd.s32 %v515, 128
          %s517 = smul.u32 %s25, 256
          %v518 = vstv %s517
          %v519 = vadd.s32 %v515, %v518
          %v520 = vadd.s32 %v516, %v518
          %v521 = vld [vmem:[#allocation5] sm:$0xff]
          %v522 = vld [vmem:[%s281] sm:$0xff]
          %523 = vset.pattern.permute.xlu0 0
          %524 = vperm.xlu0 %523, %v522
          %v525 = vpop.permute.xlu0 %524
          %vm526 = vcmp.eq.s32.totalorder %v519, %v525
          %vm527 = vcmp.eq.s32.totalorder %v520, %v525
          %v528 = vsel %vm526, %v474, 0.0
          %v529 = vsel %vm527, %v475, 0.0
          %v530 = vadd.f32 %v528, %v529
          %531 = vadd.xlane.f32.xlu0 %v530
          %v532 = vpop.xlane.xlu0 %531
          %v533 = vadd.f32 %v521, %v532
          %534 = vst.msk [vmem:[#allocation5] sm:$0xff] %vm511, %v533
          // Predicated region
          $region45: #{gpt_neo_forward.15} parent=39 // pred_check
            %p535 = pneg %p478
          $region46: #{gpt_neo_forward.15} parent=39 // pred_check_branch
            %537 = sbr.rel (%p535) target = $region48
          $region47: #{gpt_neo_forward.15} parent=39 // pred_region
            %v538 = vld [vmem:[%s281] sm:$0xff]
            %vm539 = vcmp.ge.s32.totalorder %v538, 0
            %v540 = vsel %vm539, 1, 0
            %v541 = vcvt.s32.f32 %v540
            %v542 = vld [vmem:[#allocation3] sm:$0xff]
            %v543 = vld [vmem:[#allocation4] sm:$0xff]
            %v544 = vlog2.pop %v543
            %v545 = vmul.f32 %v544, 0.6931472
            %v546 = vadd.f32 %v542, %v545
            %v547 = vld [vmem:[#allocation5] sm:$0xff]
            %v548 = vsub.f32 %v546, %v547
            %v549 = vmul.f32 %v541, %v548
            %550 = vst.msk [vmem:[%s286] sm:$0xff] %vm511, %v549
          $region48: #{gpt_neo_forward.15} parent=39 // pred_fallthru
            _
        $region40: #{gpt_neo_forward.15} parent=31 // pred_fallthru
          _
        %s551 = sand.u32 %s130, 1
        %s552 = scalar_lea.sflag [#allocation7], %s551
        %s553 = sand.u32 %s130, 1
        %s554 = smul.addr %s553, 16
        %s555 = scalar_lea.vmem [#allocation6], %s554
        %p556 = scmp.lt.s32.totalorder %s24, 1
        %s557 = scalar_select %p556, %s24, 1
        %s558 = smul.addr %s557, 8
        %s559 = scalar_lea.vmem %s4, %s558
        // Predicated region
        $region49: #{gpt_neo_forward.15} parent=31 // pred_check
          %p560 = pneg %p140
        $region50: #{gpt_neo_forward.15} parent=31 // pred_check_branch
          %562 = sbr.rel (%p560) target = $region52
        $region51: #{gpt_neo_forward.15} parent=31 // pred_region
          %s563 = smul.u32 2, %s25
          %s565 = ssub.s32 256, 256
          %566 = vsyncadd %s552, %s565
          %s567 = smul.addr %s24, 2
          %s568 = sadd.s32 %s563, %s567
          %s569 = smul.addr %s568, 128
          %s570 = scalar_lea.hbm %s3, %s569
          %s572 = sshll.u32 %s555, 4
          %s573 = int_to_ptr.vmem [resolvable:$true] %s572
          %575 = dma.vmem_to_hbm [thread:$0]  %s573, 256, %s570, %s552
        $region52: #{gpt_neo_forward.15} parent=31 // pred_fallthru
          _
        // Predicated region
        $region53: #{gpt_neo_forward.15} parent=31 // pred_check
          %p576 = pneg %p166
        $region54: #{gpt_neo_forward.15} parent=31 // pred_check_branch
          %578 = sbr.rel (%p576) target = $region56
        $region55: #{gpt_neo_forward.15} parent=31 // pred_region
          _
        $region56: #{gpt_neo_forward.15} parent=31 // pred_fallthru
          _
      $region32: #{gpt_neo_forward.15} parent=5 // pred_fallthru
        _
      %p579 = scmp.le.s32.totalorder 2, %s14
      // Predicated region
      $region57: #{gpt_neo_forward.15} parent=5 // pred_check
        %p580 = pneg %p579
      $region58: #{gpt_neo_forward.15} parent=5 // pred_check_branch
        %582 = sbr.rel (%p580) target = $region60
      $region59: #{gpt_neo_forward.15} parent=5 // pred_region
        %s583 = ssub.s32 %s14, 2
        // Predicated region
        $region61: #{gpt_neo_forward.15} parent=59 // pred_check
          %p584 = pneg %p146
        $region62: #{gpt_neo_forward.15} parent=59 // pred_check_branch
          %586 = sbr.rel (%p584) target = $region64
        $region63: #{gpt_neo_forward.15} parent=59 // pred_region
          %s587 = sand.u32 %s131, 1
          %s588 = scalar_lea.sflag [#allocation7], %s587
          %s589 = sand.u32 %s131, 1
          %s590 = smul.addr %s589, 16
          %s591 = scalar_lea.vmem [#allocation6], %s590
          %592 = dma.done %s588, 256
        $region64: #{gpt_neo_forward.15} parent=59 // pred_fallthru
          _
        // Predicated region
        $region65: #{gpt_neo_forward.15} parent=59 // pred_check
          %p593 = pneg %p172
        $region66: #{gpt_neo_forward.15} parent=59 // pred_check_branch
          %595 = sbr.rel (%p593) target = $region68
        $region67: #{gpt_neo_forward.15} parent=59 // pred_region
          %p596 = scmp.lt.s32.totalorder %s27, 1
          %s597 = scalar_select %p596, %s27, 1
          %s598 = smul.addr %s597, 8
          %s599 = scalar_lea.vmem %s4, %s598
        $region68: #{gpt_neo_forward.15} parent=59 // pred_fallthru
          _
      $region60: #{gpt_neo_forward.15} parent=5 // pred_fallthru
        _
    $region6: #{gpt_neo_forward.15} parent=1 // loop_footer
      %s18 = sadd.s32 1, %s14
    $region7: #{gpt_neo_forward.15} parent=1 // loop_footer_branch
      %13 = sbr.rel target = $region3
    $region8: #{gpt_neo_forward.15} parent=1 // loop_exit
      _
    %600 = vsyncpa [#allocation7], 1
    %s601 = scalar_lea.sflag [#allocation7], 1
    %602 = vsyncpa %s601, 1

</llo_original>
